<compile_context>
chip_gen: v5e
topology: v5e:2x2
jax: 0.10.0
libtpu: 0.0.40
codegen_flags: <defaults>
</compile_context>

<pallas_src>
import math
import jax
import jax.numpy as jnp
from jax.experimental import pallas as pl
from jax.experimental.pallas import tpu as pltpu

# ---------------- config (small, consistent with the module) ----------------
BERT_HIDDEN = 64      # "bert.config.hidden_size" (!= HIDDEN so bert_proj exists)
HIDDEN      = 32      # hidden_size
NUM_HEADS   = 4
HEAD_DIM    = HIDDEN // NUM_HEADS
NUM_LAYERS  = 2
VOCAB       = 96
VOCAB_PAD   = 128     # lane-dense logits slab (sliced back to VOCAB outside)
NK_PAD      = 128     # lane-dense cross-attn-weight slab (sliced back to Nk outside)
FFN_DIM     = 4 * HIDDEN
LN_EPS      = 1e-5
NEG_INF     = -1e9

# ---------------- packed weight-slab row layout (rows x 128 lanes, f32) ----------------
# per-layer block:
_SAW = 0                       # (HIDDEN, 4H)  [WqT*scale | WkT | WvT | WoT]   self-attn
_SAB = _SAW + HIDDEN           # (1, 4H)       [bq*scale | bk | bv | bo]
_CAW = _SAB + 1                # (HIDDEN, 4H)                                  cross-attn
_CAB = _CAW + HIDDEN           # (1, 4H)
_F1W = _CAB + 1                # (HIDDEN, FFN_DIM)
_F1B = _F1W + HIDDEN           # (1, FFN_DIM)
_F2W = _F1B + 1                # (FFN_DIM, HIDDEN)  lanes 0:HIDDEN
_F2B = _F2W + FFN_DIM          # (1, HIDDEN)
_LNG = _F2B + 1                # (3, HIDDEN)   ln1/ln2/ln3 gamma
_LNB = _LNG + 3                # (3, HIDDEN)   ln1/ln2/ln3 beta
PROWS = _LNB + 3               # = 234 rows per layer
# globals (after the NUM_LAYERS blocks):
WTIED_OFF = NUM_LAYERS * PROWS             # (HIDDEN, VOCAB_PAD)  W_tied = proj_w @ embed.T
GLOB_OFF  = WTIED_OFF + HIDDEN
_PROJW    = GLOB_OFF                       # (BERT_HIDDEN, HIDDEN) proj_w.T, lanes 0:HIDDEN
_PROJB    = GLOB_OFF + BERT_HIDDEN         # (1, HIDDEN)
_NOG      = _PROJB + 1                     # (1, HIDDEN)  final LN gamma
_NOB      = _NOG + 1                       # (1, HIDDEN)  final LN beta
POS_OFF   = _NOB + 1                       # (seq_len, HIDDEN) sinusoidal positional encoding


# ---------------- in-kernel helpers (traced inline) ----------------
def _layernorm(x, g, b):
    mu = jnp.mean(x, axis=-1, keepdims=True)
    d = x - mu
    var = jnp.mean(d * d, axis=-1, keepdims=True)
    return d * jax.lax.rsqrt(var + LN_EPS) * g + b


def _split_heads(x2d, n):
    # (n, HIDDEN) -> (NUM_HEADS, n, HEAD_DIM): static lane slices stacked along a new major axis
    return jnp.stack([x2d[:, h * HEAD_DIM:(h + 1) * HEAD_DIM] for h in range(NUM_HEADS)],
                     axis=0)


def _mha(xq, xkv, w, b, mask, *, fused_qkv, need_weights):
    """Multi-head attention, batched over heads.

    w: (HIDDEN, 4H) packed [WqT*scale | WkT | WvT | WoT]; b: (1, 4H).
    mask: additive, broadcastable against (NUM_HEADS, Nq, Nk). Scale pre-folded into Wq/bq.
    """
    H = HIDDEN
    Nq, Nk = xq.shape[0], xkv.shape[0]
    if fused_qkv:
        qkv = jnp.dot(xq, w[:, :3 * H], preferred_element_type=jnp.float32) + b[:, :3 * H]
        q, k, v = qkv[:, :H], qkv[:, H:2 * H], qkv[:, 2 * H:3 * H]
    else:
        q = jnp.dot(xq, w[:, :H], preferred_element_type=jnp.float32) + b[:, :H]
        kv = jnp.dot(xkv, w[:, H:3 * H], preferred_element_type=jnp.float32) + b[:, H:3 * H]
        k, v = kv[:, :H], kv[:, H:2 * H]

    qh, kh, vh = _split_heads(q, Nq), _split_heads(k, Nk), _split_heads(v, Nk)

    # one batched score matmul + one softmax for all heads
    s = jnp.einsum('hqd,hkd->hqk', qh, kh, preferred_element_type=jnp.float32) + mask
    s = s - jnp.max(s, axis=-1, keepdims=True)
    p = jnp.exp(s)
    denom = jnp.sum(p, axis=-1, keepdims=True)
    if need_weights:
        p = p / denom                      # exact: these weights are returned to the caller
        w_avg = jnp.mean(p, axis=0)        # head-averaged (Nq, Nk)
    else:
        p = p * pl.reciprocal(denom, approx=True)   # EUP slot, internal use only
        w_avg = None

    ctx = jnp.einsum('hqk,hkd->hqd', p, vh, preferred_element_type=jnp.float32)
    ctx2d = jnp.concatenate([ctx[h] for h in range(NUM_HEADS)], axis=-1)    # (Nq, H)
    out = jnp.dot(ctx2d, w[:, 3 * H:], preferred_element_type=jnp.float32) + b[:, 3 * H:]
    return out, w_avg


def _fused_decoder_kernel(emb_ref, enc_ref, tbias_ref, ebias_ref, w_ref,
                          logits_ref, caw_ref):
    N = emb_ref.shape[1]
    Nk = enc_ref.shape[1]
    H = HIDDEN

    emb = emb_ref[...].reshape(N, BERT_HIDDEN)
    enc = enc_ref[...].reshape(Nk, H)
    tbias = tbias_ref[...].reshape(1, N)       # additive target-pad bias (0 / NEG_INF)
    ebias = ebias_ref[...].reshape(1, Nk)      # additive encoder-pad bias

    # ---- unpack the single weight slab with static ref slices ----
    projw = w_ref[_PROJW:_PROJW + BERT_HIDDEN, 0:H]        # (BERT_HIDDEN, H)
    projb = w_ref[_PROJB:_PROJB + 1, 0:H]
    nog   = w_ref[_NOG:_NOG + 1, 0:H]
    nob   = w_ref[_NOB:_NOB + 1, 0:H]
    pos   = w_ref[POS_OFF:POS_OFF + N, 0:H]                # (N, H)
    wtied = w_ref[WTIED_OFF:WTIED_OFF + H, :]              # (H, VOCAB_PAD)

    # embedding projection + positional encoding (dropout == identity in eval)
    x = jnp.dot(emb, projw, preferred_element_type=jnp.float32) + projb + pos

    # masks built in-kernel (causal from iota + padding bias), added once per attention
    row = jax.lax.broadcasted_iota(jnp.int32, (N, N), 0)
    col = jax.lax.broadcasted_iota(jnp.int32, (N, N), 1)
    smask = jnp.where(col > row, NEG_INF, 0.0) + tbias     # (N, N)
    cmask = ebias                                          # (1, Nk)

    for li in range(NUM_LAYERS):
        base = li * PROWS
        saw = w_ref[base + _SAW:base + _SAW + H, :]
        sab = w_ref[base + _SAB:base + _SAB + 1, :]
        caw = w_ref[base + _CAW:base + _CAW + H, :]
        cab = w_ref[base + _CAB:base + _CAB + 1, :]
        f1w = w_ref[base + _F1W:base + _F1W + H, :]
        f1b = w_ref[base + _F1B:base + _F1B + 1, :]
        f2w = w_ref[base + _F2W:base + _F2W + FFN_DIM, 0:H]
        f2b = w_ref[base + _F2B:base + _F2B + 1, 0:H]
        lng = w_ref[base + _LNG:base + _LNG + 3, 0:H]
        lnb = w_ref[base + _LNB:base + _LNB + 3, 0:H]

        # self-attention (causal + target padding); probabilities never leave VMEM
        sa, _ = _mha(x, x, saw, sab, smask, fused_qkv=True, need_weights=False)
        x = _layernorm(x + sa, lng[0:1, :], lnb[0:1, :])

        # cross-attention (encoder padding); head-averaged weights computed in-kernel
        ca, ca_w = _mha(x, enc, caw, cab, cmask, fused_qkv=False, need_weights=True)
        x = _layernorm(x + ca, lng[1:2, :], lnb[1:2, :])

        # FFN (GELU, 4x)
        hff = jax.nn.gelu(jnp.dot(x, f1w, preferred_element_type=jnp.float32) + f1b)
        ff = jnp.dot(hff, f2w, preferred_element_type=jnp.float32) + f2b
        x = _layernorm(x + ff, lng[2:3, :], lnb[2:3, :])

        # lane-dense (padded) store of cross-attn weights
        if Nk < NK_PAD:
            ca_pad = jnp.concatenate(
                [ca_w, jnp.zeros((N, NK_PAD - Nk), jnp.float32)], axis=-1)
        else:
            ca_pad = ca_w
        caw_ref[0, li, :, :] = ca_pad

    # final LN + tied output head (W_tied = proj_w @ embed.T, padded to 128 lanes)
    x = _layernorm(x, nog, nob)
    logits_ref[0, :, :] = jnp.dot(x, wtied, preferred_element_type=jnp.float32)


# ---------------- params / one-time packing ----------------
def sinusoidal_pos_emb(seq_len, dim, dtype=jnp.float32):
    # TODO(synk): [sin|cos] variant assumed; verify against the repo's SinusoidalPosEmb.
    half = dim // 2
    pos = jnp.arange(seq_len, dtype=jnp.float32)
    freqs = jnp.exp(-math.log(10000.0) * jnp.arange(half, dtype=jnp.float32) / (half - 1))
    args = pos[:, None] * freqs[None, :]
    return jnp.concatenate([jnp.sin(args), jnp.cos(args)], axis=-1).astype(dtype)


def init_params(key):
    def dense(k, out_f, in_f):
        return 0.02 * jax.random.normal(k, (out_f, in_f), jnp.float32)

    keys = iter(jax.random.split(key, 64))
    p = {
        "embed": 0.02 * jax.random.normal(next(keys), (VOCAB, BERT_HIDDEN), jnp.float32),
        "proj_w": dense(next(keys), HIDDEN, BERT_HIDDEN),
        "proj_b": jnp.zeros((HIDDEN,), jnp.float32),
        "norm_out_g": jnp.ones((HIDDEN,), jnp.float32),
        "norm_out_b": jnp.zeros((HIDDEN,), jnp.float32),
        "blocks": [],
    }
    for _ in range(NUM_LAYERS):
        blk = {}
        for pre in ("sa", "ca"):
            for nm in ("q", "k", "v", "o"):
                blk[f"{pre}_w{nm}"] = dense(next(keys), HIDDEN, HIDDEN)
                blk[f"{pre}_b{nm}"] = jnp.zeros((HIDDEN,), jnp.float32)
        blk["ffn_w1"] = dense(next(keys), FFN_DIM, HIDDEN)
        blk["ffn_b1"] = jnp.zeros((FFN_DIM,), jnp.float32)
        blk["ffn_w2"] = dense(next(keys), HIDDEN, FFN_DIM)
        blk["ffn_b2"] = jnp.zeros((HIDDEN,), jnp.float32)
        for i in (1, 2, 3):
            blk[f"ln{i}_g"] = jnp.ones((HIDDEN,), jnp.float32)
            blk[f"ln{i}_b"] = jnp.zeros((HIDDEN,), jnp.float32)
        p["blocks"].append(blk)
    return p


def _pad_lanes(a, width=128):
    return jnp.pad(a, ((0, 0), (0, width - a.shape[1])))


def prepare_params(params, seq_len):
    """One-time prep: pack every weight/constant into a single lane-dense (rows,128) slab.

    Runs once (outside the per-call path). Folds 1/sqrt(head_dim) into Wq/bq, pre-transposes
    all weights, precomputes W_tied = proj_w @ embed.T and the positional table for seq_len.
    """
    scale = 1.0 / math.sqrt(HEAD_DIM)

    def attn_pack(blk, pre):
        w = jnp.concatenate([blk[f"{pre}_wq"].T * scale, blk[f"{pre}_wk"].T,
                             blk[f"{pre}_wv"].T, blk[f"{pre}_wo"].T], axis=1)   # (H, 4H)
        b = jnp.concatenate([blk[f"{pre}_bq"] * scale, blk[f"{pre}_bk"],
                             blk[f"{pre}_bv"], blk[f"{pre}_bo"]]).reshape(1, 4 * HIDDEN)
        return w, b

    rows = []
    for blk in params["blocks"]:
        saw, sab = attn_pack(blk, "sa")
        caw, cab = attn_pack(blk, "ca")
        f1w = blk["ffn_w1"].T                            # (H, FFN_DIM)
        f1b = blk["ffn_b1"].reshape(1, FFN_DIM)
        f2w = blk["ffn_w2"].T                            # (FFN_DIM, H)
        f2b = blk["ffn_b2"].reshape(1, HIDDEN)
        lng = jnp.stack([blk["ln1_g"], blk["ln2_g"], blk["ln3_g"]])
        lnb = jnp.stack([blk["ln1_b"], blk["ln2_b"], blk["ln3_b"]])
        rows += [saw, sab, caw, cab, f1w, f1b,
                 _pad_lanes(f2w), _pad_lanes(f2b), _pad_lanes(lng), _pad_lanes(lnb)]

    wtied = params["proj_w"] @ params["embed"].T         # (HIDDEN, VOCAB)
    rows.append(_pad_lanes(wtied))                       # lanes VOCAB..127 are zero

    glob = jnp.concatenate([
        params["proj_w"].T,                              # (BERT_HIDDEN, HIDDEN)
        params["proj_b"].reshape(1, HIDDEN),
        params["norm_out_g"].reshape(1, HIDDEN),
        params["norm_out_b"].reshape(1, HIDDEN),
        sinusoidal_pos_emb(seq_len, HIDDEN),             # (seq_len, HIDDEN)
    ], axis=0)
    rows.append(_pad_lanes(glob))

    w_slab = jnp.concatenate(rows, axis=0)
    assert w_slab.shape == (POS_OFF + seq_len, 128)
    return {"embed": params["embed"], "w_slab": w_slab}


# ---------------- forward ----------------
def decoder_forward(prepped, target_seq, encoder_output,
                    target_padding_mask=None, encoder_padding_mask=None):
    B, N = target_seq.shape
    Nk = encoder_output.shape[1]
    w_slab = prepped["w_slab"]
    wrows = w_slab.shape[0]
    assert wrows == POS_OFF + N, "w_slab was prepared for a different seq_len"

    # embedding lookup (frozen BERT word embeddings) -- XLA gather; all else is in the kernel
    emb = jnp.take(prepped["embed"], target_seq, axis=0)          # (B, N, BERT_HIDDEN)
    enc = encoder_output.astype(jnp.float32)

    # additive padding biases, (B, 1, N[k]); True == padded
    if target_padding_mask is None:
        tbias = jnp.zeros((B, 1, N), jnp.float32)
    else:
        tbias = jnp.where(target_padding_mask, NEG_INF, 0.0).astype(jnp.float32).reshape(B, 1, N)
    if encoder_padding_mask is None:
        ebias = jnp.zeros((B, 1, Nk), jnp.float32)
    else:
        ebias = jnp.where(encoder_padding_mask, NEG_INF, 0.0).astype(jnp.float32).reshape(B, 1, Nk)

    out_shape = (
        jax.ShapeDtypeStruct((B, N, VOCAB_PAD), jnp.float32),
        jax.ShapeDtypeStruct((B, NUM_LAYERS, N, NK_PAD), jnp.float32),
    )

    logits_pad, caw_pad = pl.pallas_call(
        _fused_decoder_kernel,
        grid=(B,),                                   # batch-parallel: feeds both v7x TCs
        in_specs=[
            pl.BlockSpec((1, N, BERT_HIDDEN), lambda b: (b, 0, 0)),
            pl.BlockSpec((1, Nk, HIDDEN), lambda b: (b, 0, 0)),
            pl.BlockSpec((1, 1, N), lambda b: (b, 0, 0)),
            pl.BlockSpec((1, 1, Nk), lambda b: (b, 0, 0)),
            pl.BlockSpec((wrows, 128), lambda b: (0, 0)),   # weight slab resident across steps
        ],
        out_specs=(
            pl.BlockSpec((1, N, VOCAB_PAD), lambda b: (b, 0, 0)),
            pl.BlockSpec((1, NUM_LAYERS, N, NK_PAD), lambda b: (b, 0, 0, 0)),
        ),
        out_shape=out_shape,
        compiler_params=pltpu.CompilerParams(
            dimension_semantics=("parallel",),
            vmem_limit_bytes=32 * 1024 * 1024,
        ),
    )(emb, enc, tbias, ebias, w_slab)

    logits = logits_pad[:, :, :VOCAB]
    cross_attn_weights_layers = [caw_pad[:, li, :, :Nk] for li in range(NUM_LAYERS)]
    return logits, cross_attn_weights_layers


# ---------------- demo ----------------
if __name__ == "__main__":
    key = jax.random.PRNGKey(0)
    k_p, k_seq, k_enc = jax.random.split(key, 3)

    B, N = 2, 8
    params = init_params(k_p)
    prepped = prepare_params(params, seq_len=N)     # one-time prep, out of the hot path

    target_seq = jax.random.randint(k_seq, (B, N), 0, VOCAB, dtype=jnp.int32)
    encoder_output = jax.random.normal(k_enc, (B, N, HIDDEN), jnp.float32)

    # True == padded (last two positions of batch 1 padded)
    target_padding_mask = jnp.zeros((B, N), dtype=bool).at[1, -2:].set(True)
    encoder_padding_mask = jnp.zeros((B, N), dtype=bool).at[1, -2:].set(True)

    fwd = jax.jit(decoder_forward)
    logits, cross_w = fwd(prepped, target_seq, encoder_output,
                          target_padding_mask, encoder_padding_mask)
    jax.block_until_ready(logits)
    jax.block_until_ready(cross_w)

    assert logits.shape == (B, N, VOCAB)
    assert len(cross_w) == NUM_LAYERS and cross_w[0].shape == (B, N, N)
    assert bool(jnp.all(jnp.isfinite(logits)))
    assert bool(jnp.all(jnp.isfinite(cross_w[0])))
    # returned cross-attn weights are exactly normalized
    assert bool(jnp.allclose(jnp.sum(cross_w[0], axis=-1), 1.0, atol=1e-5))
    print("KERNEL_OK")
</pallas_src>

<mosaic_0001>
module attributes {stable_mosaic.version = 11 : i64} {
  func.func @_fused_decoder_kernel(%arg0: i32, %arg1: memref<1x8x64xf32, #tpu.memory_space<vmem>>, %arg2: memref<1x8x32xf32, #tpu.memory_space<vmem>>, %arg3: memref<1x1x8xf32, #tpu.memory_space<vmem>>, %arg4: memref<1x1x8xf32, #tpu.memory_space<vmem>>, %arg5: memref<575x128xf32, #tpu.memory_space<vmem>>, %arg6: memref<1x8x128xf32, #tpu.memory_space<vmem>>, %arg7: memref<1x2x8x128xf32, #tpu.memory_space<vmem>>) attributes {dimension_semantics = [#tpu.dimension_semantics<parallel>], iteration_bounds = array<i64: 2>, scalar_prefetch = 0 : i64, scratch_operands = 0 : i64, tpu.core_type = #tpu.core_type<tc>, window_params = [{transform_indices = @transform_0, window_bounds = array<i64: 1, 8, 64>}, {transform_indices = @transform_1, window_bounds = array<i64: 1, 8, 32>}, {transform_indices = @transform_2, window_bounds = array<i64: 1, 1, 8>}, {transform_indices = @transform_3, window_bounds = array<i64: 1, 1, 8>}, {pipeline_mode = #tpu.pipeline_mode<synchronous>, transform_indices = @transform_4, window_bounds = array<i64: 575, 128>}, {transform_indices = @transform_5, window_bounds = array<i64: 1, 8, 128>}, {transform_indices = @transform_6, window_bounds = array<i64: 1, 2, 8, 128>}]} {
    %c0 = arith.constant 0 : index
    %c0_0 = arith.constant 0 : index
    %c0_1 = arith.constant 0 : index
    %0 = vector.load %arg1[%c0, %c0_0, %c0_1] : memref<1x8x64xf32, #tpu.memory_space<vmem>>, vector<1x8x64xf32>
    %1 = vector.shape_cast %0 : vector<1x8x64xf32> to vector<8x64xf32>
    %c0_2 = arith.constant 0 : index
    %c0_3 = arith.constant 0 : index
    %c0_4 = arith.constant 0 : index
    %2 = vector.load %arg2[%c0_2, %c0_3, %c0_4] : memref<1x8x32xf32, #tpu.memory_space<vmem>>, vector<1x8x32xf32>
    %3 = vector.shape_cast %2 : vector<1x8x32xf32> to vector<8x32xf32>
    %c0_5 = arith.constant 0 : index
    %c0_6 = arith.constant 0 : index
    %c0_7 = arith.constant 0 : index
    %4 = vector.load %arg3[%c0_5, %c0_6, %c0_7] : memref<1x1x8xf32, #tpu.memory_space<vmem>>, vector<1x1x8xf32>
    %5 = vector.shape_cast %4 : vector<1x1x8xf32> to vector<1x8xf32>
    %c0_8 = arith.constant 0 : index
    %c0_9 = arith.constant 0 : index
    %c0_10 = arith.constant 0 : index
    %6 = vector.load %arg4[%c0_8, %c0_9, %c0_10] : memref<1x1x8xf32, #tpu.memory_space<vmem>>, vector<1x1x8xf32>
    %7 = vector.shape_cast %6 : vector<1x1x8xf32> to vector<1x8xf32>
    %c500 = arith.constant 500 : index
    %c0_11 = arith.constant 0 : index
    %8 = vector.load %arg5[%c500, %c0_11] : memref<575x128xf32, #tpu.memory_space<vmem>>, vector<64x32xf32>
    %c564 = arith.constant 564 : index
    %c0_12 = arith.constant 0 : index
    %9 = vector.load %arg5[%c564, %c0_12] : memref<575x128xf32, #tpu.memory_space<vmem>>, vector<1x32xf32>
    %c565 = arith.constant 565 : index
    %c0_13 = arith.constant 0 : index
    %10 = vector.load %arg5[%c565, %c0_13] : memref<575x128xf32, #tpu.memory_space<vmem>>, vector<1x32xf32>
    %c566 = arith.constant 566 : index
    %c0_14 = arith.constant 0 : index
    %11 = vector.load %arg5[%c566, %c0_14] : memref<575x128xf32, #tpu.memory_space<vmem>>, vector<1x32xf32>
    %c567 = arith.constant 567 : index
    %c0_15 = arith.constant 0 : index
    %12 = vector.load %arg5[%c567, %c0_15] : memref<575x128xf32, #tpu.memory_space<vmem>>, vector<8x32xf32>
    %c468 = arith.constant 468 : index
    %c0_16 = arith.constant 0 : index
    %13 = vector.load %arg5[%c468, %c0_16] : memref<575x128xf32, #tpu.memory_space<vmem>>, vector<32x128xf32>
    %cst = arith.constant dense<0.000000e+00> : vector<8x32xf32>
    %14 = tpu.matmul %1, %8, %cst {dimension_numbers = #tpu.dot_dimension_numbers<[1], [0], [0], [1], [0, 0, 1, 1], [], []>} : vector<8x64xf32>, vector<64x32xf32>, vector<8x32xf32> -> vector<8x32xf32>
    %15 = vector.broadcast %9 : vector<1x32xf32> to vector<8x32xf32>
    %16 = arith.addf %14, %15 : vector<8x32xf32>
    %17 = arith.addf %16, %12 : vector<8x32xf32>
    %18 = tpu.iota {dimensions = array<i32: 0>} : vector<8x8xi32>
    %19 = tpu.iota {dimensions = array<i32: 1>} : vector<8x8xi32>
    %20 = arith.cmpi sgt, %19, %18 : vector<8x8xi32>
    %cst_17 = arith.constant -1.000000e+09 : f32
    %cst_18 = arith.constant 0.000000e+00 : f32
    %21 = vector.broadcast %cst_17 : f32 to vector<8x8xf32>
    %22 = vector.broadcast %cst_18 : f32 to vector<8x8xf32>
    %23 = arith.select %20, %21, %22 : vector<8x8xi1>, vector<8x8xf32>
    %24 = vector.broadcast %5 : vector<1x8xf32> to vector<8x8xf32>
    %25 = arith.addf %23, %24 : vector<8x8xf32>
    %c0_19 = arith.constant 0 : index
    %c0_20 = arith.constant 0 : index
    %26 = vector.load %arg5[%c0_19, %c0_20] : memref<575x128xf32, #tpu.memory_space<vmem>>, vector<32x128xf32>
    %c32 = arith.constant 32 : index
    %c0_21 = arith.constant 0 : index
    %27 = vector.load %arg5[%c32, %c0_21] : memref<575x128xf32, #tpu.memory_space<vmem>>, vector<1x128xf32>
    %c33 = arith.constant 33 : index
    %c0_22 = arith.constant 0 : index
    %28 = vector.load %arg5[%c33, %c0_22] : memref<575x128xf32, #tpu.memory_space<vmem>>, vector<32x128xf32>
    %c65 = arith.constant 65 : index
    %c0_23 = arith.constant 0 : index
    %29 = vector.load %arg5[%c65, %c0_23] : memref<575x128xf32, #tpu.memory_space<vmem>>, vector<1x128xf32>
    %c66 = arith.constant 66 : index
    %c0_24 = arith.constant 0 : index
    %30 = vector.load %arg5[%c66, %c0_24] : memref<575x128xf32, #tpu.memory_space<vmem>>, vector<32x128xf32>
    %c98 = arith.constant 98 : index
    %c0_25 = arith.constant 0 : index
    %31 = vector.load %arg5[%c98, %c0_25] : memref<575x128xf32, #tpu.memory_space<vmem>>, vector<1x128xf32>
    %c99 = arith.constant 99 : index
    %c0_26 = arith.constant 0 : index
    %32 = vector.load %arg5[%c99, %c0_26] : memref<575x128xf32, #tpu.memory_space<vmem>>, vector<128x32xf32>
    %c227 = arith.constant 227 : index
    %c0_27 = arith.constant 0 : index
    %33 = vector.load %arg5[%c227, %c0_27] : memref<575x128xf32, #tpu.memory_space<vmem>>, vector<1x32xf32>
    %c228 = arith.constant 228 : index
    %c0_28 = arith.constant 0 : index
    %34 = vector.load %arg5[%c228, %c0_28] : memref<575x128xf32, #tpu.memory_space<vmem>>, vector<3x32xf32>
    %c231 = arith.constant 231 : index
    %c0_29 = arith.constant 0 : index
    %35 = vector.load %arg5[%c231, %c0_29] : memref<575x128xf32, #tpu.memory_space<vmem>>, vector<3x32xf32>
    %36 = vector.extract_strided_slice %26 {offsets = [0, 0], sizes = [32, 96], strides = [1, 1]} : vector<32x128xf32> to vector<32x96xf32>
    %cst_30 = arith.constant dense<0.000000e+00> : vector<8x96xf32>
    %37 = tpu.matmul %17, %36, %cst_30 {dimension_numbers = #tpu.dot_dimension_numbers<[1], [0], [0], [1], [0, 0, 1, 1], [], []>} : vector<8x32xf32>, vector<32x96xf32>, vector<8x96xf32> -> vector<8x96xf32>
    %38 = vector.extract_strided_slice %27 {offsets = [0, 0], sizes = [1, 96], strides = [1, 1]} : vector<1x128xf32> to vector<1x96xf32>
    %39 = vector.broadcast %38 : vector<1x96xf32> to vector<8x96xf32>
    %40 = arith.addf %37, %39 : vector<8x96xf32>
    %41 = vector.extract_strided_slice %40 {offsets = [0, 0], sizes = [8, 32], strides = [1, 1]} : vector<8x96xf32> to vector<8x32xf32>
    %42 = vector.extract_strided_slice %40 {offsets = [0, 32], sizes = [8, 32], strides = [1, 1]} : vector<8x96xf32> to vector<8x32xf32>
    %43 = vector.extract_strided_slice %40 {offsets = [0, 64], sizes = [8, 32], strides = [1, 1]} : vector<8x96xf32> to vector<8x32xf32>
    %44 = vector.extract_strided_slice %41 {offsets = [0, 0], sizes = [8, 8], strides = [1, 1]} : vector<8x32xf32> to vector<8x8xf32>
    %45 = vector.extract_strided_slice %41 {offsets = [0, 8], sizes = [8, 8], strides = [1, 1]} : vector<8x32xf32> to vector<8x8xf32>
    %46 = vector.extract_strided_slice %41 {offsets = [0, 16], sizes = [8, 8], strides = [1, 1]} : vector<8x32xf32> to vector<8x8xf32>
    %47 = vector.extract_strided_slice %41 {offsets = [0, 24], sizes = [8, 8], strides = [1, 1]} : vector<8x32xf32> to vector<8x8xf32>
    %48 = vector.shape_cast %44 : vector<8x8xf32> to vector<1x8x8xf32>
    %49 = vector.shape_cast %45 : vector<8x8xf32> to vector<1x8x8xf32>
    %50 = vector.shape_cast %46 : vector<8x8xf32> to vector<1x8x8xf32>
    %51 = vector.shape_cast %47 : vector<8x8xf32> to vector<1x8x8xf32>
    %52 = tpu.concatenate %48, %49, %50, %51 in 0 : vector<1x8x8xf32>, vector<1x8x8xf32>, vector<1x8x8xf32>, vector<1x8x8xf32> -> vector<4x8x8xf32>
    %53 = vector.extract_strided_slice %42 {offsets = [0, 0], sizes = [8, 8], strides = [1, 1]} : vector<8x32xf32> to vector<8x8xf32>
    %54 = vector.extract_strided_slice %42 {offsets = [0, 8], sizes = [8, 8], strides = [1, 1]} : vector<8x32xf32> to vector<8x8xf32>
    %55 = vector.extract_strided_slice %42 {offsets = [0, 16], sizes = [8, 8], strides = [1, 1]} : vector<8x32xf32> to vector<8x8xf32>
    %56 = vector.extract_strided_slice %42 {offsets = [0, 24], sizes = [8, 8], strides = [1, 1]} : vector<8x32xf32> to vector<8x8xf32>
    %57 = vector.shape_cast %53 : vector<8x8xf32> to vector<1x8x8xf32>
    %58 = vector.shape_cast %54 : vector<8x8xf32> to vector<1x8x8xf32>
    %59 = vector.shape_cast %55 : vector<8x8xf32> to vector<1x8x8xf32>
    %60 = vector.shape_cast %56 : vector<8x8xf32> to vector<1x8x8xf32>
    %61 = tpu.concatenate %57, %58, %59, %60 in 0 : vector<1x8x8xf32>, vector<1x8x8xf32>, vector<1x8x8xf32>, vector<1x8x8xf32> -> vector<4x8x8xf32>
    %62 = vector.extract_strided_slice %43 {offsets = [0, 0], sizes = [8, 8], strides = [1, 1]} : vector<8x32xf32> to vector<8x8xf32>
    %63 = vector.extract_strided_slice %43 {offsets = [0, 8], sizes = [8, 8], strides = [1, 1]} : vector<8x32xf32> to vector<8x8xf32>
    %64 = vector.extract_strided_slice %43 {offsets = [0, 16], sizes = [8, 8], strides = [1, 1]} : vector<8x32xf32> to vector<8x8xf32>
    %65 = vector.extract_strided_slice %43 {offsets = [0, 24], sizes = [8, 8], strides = [1, 1]} : vector<8x32xf32> to vector<8x8xf32>
    %66 = vector.shape_cast %62 : vector<8x8xf32> to vector<1x8x8xf32>
    %67 = vector.shape_cast %63 : vector<8x8xf32> to vector<1x8x8xf32>
    %68 = vector.shape_cast %64 : vector<8x8xf32> to vector<1x8x8xf32>
    %69 = vector.shape_cast %65 : vector<8x8xf32> to vector<1x8x8xf32>
    %70 = tpu.concatenate %66, %67, %68, %69 in 0 : vector<1x8x8xf32>, vector<1x8x8xf32>, vector<1x8x8xf32>, vector<1x8x8xf32> -> vector<4x8x8xf32>
    "tpu.trace_start"() <{level = 10 : i32, message = "hqd,hkd->hqk"}> : () -> ()
    %cst_31 = arith.constant dense<0.000000e+00> : vector<4x8x8xf32>
    %71 = tpu.matmul %52, %61, %cst_31 {dimension_numbers = #tpu.dot_dimension_numbers<[2], [2], [1], [1], [0, 0, 0, 1, 1, 1], [0], [0]>} : vector<4x8x8xf32>, vector<4x8x8xf32>, vector<4x8x8xf32> -> vector<4x8x8xf32>
    "tpu.trace_stop"() : () -> ()
    %72 = vector.shape_cast %25 : vector<8x8xf32> to vector<1x8x8xf32>
    %73 = vector.broadcast %72 : vector<1x8x8xf32> to vector<4x8x8xf32>
    %74 = arith.addf %71, %73 : vector<4x8x8xf32>
    %cst_32 = arith.constant dense<0xFF800000> : vector<4x8xf32>
    %75 = vector.multi_reduction <maximumf>, %74, %cst_32 [2] : vector<4x8x8xf32> to vector<4x8xf32>
    %76 = vector.shape_cast %75 : vector<4x8xf32> to vector<4x8x1xf32>
    %77 = vector.broadcast %76 : vector<4x8x1xf32> to vector<4x8x8xf32>
    %78 = arith.subf %74, %77 : vector<4x8x8xf32>
    %79 = math.exp %78 : vector<4x8x8xf32>
    %cst_33 = arith.constant dense<0.000000e+00> : vector<4x8xf32>
    %80 = vector.multi_reduction <add>, %79, %cst_33 [2] : vector<4x8x8xf32> to vector<4x8xf32>
    %81 = vector.shape_cast %80 : vector<4x8xf32> to vector<4x8x1xf32>
    %82 = tpu.reciprocal %81 {approx = true} : vector<4x8x1xf32> -> vector<4x8x1xf32>
    %83 = vector.broadcast %82 : vector<4x8x1xf32> to vector<4x8x8xf32>
    %84 = arith.mulf %79, %83 : vector<4x8x8xf32>
    "tpu.trace_start"() <{level = 10 : i32, message = "hqk,hkd->hqd"}> : () -> ()
    %cst_34 = arith.constant dense<0.000000e+00> : vector<4x8x8xf32>
    %85 = tpu.matmul %84, %70, %cst_34 {dimension_numbers = #tpu.dot_dimension_numbers<[2], [1], [1], [2], [0, 0, 0, 1, 1, 2], [0], [0]>} : vector<4x8x8xf32>, vector<4x8x8xf32>, vector<4x8x8xf32> -> vector<4x8x8xf32>
    "tpu.trace_stop"() : () -> ()
    %86 = vector.extract_strided_slice %85 {offsets = [0, 0, 0], sizes = [1, 8, 8], strides = [1, 1, 1]} : vector<4x8x8xf32> to vector<1x8x8xf32>
    %87 = vector.shape_cast %86 : vector<1x8x8xf32> to vector<8x8xf32>
    %88 = vector.extract_strided_slice %85 {offsets = [1, 0, 0], sizes = [1, 8, 8], strides = [1, 1, 1]} : vector<4x8x8xf32> to vector<1x8x8xf32>
    %89 = vector.shape_cast %88 : vector<1x8x8xf32> to vector<8x8xf32>
    %90 = vector.extract_strided_slice %85 {offsets = [2, 0, 0], sizes = [1, 8, 8], strides = [1, 1, 1]} : vector<4x8x8xf32> to vector<1x8x8xf32>
    %91 = vector.shape_cast %90 : vector<1x8x8xf32> to vector<8x8xf32>
    %92 = vector.extract_strided_slice %85 {offsets = [3, 0, 0], sizes = [1, 8, 8], strides = [1, 1, 1]} : vector<4x8x8xf32> to vector<1x8x8xf32>
    %93 = vector.shape_cast %92 : vector<1x8x8xf32> to vector<8x8xf32>
    %94 = tpu.concatenate %87, %89, %91, %93 in 1 : vector<8x8xf32>, vector<8x8xf32>, vector<8x8xf32>, vector<8x8xf32> -> vector<8x32xf32>
    %95 = vector.extract_strided_slice %26 {offsets = [0, 96], sizes = [32, 32], strides = [1, 1]} : vector<32x128xf32> to vector<32x32xf32>
    %cst_35 = arith.constant dense<0.000000e+00> : vector<8x32xf32>
    %96 = tpu.matmul %94, %95, %cst_35 {dimension_numbers = #tpu.dot_dimension_numbers<[1], [0], [0], [1], [0, 0, 1, 1], [], []>} : vector<8x32xf32>, vector<32x32xf32>, vector<8x32xf32> -> vector<8x32xf32>
    %97 = vector.extract_strided_slice %27 {offsets = [0, 96], sizes = [1, 32], strides = [1, 1]} : vector<1x128xf32> to vector<1x32xf32>
    %98 = vector.broadcast %97 : vector<1x32xf32> to vector<8x32xf32>
    %99 = arith.addf %96, %98 : vector<8x32xf32>
    %100 = arith.addf %17, %99 : vector<8x32xf32>
    %101 = vector.extract_strided_slice %34 {offsets = [0, 0], sizes = [1, 32], strides = [1, 1]} : vector<3x32xf32> to vector<1x32xf32>
    %102 = vector.extract_strided_slice %35 {offsets = [0, 0], sizes = [1, 32], strides = [1, 1]} : vector<3x32xf32> to vector<1x32xf32>
    %cst_36 = arith.constant dense<0.000000e+00> : vector<8xf32>
    %103 = vector.multi_reduction <add>, %100, %cst_36 [1] : vector<8x32xf32> to vector<8xf32>
    %104 = vector.shape_cast %103 : vector<8xf32> to vector<8x1xf32>
    %cst_37 = arith.constant 3.200000e+01 : f32
    %105 = vector.broadcast %cst_37 : f32 to vector<8x1xf32>
    %106 = arith.divf %104, %105 : vector<8x1xf32>
    %107 = vector.broadcast %106 : vector<8x1xf32> to vector<8x32xf32>
    %108 = arith.subf %100, %107 : vector<8x32xf32>
    %109 = arith.mulf %108, %108 : vector<8x32xf32>
    %cst_38 = arith.constant dense<0.000000e+00> : vector<8xf32>
    %110 = vector.multi_reduction <add>, %109, %cst_38 [1] : vector<8x32xf32> to vector<8xf32>
    %111 = vector.shape_cast %110 : vector<8xf32> to vector<8x1xf32>
    %cst_39 = arith.constant 3.200000e+01 : f32
    %112 = vector.broadcast %cst_39 : f32 to vector<8x1xf32>
    %113 = arith.divf %111, %112 : vector<8x1xf32>
    %cst_40 = arith.constant 9.99999974E-6 : f32
    %114 = vector.broadcast %cst_40 : f32 to vector<8x1xf32>
    %115 = arith.addf %113, %114 : vector<8x1xf32>
    %116 = math.rsqrt %115 : vector<8x1xf32>
    %117 = vector.broadcast %116 : vector<8x1xf32> to vector<8x32xf32>
    %118 = arith.mulf %108, %117 : vector<8x32xf32>
    %119 = vector.broadcast %101 : vector<1x32xf32> to vector<8x32xf32>
    %120 = arith.mulf %118, %119 : vector<8x32xf32>
    %121 = vector.broadcast %102 : vector<1x32xf32> to vector<8x32xf32>
    %122 = arith.addf %120, %121 : vector<8x32xf32>
    %123 = vector.extract_strided_slice %28 {offsets = [0, 0], sizes = [32, 32], strides = [1, 1]} : vector<32x128xf32> to vector<32x32xf32>
    %cst_41 = arith.constant dense<0.000000e+00> : vector<8x32xf32>
    %124 = tpu.matmul %122, %123, %cst_41 {dimension_numbers = #tpu.dot_dimension_numbers<[1], [0], [0], [1], [0, 0, 1, 1], [], []>} : vector<8x32xf32>, vector<32x32xf32>, vector<8x32xf32> -> vector<8x32xf32>
    %125 = vector.extract_strided_slice %29 {offsets = [0, 0], sizes = [1, 32], strides = [1, 1]} : vector<1x128xf32> to vector<1x32xf32>
    %126 = vector.broadcast %125 : vector<1x32xf32> to vector<8x32xf32>
    %127 = arith.addf %124, %126 : vector<8x32xf32>
    %128 = vector.extract_strided_slice %28 {offsets = [0, 32], sizes = [32, 64], strides = [1, 1]} : vector<32x128xf32> to vector<32x64xf32>
    %cst_42 = arith.constant dense<0.000000e+00> : vector<8x64xf32>
    %129 = tpu.matmul %3, %128, %cst_42 {dimension_numbers = #tpu.dot_dimension_numbers<[1], [0], [0], [1], [0, 0, 1, 1], [], []>} : vector<8x32xf32>, vector<32x64xf32>, vector<8x64xf32> -> vector<8x64xf32>
    %130 = vector.extract_strided_slice %29 {offsets = [0, 32], sizes = [1, 64], strides = [1, 1]} : vector<1x128xf32> to vector<1x64xf32>
    %131 = vector.broadcast %130 : vector<1x64xf32> to vector<8x64xf32>
    %132 = arith.addf %129, %131 : vector<8x64xf32>
    %133 = vector.extract_strided_slice %132 {offsets = [0, 0], sizes = [8, 32], strides = [1, 1]} : vector<8x64xf32> to vector<8x32xf32>
    %134 = vector.extract_strided_slice %132 {offsets = [0, 32], sizes = [8, 32], strides = [1, 1]} : vector<8x64xf32> to vector<8x32xf32>
    %135 = vector.extract_strided_slice %127 {offsets = [0, 0], sizes = [8, 8], strides = [1, 1]} : vector<8x32xf32> to vector<8x8xf32>
    %136 = vector.extract_strided_slice %127 {offsets = [0, 8], sizes = [8, 8], strides = [1, 1]} : vector<8x32xf32> to vector<8x8xf32>
    %137 = vector.extract_strided_slice %127 {offsets = [0, 16], sizes = [8, 8], strides = [1, 1]} : vector<8x32xf32> to vector<8x8xf32>
    %138 = vector.extract_strided_slice %127 {offsets = [0, 24], sizes = [8, 8], strides = [1, 1]} : vector<8x32xf32> to vector<8x8xf32>
    %139 = vector.shape_cast %135 : vector<8x8xf32> to vector<1x8x8xf32>
    %140 = vector.shape_cast %136 : vector<8x8xf32> to vector<1x8x8xf32>
    %141 = vector.shape_cast %137 : vector<8x8xf32> to vector<1x8x8xf32>
    %142 = vector.shape_cast %138 : vector<8x8xf32> to vector<1x8x8xf32>
    %143 = tpu.concatenate %139, %140, %141, %142 in 0 : vector<1x8x8xf32>, vector<1x8x8xf32>, vector<1x8x8xf32>, vector<1x8x8xf32> -> vector<4x8x8xf32>
    %144 = vector.extract_strided_slice %133 {offsets = [0, 0], sizes = [8, 8], strides = [1, 1]} : vector<8x32xf32> to vector<8x8xf32>
    %145 = vector.extract_strided_slice %133 {offsets = [0, 8], sizes = [8, 8], strides = [1, 1]} : vector<8x32xf32> to vector<8x8xf32>
    %146 = vector.extract_strided_slice %133 {offsets = [0, 16], sizes = [8, 8], strides = [1, 1]} : vector<8x32xf32> to vector<8x8xf32>
    %147 = vector.extract_strided_slice %133 {offsets = [0, 24], sizes = [8, 8], strides = [1, 1]} : vector<8x32xf32> to vector<8x8xf32>
    %148 = vector.shape_cast %144 : vector<8x8xf32> to vector<1x8x8xf32>
    %149 = vector.shape_cast %145 : vector<8x8xf32> to vector<1x8x8xf32>
    %150 = vector.shape_cast %146 : vector<8x8xf32> to vector<1x8x8xf32>
    %151 = vector.shape_cast %147 : vector<8x8xf32> to vector<1x8x8xf32>
    %152 = tpu.concatenate %148, %149, %150, %151 in 0 : vector<1x8x8xf32>, vector<1x8x8xf32>, vector<1x8x8xf32>, vector<1x8x8xf32> -> vector<4x8x8xf32>
    %153 = vector.extract_strided_slice %134 {offsets = [0, 0], sizes = [8, 8], strides = [1, 1]} : vector<8x32xf32> to vector<8x8xf32>
    %154 = vector.extract_strided_slice %134 {offsets = [0, 8], sizes = [8, 8], strides = [1, 1]} : vector<8x32xf32> to vector<8x8xf32>
    %155 = vector.extract_strided_slice %134 {offsets = [0, 16], sizes = [8, 8], strides = [1, 1]} : vector<8x32xf32> to vector<8x8xf32>
    %156 = vector.extract_strided_slice %134 {offsets = [0, 24], sizes = [8, 8], strides = [1, 1]} : vector<8x32xf32> to vector<8x8xf32>
    %157 = vector.shape_cast %153 : vector<8x8xf32> to vector<1x8x8xf32>
    %158 = vector.shape_cast %154 : vector<8x8xf32> to vector<1x8x8xf32>
    %159 = vector.shape_cast %155 : vector<8x8xf32> to vector<1x8x8xf32>
    %160 = vector.shape_cast %156 : vector<8x8xf32> to vector<1x8x8xf32>
    %161 = tpu.concatenate %157, %158, %159, %160 in 0 : vector<1x8x8xf32>, vector<1x8x8xf32>, vector<1x8x8xf32>, vector<1x8x8xf32> -> vector<4x8x8xf32>
    "tpu.trace_start"() <{level = 10 : i32, message = "hqd,hkd->hqk"}> : () -> ()
    %cst_43 = arith.constant dense<0.000000e+00> : vector<4x8x8xf32>
    %162 = tpu.matmul %143, %152, %cst_43 {dimension_numbers = #tpu.dot_dimension_numbers<[2], [2], [1], [1], [0, 0, 0, 1, 1, 1], [0], [0]>} : vector<4x8x8xf32>, vector<4x8x8xf32>, vector<4x8x8xf32> -> vector<4x8x8xf32>
    "tpu.trace_stop"() : () -> ()
    %163 = vector.shape_cast %7 : vector<1x8xf32> to vector<1x1x8xf32>
    %164 = vector.broadcast %163 : vector<1x1x8xf32> to vector<4x8x8xf32>
    %165 = arith.addf %162, %164 : vector<4x8x8xf32>
    %cst_44 = arith.constant dense<0xFF800000> : vector<4x8xf32>
    %166 = vector.multi_reduction <maximumf>, %165, %cst_44 [2] : vector<4x8x8xf32> to vector<4x8xf32>
    %167 = vector.shape_cast %166 : vector<4x8xf32> to vector<4x8x1xf32>
    %168 = vector.broadcast %167 : vector<4x8x1xf32> to vector<4x8x8xf32>
    %169 = arith.subf %165, %168 : vector<4x8x8xf32>
    %170 = math.exp %169 : vector<4x8x8xf32>
    %cst_45 = arith.constant dense<0.000000e+00> : vector<4x8xf32>
    %171 = vector.multi_reduction <add>, %170, %cst_45 [2] : vector<4x8x8xf32> to vector<4x8xf32>
    %172 = vector.shape_cast %171 : vector<4x8xf32> to vector<4x8x1xf32>
    %173 = vector.broadcast %172 : vector<4x8x1xf32> to vector<4x8x8xf32>
    %174 = arith.divf %170, %173 : vector<4x8x8xf32>
    %cst_46 = arith.constant dense<0.000000e+00> : vector<8x8xf32>
    %175 = vector.multi_reduction <add>, %174, %cst_46 [0] : vector<4x8x8xf32> to vector<8x8xf32>
    %cst_47 = arith.constant 4.000000e+00 : f32
    %176 = vector.broadcast %cst_47 : f32 to vector<8x8xf32>
    %177 = arith.divf %175, %176 : vector<8x8xf32>
    "tpu.trace_start"() <{level = 10 : i32, message = "hqk,hkd->hqd"}> : () -> ()
    %cst_48 = arith.constant dense<0.000000e+00> : vector<4x8x8xf32>
    %178 = tpu.matmul %174, %161, %cst_48 {dimension_numbers = #tpu.dot_dimension_numbers<[2], [1], [1], [2], [0, 0, 0, 1, 1, 2], [0], [0]>} : vector<4x8x8xf32>, vector<4x8x8xf32>, vector<4x8x8xf32> -> vector<4x8x8xf32>
    "tpu.trace_stop"() : () -> ()
    %179 = vector.extract_strided_slice %178 {offsets = [0, 0, 0], sizes = [1, 8, 8], strides = [1, 1, 1]} : vector<4x8x8xf32> to vector<1x8x8xf32>
    %180 = vector.shape_cast %179 : vector<1x8x8xf32> to vector<8x8xf32>
    %181 = vector.extract_strided_slice %178 {offsets = [1, 0, 0], sizes = [1, 8, 8], strides = [1, 1, 1]} : vector<4x8x8xf32> to vector<1x8x8xf32>
    %182 = vector.shape_cast %181 : vector<1x8x8xf32> to vector<8x8xf32>
    %183 = vector.extract_strided_slice %178 {offsets = [2, 0, 0], sizes = [1, 8, 8], strides = [1, 1, 1]} : vector<4x8x8xf32> to vector<1x8x8xf32>
    %184 = vector.shape_cast %183 : vector<1x8x8xf32> to vector<8x8xf32>
    %185 = vector.extract_strided_slice %178 {offsets = [3, 0, 0], sizes = [1, 8, 8], strides = [1, 1, 1]} : vector<4x8x8xf32> to vector<1x8x8xf32>
    %186 = vector.shape_cast %185 : vector<1x8x8xf32> to vector<8x8xf32>
    %187 = tpu.concatenate %180, %182, %184, %186 in 1 : vector<8x8xf32>, vector<8x8xf32>, vector<8x8xf32>, vector<8x8xf32> -> vector<8x32xf32>
    %188 = vector.extract_strided_slice %28 {offsets = [0, 96], sizes = [32, 32], strides = [1, 1]} : vector<32x128xf32> to vector<32x32xf32>
    %cst_49 = arith.constant dense<0.000000e+00> : vector<8x32xf32>
    %189 = tpu.matmul %187, %188, %cst_49 {dimension_numbers = #tpu.dot_dimension_numbers<[1], [0], [0], [1], [0, 0, 1, 1], [], []>} : vector<8x32xf32>, vector<32x32xf32>, vector<8x32xf32> -> vector<8x32xf32>
    %190 = vector.extract_strided_slice %29 {offsets = [0, 96], sizes = [1, 32], strides = [1, 1]} : vector<1x128xf32> to vector<1x32xf32>
    %191 = vector.broadcast %190 : vector<1x32xf32> to vector<8x32xf32>
    %192 = arith.addf %189, %191 : vector<8x32xf32>
    %193 = arith.addf %122, %192 : vector<8x32xf32>
    %194 = vector.extract_strided_slice %34 {offsets = [1, 0], sizes = [1, 32], strides = [1, 1]} : vector<3x32xf32> to vector<1x32xf32>
    %195 = vector.extract_strided_slice %35 {offsets = [1, 0], sizes = [1, 32], strides = [1, 1]} : vector<3x32xf32> to vector<1x32xf32>
    %cst_50 = arith.constant dense<0.000000e+00> : vector<8xf32>
    %196 = vector.multi_reduction <add>, %193, %cst_50 [1] : vector<8x32xf32> to vector<8xf32>
    %197 = vector.shape_cast %196 : vector<8xf32> to vector<8x1xf32>
    %cst_51 = arith.constant 3.200000e+01 : f32
    %198 = vector.broadcast %cst_51 : f32 to vector<8x1xf32>
    %199 = arith.divf %197, %198 : vector<8x1xf32>
    %200 = vector.broadcast %199 : vector<8x1xf32> to vector<8x32xf32>
    %201 = arith.subf %193, %200 : vector<8x32xf32>
    %202 = arith.mulf %201, %201 : vector<8x32xf32>
    %cst_52 = arith.constant dense<0.000000e+00> : vector<8xf32>
    %203 = vector.multi_reduction <add>, %202, %cst_52 [1] : vector<8x32xf32> to vector<8xf32>
    %204 = vector.shape_cast %203 : vector<8xf32> to vector<8x1xf32>
    %cst_53 = arith.constant 3.200000e+01 : f32
    %205 = vector.broadcast %cst_53 : f32 to vector<8x1xf32>
    %206 = arith.divf %204, %205 : vector<8x1xf32>
    %cst_54 = arith.constant 9.99999974E-6 : f32
    %207 = vector.broadcast %cst_54 : f32 to vector<8x1xf32>
    %208 = arith.addf %206, %207 : vector<8x1xf32>
    %209 = math.rsqrt %208 : vector<8x1xf32>
    %210 = vector.broadcast %209 : vector<8x1xf32> to vector<8x32xf32>
    %211 = arith.mulf %201, %210 : vector<8x32xf32>
    %212 = vector.broadcast %194 : vector<1x32xf32> to vector<8x32xf32>
    %213 = arith.mulf %211, %212 : vector<8x32xf32>
    %214 = vector.broadcast %195 : vector<1x32xf32> to vector<8x32xf32>
    %215 = arith.addf %213, %214 : vector<8x32xf32>
    %cst_55 = arith.constant dense<0.000000e+00> : vector<8x128xf32>
    %216 = tpu.matmul %215, %30, %cst_55 {dimension_numbers = #tpu.dot_dimension_numbers<[1], [0], [0], [1], [0, 0, 1, 1], [], []>} : vector<8x32xf32>, vector<32x128xf32>, vector<8x128xf32> -> vector<8x128xf32>
    %217 = vector.broadcast %31 : vector<1x128xf32> to vector<8x128xf32>
    %218 = arith.addf %216, %217 : vector<8x128xf32>
    %219 = arith.mulf %218, %218 : vector<8x128xf32>
    %220 = arith.mulf %218, %219 : vector<8x128xf32>
    %cst_56 = arith.constant 4.471500e-02 : f32
    %221 = vector.broadcast %cst_56 : f32 to vector<8x128xf32>
    %222 = arith.mulf %221, %220 : vector<8x128xf32>
    %223 = arith.addf %218, %222 : vector<8x128xf32>
    %cst_57 = arith.constant 0.797884583 : f32
    %224 = vector.broadcast %cst_57 : f32 to vector<8x128xf32>
    %225 = arith.mulf %224, %223 : vector<8x128xf32>
    %226 = math.tanh %225 : vector<8x128xf32>
    %cst_58 = arith.constant 1.000000e+00 : f32
    %227 = vector.broadcast %cst_58 : f32 to vector<8x128xf32>
    %228 = arith.addf %227, %226 : vector<8x128xf32>
    %cst_59 = arith.constant 5.000000e-01 : f32
    %229 = vector.broadcast %cst_59 : f32 to vector<8x128xf32>
    %230 = arith.mulf %229, %228 : vector<8x128xf32>
    %231 = arith.mulf %218, %230 : vector<8x128xf32>
    %cst_60 = arith.constant dense<0.000000e+00> : vector<8x32xf32>
    %232 = tpu.matmul %231, %32, %cst_60 {dimension_numbers = #tpu.dot_dimension_numbers<[1], [0], [0], [1], [0, 0, 1, 1], [], []>} : vector<8x128xf32>, vector<128x32xf32>, vector<8x32xf32> -> vector<8x32xf32>
    %233 = vector.broadcast %33 : vector<1x32xf32> to vector<8x32xf32>
    %234 = arith.addf %232, %233 : vector<8x32xf32>
    %235 = arith.addf %215, %234 : vector<8x32xf32>
    %236 = vector.extract_strided_slice %34 {offsets = [2, 0], sizes = [1, 32], strides = [1, 1]} : vector<3x32xf32> to vector<1x32xf32>
    %237 = vector.extract_strided_slice %35 {offsets = [2, 0], sizes = [1, 32], strides = [1, 1]} : vector<3x32xf32> to vector<1x32xf32>
    %cst_61 = arith.constant dense<0.000000e+00> : vector<8xf32>
    %238 = vector.multi_reduction <add>, %235, %cst_61 [1] : vector<8x32xf32> to vector<8xf32>
    %239 = vector.shape_cast %238 : vector<8xf32> to vector<8x1xf32>
    %cst_62 = arith.constant 3.200000e+01 : f32
    %240 = vector.broadcast %cst_62 : f32 to vector<8x1xf32>
    %241 = arith.divf %239, %240 : vector<8x1xf32>
    %242 = vector.broadcast %241 : vector<8x1xf32> to vector<8x32xf32>
    %243 = arith.subf %235, %242 : vector<8x32xf32>
    %244 = arith.mulf %243, %243 : vector<8x32xf32>
    %cst_63 = arith.constant dense<0.000000e+00> : vector<8xf32>
    %245 = vector.multi_reduction <add>, %244, %cst_63 [1] : vector<8x32xf32> to vector<8xf32>
    %246 = vector.shape_cast %245 : vector<8xf32> to vector<8x1xf32>
    %cst_64 = arith.constant 3.200000e+01 : f32
    %247 = vector.broadcast %cst_64 : f32 to vector<8x1xf32>
    %248 = arith.divf %246, %247 : vector<8x1xf32>
    %cst_65 = arith.constant 9.99999974E-6 : f32
    %249 = vector.broadcast %cst_65 : f32 to vector<8x1xf32>
    %250 = arith.addf %248, %249 : vector<8x1xf32>
    %251 = math.rsqrt %250 : vector<8x1xf32>
    %252 = vector.broadcast %251 : vector<8x1xf32> to vector<8x32xf32>
    %253 = arith.mulf %243, %252 : vector<8x32xf32>
    %254 = vector.broadcast %236 : vector<1x32xf32> to vector<8x32xf32>
    %255 = arith.mulf %253, %254 : vector<8x32xf32>
    %256 = vector.broadcast %237 : vector<1x32xf32> to vector<8x32xf32>
    %257 = arith.addf %255, %256 : vector<8x32xf32>
    %cst_66 = arith.constant 0.000000e+00 : f32
    %258 = vector.broadcast %cst_66 : f32 to vector<8x120xf32>
    %259 = tpu.concatenate %177, %258 in 1 : vector<8x8xf32>, vector<8x120xf32> -> vector<8x128xf32>
    %c0_67 = arith.constant 0 : index
    %c0_68 = arith.constant 0 : index
    %c0_69 = arith.constant 0 : index
    %c0_70 = arith.constant 0 : index
    %260 = vector.load %arg7[%c0_67, %c0_68, %c0_69, %c0_70] : memref<1x2x8x128xf32, #tpu.memory_space<vmem>>, vector<1x1x8x128xf32>
    %261 = vector.shape_cast %260 : vector<1x1x8x128xf32> to vector<8x128xf32>
    %262 = vector.shape_cast %259 : vector<8x128xf32> to vector<1x1x8x128xf32>
    tpu.vector_store %arg7[%c0_67, %c0_68, %c0_69, %c0_70], %262 {strides = array<i32>} : memref<1x2x8x128xf32, #tpu.memory_space<vmem>>, vector<1x1x8x128xf32>,
    %c234 = arith.constant 234 : index
    %c0_71 = arith.constant 0 : index
    %263 = vector.load %arg5[%c234, %c0_71] : memref<575x128xf32, #tpu.memory_space<vmem>>, vector<32x128xf32>
    %c266 = arith.constant 266 : index
    %c0_72 = arith.constant 0 : index
    %264 = vector.load %arg5[%c266, %c0_72] : memref<575x128xf32, #tpu.memory_space<vmem>>, vector<1x128xf32>
    %c267 = arith.constant 267 : index
    %c0_73 = arith.constant 0 : index
    %265 = vector.load %arg5[%c267, %c0_73] : memref<575x128xf32, #tpu.memory_space<vmem>>, vector<32x128xf32>
    %c299 = arith.constant 299 : index
    %c0_74 = arith.constant 0 : index
    %266 = vector.load %arg5[%c299, %c0_74] : memref<575x128xf32, #tpu.memory_space<vmem>>, vector<1x128xf32>
    %c300 = arith.constant 300 : index
    %c0_75 = arith.constant 0 : index
    %267 = vector.load %arg5[%c300, %c0_75] : memref<575x128xf32, #tpu.memory_space<vmem>>, vector<32x128xf32>
    %c332 = arith.constant 332 : index
    %c0_76 = arith.constant 0 : index
    %268 = vector.load %arg5[%c332, %c0_76] : memref<575x128xf32, #tpu.memory_space<vmem>>, vector<1x128xf32>
    %c333 = arith.constant 333 : index
    %c0_77 = arith.constant 0 : index
    %269 = vector.load %arg5[%c333, %c0_77] : memref<575x128xf32, #tpu.memory_space<vmem>>, vector<128x32xf32>
    %c461 = arith.constant 461 : index
    %c0_78 = arith.constant 0 : index
    %270 = vector.load %arg5[%c461, %c0_78] : memref<575x128xf32, #tpu.memory_space<vmem>>, vector<1x32xf32>
    %c462 = arith.constant 462 : index
    %c0_79 = arith.constant 0 : index
    %271 = vector.load %arg5[%c462, %c0_79] : memref<575x128xf32, #tpu.memory_space<vmem>>, vector<3x32xf32>
    %c465 = arith.constant 465 : index
    %c0_80 = arith.constant 0 : index
    %272 = vector.load %arg5[%c465, %c0_80] : memref<575x128xf32, #tpu.memory_space<vmem>>, vector<3x32xf32>
    %273 = vector.extract_strided_slice %263 {offsets = [0, 0], sizes = [32, 96], strides = [1, 1]} : vector<32x128xf32> to vector<32x96xf32>
    %cst_81 = arith.constant dense<0.000000e+00> : vector<8x96xf32>
    %274 = tpu.matmul %257, %273, %cst_81 {dimension_numbers = #tpu.dot_dimension_numbers<[1], [0], [0], [1], [0, 0, 1, 1], [], []>} : vector<8x32xf32>, vector<32x96xf32>, vector<8x96xf32> -> vector<8x96xf32>
    %275 = vector.extract_strided_slice %264 {offsets = [0, 0], sizes = [1, 96], strides = [1, 1]} : vector<1x128xf32> to vector<1x96xf32>
    %276 = vector.broadcast %275 : vector<1x96xf32> to vector<8x96xf32>
    %277 = arith.addf %274, %276 : vector<8x96xf32>
    %278 = vector.extract_strided_slice %277 {offsets = [0, 0], sizes = [8, 32], strides = [1, 1]} : vector<8x96xf32> to vector<8x32xf32>
    %279 = vector.extract_strided_slice %277 {offsets = [0, 32], sizes = [8, 32], strides = [1, 1]} : vector<8x96xf32> to vector<8x32xf32>
    %280 = vector.extract_strided_slice %277 {offsets = [0, 64], sizes = [8, 32], strides = [1, 1]} : vector<8x96xf32> to vector<8x32xf32>
    %281 = vector.extract_strided_slice %278 {offsets = [0, 0], sizes = [8, 8], strides = [1, 1]} : vector<8x32xf32> to vector<8x8xf32>
    %282 = vector.extract_strided_slice %278 {offsets = [0, 8], sizes = [8, 8], strides = [1, 1]} : vector<8x32xf32> to vector<8x8xf32>
    %283 = vector.extract_strided_slice %278 {offsets = [0, 16], sizes = [8, 8], strides = [1, 1]} : vector<8x32xf32> to vector<8x8xf32>
    %284 = vector.extract_strided_slice %278 {offsets = [0, 24], sizes = [8, 8], strides = [1, 1]} : vector<8x32xf32> to vector<8x8xf32>
    %285 = vector.shape_cast %281 : vector<8x8xf32> to vector<1x8x8xf32>
    %286 = vector.shape_cast %282 : vector<8x8xf32> to vector<1x8x8xf32>
    %287 = vector.shape_cast %283 : vector<8x8xf32> to vector<1x8x8xf32>
    %288 = vector.shape_cast %284 : vector<8x8xf32> to vector<1x8x8xf32>
    %289 = tpu.concatenate %285, %286, %287, %288 in 0 : vector<1x8x8xf32>, vector<1x8x8xf32>, vector<1x8x8xf32>, vector<1x8x8xf32> -> vector<4x8x8xf32>
    %290 = vector.extract_strided_slice %279 {offsets = [0, 0], sizes = [8, 8], strides = [1, 1]} : vector<8x32xf32> to vector<8x8xf32>
    %291 = vector.extract_strided_slice %279 {offsets = [0, 8], sizes = [8, 8], strides = [1, 1]} : vector<8x32xf32> to vector<8x8xf32>
    %292 = vector.extract_strided_slice %279 {offsets = [0, 16], sizes = [8, 8], strides = [1, 1]} : vector<8x32xf32> to vector<8x8xf32>
    %293 = vector.extract_strided_slice %279 {offsets = [0, 24], sizes = [8, 8], strides = [1, 1]} : vector<8x32xf32> to vector<8x8xf32>
    %294 = vector.shape_cast %290 : vector<8x8xf32> to vector<1x8x8xf32>
    %295 = vector.shape_cast %291 : vector<8x8xf32> to vector<1x8x8xf32>
    %296 = vector.shape_cast %292 : vector<8x8xf32> to vector<1x8x8xf32>
    %297 = vector.shape_cast %293 : vector<8x8xf32> to vector<1x8x8xf32>
    %298 = tpu.concatenate %294, %295, %296, %297 in 0 : vector<1x8x8xf32>, vector<1x8x8xf32>, vector<1x8x8xf32>, vector<1x8x8xf32> -> vector<4x8x8xf32>
    %299 = vector.extract_strided_slice %280 {offsets = [0, 0], sizes = [8, 8], strides = [1, 1]} : vector<8x32xf32> to vector<8x8xf32>
    %300 = vector.extract_strided_slice %280 {offsets = [0, 8], sizes = [8, 8], strides = [1, 1]} : vector<8x32xf32> to vector<8x8xf32>
    %301 = vector.extract_strided_slice %280 {offsets = [0, 16], sizes = [8, 8], strides = [1, 1]} : vector<8x32xf32> to vector<8x8xf32>
    %302 = vector.extract_strided_slice %280 {offsets = [0, 24], sizes = [8, 8], strides = [1, 1]} : vector<8x32xf32> to vector<8x8xf32>
    %303 = vector.shape_cast %299 : vector<8x8xf32> to vector<1x8x8xf32>
    %304 = vector.shape_cast %300 : vector<8x8xf32> to vector<1x8x8xf32>
    %305 = vector.shape_cast %301 : vector<8x8xf32> to vector<1x8x8xf32>
    %306 = vector.shape_cast %302 : vector<8x8xf32> to vector<1x8x8xf32>
    %307 = tpu.concatenate %303, %304, %305, %306 in 0 : vector<1x8x8xf32>, vector<1x8x8xf32>, vector<1x8x8xf32>, vector<1x8x8xf32> -> vector<4x8x8xf32>
    "tpu.trace_start"() <{level = 10 : i32, message = "hqd,hkd->hqk"}> : () -> ()
    %cst_82 = arith.constant dense<0.000000e+00> : vector<4x8x8xf32>
    %308 = tpu.matmul %289, %298, %cst_82 {dimension_numbers = #tpu.dot_dimension_numbers<[2], [2], [1], [1], [0, 0, 0, 1, 1, 1], [0], [0]>} : vector<4x8x8xf32>, vector<4x8x8xf32>, vector<4x8x8xf32> -> vector<4x8x8xf32>
    "tpu.trace_stop"() : () -> ()
    %309 = vector.shape_cast %25 : vector<8x8xf32> to vector<1x8x8xf32>
    %310 = vector.broadcast %309 : vector<1x8x8xf32> to vector<4x8x8xf32>
    %311 = arith.addf %308, %310 : vector<4x8x8xf32>
    %cst_83 = arith.constant dense<0xFF800000> : vector<4x8xf32>
    %312 = vector.multi_reduction <maximumf>, %311, %cst_83 [2] : vector<4x8x8xf32> to vector<4x8xf32>
    %313 = vector.shape_cast %312 : vector<4x8xf32> to vector<4x8x1xf32>
    %314 = vector.broadcast %313 : vector<4x8x1xf32> to vector<4x8x8xf32>
    %315 = arith.subf %311, %314 : vector<4x8x8xf32>
    %316 = math.exp %315 : vector<4x8x8xf32>
    %cst_84 = arith.constant dense<0.000000e+00> : vector<4x8xf32>
    %317 = vector.multi_reduction <add>, %316, %cst_84 [2] : vector<4x8x8xf32> to vector<4x8xf32>
    %318 = vector.shape_cast %317 : vector<4x8xf32> to vector<4x8x1xf32>
    %319 = tpu.reciprocal %318 {approx = true} : vector<4x8x1xf32> -> vector<4x8x1xf32>
    %320 = vector.broadcast %319 : vector<4x8x1xf32> to vector<4x8x8xf32>
    %321 = arith.mulf %316, %320 : vector<4x8x8xf32>
    "tpu.trace_start"() <{level = 10 : i32, message = "hqk,hkd->hqd"}> : () -> ()
    %cst_85 = arith.constant dense<0.000000e+00> : vector<4x8x8xf32>
    %322 = tpu.matmul %321, %307, %cst_85 {dimension_numbers = #tpu.dot_dimension_numbers<[2], [1], [1], [2], [0, 0, 0, 1, 1, 2], [0], [0]>} : vector<4x8x8xf32>, vector<4x8x8xf32>, vector<4x8x8xf32> -> vector<4x8x8xf32>
    "tpu.trace_stop"() : () -> ()
    %323 = vector.extract_strided_slice %322 {offsets = [0, 0, 0], sizes = [1, 8, 8], strides = [1, 1, 1]} : vector<4x8x8xf32> to vector<1x8x8xf32>
    %324 = vector.shape_cast %323 : vector<1x8x8xf32> to vector<8x8xf32>
    %325 = vector.extract_strided_slice %322 {offsets = [1, 0, 0], sizes = [1, 8, 8], strides = [1, 1, 1]} : vector<4x8x8xf32> to vector<1x8x8xf32>
    %326 = vector.shape_cast %325 : vector<1x8x8xf32> to vector<8x8xf32>
    %327 = vector.extract_strided_slice %322 {offsets = [2, 0, 0], sizes = [1, 8, 8], strides = [1, 1, 1]} : vector<4x8x8xf32> to vector<1x8x8xf32>
    %328 = vector.shape_cast %327 : vector<1x8x8xf32> to vector<8x8xf32>
    %329 = vector.extract_strided_slice %322 {offsets = [3, 0, 0], sizes = [1, 8, 8], strides = [1, 1, 1]} : vector<4x8x8xf32> to vector<1x8x8xf32>
    %330 = vector.shape_cast %329 : vector<1x8x8xf32> to vector<8x8xf32>
    %331 = tpu.concatenate %324, %326, %328, %330 in 1 : vector<8x8xf32>, vector<8x8xf32>, vector<8x8xf32>, vector<8x8xf32> -> vector<8x32xf32>
    %332 = vector.extract_strided_slice %263 {offsets = [0, 96], sizes = [32, 32], strides = [1, 1]} : vector<32x128xf32> to vector<32x32xf32>
    %cst_86 = arith.constant dense<0.000000e+00> : vector<8x32xf32>
    %333 = tpu.matmul %331, %332, %cst_86 {dimension_numbers = #tpu.dot_dimension_numbers<[1], [0], [0], [1], [0, 0, 1, 1], [], []>} : vector<8x32xf32>, vector<32x32xf32>, vector<8x32xf32> -> vector<8x32xf32>
    %334 = vector.extract_strided_slice %264 {offsets = [0, 96], sizes = [1, 32], strides = [1, 1]} : vector<1x128xf32> to vector<1x32xf32>
    %335 = vector.broadcast %334 : vector<1x32xf32> to vector<8x32xf32>
    %336 = arith.addf %333, %335 : vector<8x32xf32>
    %337 = arith.addf %257, %336 : vector<8x32xf32>
    %338 = vector.extract_strided_slice %271 {offsets = [0, 0], sizes = [1, 32], strides = [1, 1]} : vector<3x32xf32> to vector<1x32xf32>
    %339 = vector.extract_strided_slice %272 {offsets = [0, 0], sizes = [1, 32], strides = [1, 1]} : vector<3x32xf32> to vector<1x32xf32>
    %cst_87 = arith.constant dense<0.000000e+00> : vector<8xf32>
    %340 = vector.multi_reduction <add>, %337, %cst_87 [1] : vector<8x32xf32> to vector<8xf32>
    %341 = vector.shape_cast %340 : vector<8xf32> to vector<8x1xf32>
    %cst_88 = arith.constant 3.200000e+01 : f32
    %342 = vector.broadcast %cst_88 : f32 to vector<8x1xf32>
    %343 = arith.divf %341, %342 : vector<8x1xf32>
    %344 = vector.broadcast %343 : vector<8x1xf32> to vector<8x32xf32>
    %345 = arith.subf %337, %344 : vector<8x32xf32>
    %346 = arith.mulf %345, %345 : vector<8x32xf32>
    %cst_89 = arith.constant dense<0.000000e+00> : vector<8xf32>
    %347 = vector.multi_reduction <add>, %346, %cst_89 [1] : vector<8x32xf32> to vector<8xf32>
    %348 = vector.shape_cast %347 : vector<8xf32> to vector<8x1xf32>
    %cst_90 = arith.constant 3.200000e+01 : f32
    %349 = vector.broadcast %cst_90 : f32 to vector<8x1xf32>
    %350 = arith.divf %348, %349 : vector<8x1xf32>
    %cst_91 = arith.constant 9.99999974E-6 : f32
    %351 = vector.broadcast %cst_91 : f32 to vector<8x1xf32>
    %352 = arith.addf %350, %351 : vector<8x1xf32>
    %353 = math.rsqrt %352 : vector<8x1xf32>
    %354 = vector.broadcast %353 : vector<8x1xf32> to vector<8x32xf32>
    %355 = arith.mulf %345, %354 : vector<8x32xf32>
    %356 = vector.broadcast %338 : vector<1x32xf32> to vector<8x32xf32>
    %357 = arith.mulf %355, %356 : vector<8x32xf32>
    %358 = vector.broadcast %339 : vector<1x32xf32> to vector<8x32xf32>
    %359 = arith.addf %357, %358 : vector<8x32xf32>
    %360 = vector.extract_strided_slice %265 {offsets = [0, 0], sizes = [32, 32], strides = [1, 1]} : vector<32x128xf32> to vector<32x32xf32>
    %cst_92 = arith.constant dense<0.000000e+00> : vector<8x32xf32>
    %361 = tpu.matmul %359, %360, %cst_92 {dimension_numbers = #tpu.dot_dimension_numbers<[1], [0], [0], [1], [0, 0, 1, 1], [], []>} : vector<8x32xf32>, vector<32x32xf32>, vector<8x32xf32> -> vector<8x32xf32>
    %362 = vector.extract_strided_slice %266 {offsets = [0, 0], sizes = [1, 32], strides = [1, 1]} : vector<1x128xf32> to vector<1x32xf32>
    %363 = vector.broadcast %362 : vector<1x32xf32> to vector<8x32xf32>
    %364 = arith.addf %361, %363 : vector<8x32xf32>
    %365 = vector.extract_strided_slice %265 {offsets = [0, 32], sizes = [32, 64], strides = [1, 1]} : vector<32x128xf32> to vector<32x64xf32>
    %cst_93 = arith.constant dense<0.000000e+00> : vector<8x64xf32>
    %366 = tpu.matmul %3, %365, %cst_93 {dimension_numbers = #tpu.dot_dimension_numbers<[1], [0], [0], [1], [0, 0, 1, 1], [], []>} : vector<8x32xf32>, vector<32x64xf32>, vector<8x64xf32> -> vector<8x64xf32>
    %367 = vector.extract_strided_slice %266 {offsets = [0, 32], sizes = [1, 64], strides = [1, 1]} : vector<1x128xf32> to vector<1x64xf32>
    %368 = vector.broadcast %367 : vector<1x64xf32> to vector<8x64xf32>
    %369 = arith.addf %366, %368 : vector<8x64xf32>
    %370 = vector.extract_strided_slice %369 {offsets = [0, 0], sizes = [8, 32], strides = [1, 1]} : vector<8x64xf32> to vector<8x32xf32>
    %371 = vector.extract_strided_slice %369 {offsets = [0, 32], sizes = [8, 32], strides = [1, 1]} : vector<8x64xf32> to vector<8x32xf32>
    %372 = vector.extract_strided_slice %364 {offsets = [0, 0], sizes = [8, 8], strides = [1, 1]} : vector<8x32xf32> to vector<8x8xf32>
    %373 = vector.extract_strided_slice %364 {offsets = [0, 8], sizes = [8, 8], strides = [1, 1]} : vector<8x32xf32> to vector<8x8xf32>
    %374 = vector.extract_strided_slice %364 {offsets = [0, 16], sizes = [8, 8], strides = [1, 1]} : vector<8x32xf32> to vector<8x8xf32>
    %375 = vector.extract_strided_slice %364 {offsets = [0, 24], sizes = [8, 8], strides = [1, 1]} : vector<8x32xf32> to vector<8x8xf32>
    %376 = vector.shape_cast %372 : vector<8x8xf32> to vector<1x8x8xf32>
    %377 = vector.shape_cast %373 : vector<8x8xf32> to vector<1x8x8xf32>
    %378 = vector.shape_cast %374 : vector<8x8xf32> to vector<1x8x8xf32>
    %379 = vector.shape_cast %375 : vector<8x8xf32> to vector<1x8x8xf32>
    %380 = tpu.concatenate %376, %377, %378, %379 in 0 : vector<1x8x8xf32>, vector<1x8x8xf32>, vector<1x8x8xf32>, vector<1x8x8xf32> -> vector<4x8x8xf32>
    %381 = vector.extract_strided_slice %370 {offsets = [0, 0], sizes = [8, 8], strides = [1, 1]} : vector<8x32xf32> to vector<8x8xf32>
    %382 = vector.extract_strided_slice %370 {offsets = [0, 8], sizes = [8, 8], strides = [1, 1]} : vector<8x32xf32> to vector<8x8xf32>
    %383 = vector.extract_strided_slice %370 {offsets = [0, 16], sizes = [8, 8], strides = [1, 1]} : vector<8x32xf32> to vector<8x8xf32>
    %384 = vector.extract_strided_slice %370 {offsets = [0, 24], sizes = [8, 8], strides = [1, 1]} : vector<8x32xf32> to vector<8x8xf32>
    %385 = vector.shape_cast %381 : vector<8x8xf32> to vector<1x8x8xf32>
    %386 = vector.shape_cast %382 : vector<8x8xf32> to vector<1x8x8xf32>
    %387 = vector.shape_cast %383 : vector<8x8xf32> to vector<1x8x8xf32>
    %388 = vector.shape_cast %384 : vector<8x8xf32> to vector<1x8x8xf32>
    %389 = tpu.concatenate %385, %386, %387, %388 in 0 : vector<1x8x8xf32>, vector<1x8x8xf32>, vector<1x8x8xf32>, vector<1x8x8xf32> -> vector<4x8x8xf32>
    %390 = vector.extract_strided_slice %371 {offsets = [0, 0], sizes = [8, 8], strides = [1, 1]} : vector<8x32xf32> to vector<8x8xf32>
    %391 = vector.extract_strided_slice %371 {offsets = [0, 8], sizes = [8, 8], strides = [1, 1]} : vector<8x32xf32> to vector<8x8xf32>
    %392 = vector.extract_strided_slice %371 {offsets = [0, 16], sizes = [8, 8], strides = [1, 1]} : vector<8x32xf32> to vector<8x8xf32>
    %393 = vector.extract_strided_slice %371 {offsets = [0, 24], sizes = [8, 8], strides = [1, 1]} : vector<8x32xf32> to vector<8x8xf32>
    %394 = vector.shape_cast %390 : vector<8x8xf32> to vector<1x8x8xf32>
    %395 = vector.shape_cast %391 : vector<8x8xf32> to vector<1x8x8xf32>
    %396 = vector.shape_cast %392 : vector<8x8xf32> to vector<1x8x8xf32>
    %397 = vector.shape_cast %393 : vector<8x8xf32> to vector<1x8x8xf32>
    %398 = tpu.concatenate %394, %395, %396, %397 in 0 : vector<1x8x8xf32>, vector<1x8x8xf32>, vector<1x8x8xf32>, vector<1x8x8xf32> -> vector<4x8x8xf32>
    "tpu.trace_start"() <{level = 10 : i32, message = "hqd,hkd->hqk"}> : () -> ()
    %cst_94 = arith.constant dense<0.000000e+00> : vector<4x8x8xf32>
    %399 = tpu.matmul %380, %389, %cst_94 {dimension_numbers = #tpu.dot_dimension_numbers<[2], [2], [1], [1], [0, 0, 0, 1, 1, 1], [0], [0]>} : vector<4x8x8xf32>, vector<4x8x8xf32>, vector<4x8x8xf32> -> vector<4x8x8xf32>
    "tpu.trace_stop"() : () -> ()
    %400 = vector.shape_cast %7 : vector<1x8xf32> to vector<1x1x8xf32>
    %401 = vector.broadcast %400 : vector<1x1x8xf32> to vector<4x8x8xf32>
    %402 = arith.addf %399, %401 : vector<4x8x8xf32>
    %cst_95 = arith.constant dense<0xFF800000> : vector<4x8xf32>
    %403 = vector.multi_reduction <maximumf>, %402, %cst_95 [2] : vector<4x8x8xf32> to vector<4x8xf32>
    %404 = vector.shape_cast %403 : vector<4x8xf32> to vector<4x8x1xf32>
    %405 = vector.broadcast %404 : vector<4x8x1xf32> to vector<4x8x8xf32>
    %406 = arith.subf %402, %405 : vector<4x8x8xf32>
    %407 = math.exp %406 : vector<4x8x8xf32>
    %cst_96 = arith.constant dense<0.000000e+00> : vector<4x8xf32>
    %408 = vector.multi_reduction <add>, %407, %cst_96 [2] : vector<4x8x8xf32> to vector<4x8xf32>
    %409 = vector.shape_cast %408 : vector<4x8xf32> to vector<4x8x1xf32>
    %410 = vector.broadcast %409 : vector<4x8x1xf32> to vector<4x8x8xf32>
    %411 = arith.divf %407, %410 : vector<4x8x8xf32>
    %cst_97 = arith.constant dense<0.000000e+00> : vector<8x8xf32>
    %412 = vector.multi_reduction <add>, %411, %cst_97 [0] : vector<4x8x8xf32> to vector<8x8xf32>
    %cst_98 = arith.constant 4.000000e+00 : f32
    %413 = vector.broadcast %cst_98 : f32 to vector<8x8xf32>
    %414 = arith.divf %412, %413 : vector<8x8xf32>
    "tpu.trace_start"() <{level = 10 : i32, message = "hqk,hkd->hqd"}> : () -> ()
    %cst_99 = arith.constant dense<0.000000e+00> : vector<4x8x8xf32>
    %415 = tpu.matmul %411, %398, %cst_99 {dimension_numbers = #tpu.dot_dimension_numbers<[2], [1], [1], [2], [0, 0, 0, 1, 1, 2], [0], [0]>} : vector<4x8x8xf32>, vector<4x8x8xf32>, vector<4x8x8xf32> -> vector<4x8x8xf32>
    "tpu.trace_stop"() : () -> ()
    %416 = vector.extract_strided_slice %415 {offsets = [0, 0, 0], sizes = [1, 8, 8], strides = [1, 1, 1]} : vector<4x8x8xf32> to vector<1x8x8xf32>
    %417 = vector.shape_cast %416 : vector<1x8x8xf32> to vector<8x8xf32>
    %418 = vector.extract_strided_slice %415 {offsets = [1, 0, 0], sizes = [1, 8, 8], strides = [1, 1, 1]} : vector<4x8x8xf32> to vector<1x8x8xf32>
    %419 = vector.shape_cast %418 : vector<1x8x8xf32> to vector<8x8xf32>
    %420 = vector.extract_strided_slice %415 {offsets = [2, 0, 0], sizes = [1, 8, 8], strides = [1, 1, 1]} : vector<4x8x8xf32> to vector<1x8x8xf32>
    %421 = vector.shape_cast %420 : vector<1x8x8xf32> to vector<8x8xf32>
    %422 = vector.extract_strided_slice %415 {offsets = [3, 0, 0], sizes = [1, 8, 8], strides = [1, 1, 1]} : vector<4x8x8xf32> to vector<1x8x8xf32>
    %423 = vector.shape_cast %422 : vector<1x8x8xf32> to vector<8x8xf32>
    %424 = tpu.concatenate %417, %419, %421, %423 in 1 : vector<8x8xf32>, vector<8x8xf32>, vector<8x8xf32>, vector<8x8xf32> -> vector<8x32xf32>
    %425 = vector.extract_strided_slice %265 {offsets = [0, 96], sizes = [32, 32], strides = [1, 1]} : vector<32x128xf32> to vector<32x32xf32>
    %cst_100 = arith.constant dense<0.000000e+00> : vector<8x32xf32>
    %426 = tpu.matmul %424, %425, %cst_100 {dimension_numbers = #tpu.dot_dimension_numbers<[1], [0], [0], [1], [0, 0, 1, 1], [], []>} : vector<8x32xf32>, vector<32x32xf32>, vector<8x32xf32> -> vector<8x32xf32>
    %427 = vector.extract_strided_slice %266 {offsets = [0, 96], sizes = [1, 32], strides = [1, 1]} : vector<1x128xf32> to vector<1x32xf32>
    %428 = vector.broadcast %427 : vector<1x32xf32> to vector<8x32xf32>
    %429 = arith.addf %426, %428 : vector<8x32xf32>
    %430 = arith.addf %359, %429 : vector<8x32xf32>
    %431 = vector.extract_strided_slice %271 {offsets = [1, 0], sizes = [1, 32], strides = [1, 1]} : vector<3x32xf32> to vector<1x32xf32>
    %432 = vector.extract_strided_slice %272 {offsets = [1, 0], sizes = [1, 32], strides = [1, 1]} : vector<3x32xf32> to vector<1x32xf32>
    %cst_101 = arith.constant dense<0.000000e+00> : vector<8xf32>
    %433 = vector.multi_reduction <add>, %430, %cst_101 [1] : vector<8x32xf32> to vector<8xf32>
    %434 = vector.shape_cast %433 : vector<8xf32> to vector<8x1xf32>
    %cst_102 = arith.constant 3.200000e+01 : f32
    %435 = vector.broadcast %cst_102 : f32 to vector<8x1xf32>
    %436 = arith.divf %434, %435 : vector<8x1xf32>
    %437 = vector.broadcast %436 : vector<8x1xf32> to vector<8x32xf32>
    %438 = arith.subf %430, %437 : vector<8x32xf32>
    %439 = arith.mulf %438, %438 : vector<8x32xf32>
    %cst_103 = arith.constant dense<0.000000e+00> : vector<8xf32>
    %440 = vector.multi_reduction <add>, %439, %cst_103 [1] : vector<8x32xf32> to vector<8xf32>
    %441 = vector.shape_cast %440 : vector<8xf32> to vector<8x1xf32>
    %cst_104 = arith.constant 3.200000e+01 : f32
    %442 = vector.broadcast %cst_104 : f32 to vector<8x1xf32>
    %443 = arith.divf %441, %442 : vector<8x1xf32>
    %cst_105 = arith.constant 9.99999974E-6 : f32
    %444 = vector.broadcast %cst_105 : f32 to vector<8x1xf32>
    %445 = arith.addf %443, %444 : vector<8x1xf32>
    %446 = math.rsqrt %445 : vector<8x1xf32>
    %447 = vector.broadcast %446 : vector<8x1xf32> to vector<8x32xf32>
    %448 = arith.mulf %438, %447 : vector<8x32xf32>
    %449 = vector.broadcast %431 : vector<1x32xf32> to vector<8x32xf32>
    %450 = arith.mulf %448, %449 : vector<8x32xf32>
    %451 = vector.broadcast %432 : vector<1x32xf32> to vector<8x32xf32>
    %452 = arith.addf %450, %451 : vector<8x32xf32>
    %cst_106 = arith.constant dense<0.000000e+00> : vector<8x128xf32>
    %453 = tpu.matmul %452, %267, %cst_106 {dimension_numbers = #tpu.dot_dimension_numbers<[1], [0], [0], [1], [0, 0, 1, 1], [], []>} : vector<8x32xf32>, vector<32x128xf32>, vector<8x128xf32> -> vector<8x128xf32>
    %454 = vector.broadcast %268 : vector<1x128xf32> to vector<8x128xf32>
    %455 = arith.addf %453, %454 : vector<8x128xf32>
    %456 = arith.mulf %455, %455 : vector<8x128xf32>
    %457 = arith.mulf %455, %456 : vector<8x128xf32>
    %cst_107 = arith.constant 4.471500e-02 : f32
    %458 = vector.broadcast %cst_107 : f32 to vector<8x128xf32>
    %459 = arith.mulf %458, %457 : vector<8x128xf32>
    %460 = arith.addf %455, %459 : vector<8x128xf32>
    %cst_108 = arith.constant 0.797884583 : f32
    %461 = vector.broadcast %cst_108 : f32 to vector<8x128xf32>
    %462 = arith.mulf %461, %460 : vector<8x128xf32>
    %463 = math.tanh %462 : vector<8x128xf32>
    %cst_109 = arith.constant 1.000000e+00 : f32
    %464 = vector.broadcast %cst_109 : f32 to vector<8x128xf32>
    %465 = arith.addf %464, %463 : vector<8x128xf32>
    %cst_110 = arith.constant 5.000000e-01 : f32
    %466 = vector.broadcast %cst_110 : f32 to vector<8x128xf32>
    %467 = arith.mulf %466, %465 : vector<8x128xf32>
    %468 = arith.mulf %455, %467 : vector<8x128xf32>
    %cst_111 = arith.constant dense<0.000000e+00> : vector<8x32xf32>
    %469 = tpu.matmul %468, %269, %cst_111 {dimension_numbers = #tpu.dot_dimension_numbers<[1], [0], [0], [1], [0, 0, 1, 1], [], []>} : vector<8x128xf32>, vector<128x32xf32>, vector<8x32xf32> -> vector<8x32xf32>
    %470 = vector.broadcast %270 : vector<1x32xf32> to vector<8x32xf32>
    %471 = arith.addf %469, %470 : vector<8x32xf32>
    %472 = arith.addf %452, %471 : vector<8x32xf32>
    %473 = vector.extract_strided_slice %271 {offsets = [2, 0], sizes = [1, 32], strides = [1, 1]} : vector<3x32xf32> to vector<1x32xf32>
    %474 = vector.extract_strided_slice %272 {offsets = [2, 0], sizes = [1, 32], strides = [1, 1]} : vector<3x32xf32> to vector<1x32xf32>
    %cst_112 = arith.constant dense<0.000000e+00> : vector<8xf32>
    %475 = vector.multi_reduction <add>, %472, %cst_112 [1] : vector<8x32xf32> to vector<8xf32>
    %476 = vector.shape_cast %475 : vector<8xf32> to vector<8x1xf32>
    %cst_113 = arith.constant 3.200000e+01 : f32
    %477 = vector.broadcast %cst_113 : f32 to vector<8x1xf32>
    %478 = arith.divf %476, %477 : vector<8x1xf32>
    %479 = vector.broadcast %478 : vector<8x1xf32> to vector<8x32xf32>
    %480 = arith.subf %472, %479 : vector<8x32xf32>
    %481 = arith.mulf %480, %480 : vector<8x32xf32>
    %cst_114 = arith.constant dense<0.000000e+00> : vector<8xf32>
    %482 = vector.multi_reduction <add>, %481, %cst_114 [1] : vector<8x32xf32> to vector<8xf32>
    %483 = vector.shape_cast %482 : vector<8xf32> to vector<8x1xf32>
    %cst_115 = arith.constant 3.200000e+01 : f32
    %484 = vector.broadcast %cst_115 : f32 to vector<8x1xf32>
    %485 = arith.divf %483, %484 : vector<8x1xf32>
    %cst_116 = arith.constant 9.99999974E-6 : f32
    %486 = vector.broadcast %cst_116 : f32 to vector<8x1xf32>
    %487 = arith.addf %485, %486 : vector<8x1xf32>
    %488 = math.rsqrt %487 : vector<8x1xf32>
    %489 = vector.broadcast %488 : vector<8x1xf32> to vector<8x32xf32>
    %490 = arith.mulf %480, %489 : vector<8x32xf32>
    %491 = vector.broadcast %473 : vector<1x32xf32> to vector<8x32xf32>
    %492 = arith.mulf %490, %491 : vector<8x32xf32>
    %493 = vector.broadcast %474 : vector<1x32xf32> to vector<8x32xf32>
    %494 = arith.addf %492, %493 : vector<8x32xf32>
    %cst_117 = arith.constant 0.000000e+00 : f32
    %495 = vector.broadcast %cst_117 : f32 to vector<8x120xf32>
    %496 = tpu.concatenate %414, %495 in 1 : vector<8x8xf32>, vector<8x120xf32> -> vector<8x128xf32>
    %c0_118 = arith.constant 0 : index
    %c1 = arith.constant 1 : index
    %c0_119 = arith.constant 0 : index
    %c0_120 = arith.constant 0 : index
    %497 = vector.load %arg7[%c0_118, %c1, %c0_119, %c0_120] : memref<1x2x8x128xf32, #tpu.memory_space<vmem>>, vector<1x1x8x128xf32>
    %498 = vector.shape_cast %497 : vector<1x1x8x128xf32> to vector<8x128xf32>
    %499 = vector.shape_cast %496 : vector<8x128xf32> to vector<1x1x8x128xf32>
    tpu.vector_store %arg7[%c0_118, %c1, %c0_119, %c0_120], %499 {strides = array<i32>} : memref<1x2x8x128xf32, #tpu.memory_space<vmem>>, vector<1x1x8x128xf32>,
    %cst_121 = arith.constant dense<0.000000e+00> : vector<8xf32>
    %500 = vector.multi_reduction <add>, %494, %cst_121 [1] : vector<8x32xf32> to vector<8xf32>
    %501 = vector.shape_cast %500 : vector<8xf32> to vector<8x1xf32>
    %cst_122 = arith.constant 3.200000e+01 : f32
    %502 = vector.broadcast %cst_122 : f32 to vector<8x1xf32>
    %503 = arith.divf %501, %502 : vector<8x1xf32>
    %504 = vector.broadcast %503 : vector<8x1xf32> to vector<8x32xf32>
    %505 = arith.subf %494, %504 : vector<8x32xf32>
    %506 = arith.mulf %505, %505 : vector<8x32xf32>
    %cst_123 = arith.constant dense<0.000000e+00> : vector<8xf32>
    %507 = vector.multi_reduction <add>, %506, %cst_123 [1] : vector<8x32xf32> to vector<8xf32>
    %508 = vector.shape_cast %507 : vector<8xf32> to vector<8x1xf32>
    %cst_124 = arith.constant 3.200000e+01 : f32
    %509 = vector.broadcast %cst_124 : f32 to vector<8x1xf32>
    %510 = arith.divf %508, %509 : vector<8x1xf32>
    %cst_125 = arith.constant 9.99999974E-6 : f32
    %511 = vector.broadcast %cst_125 : f32 to vector<8x1xf32>
    %512 = arith.addf %510, %511 : vector<8x1xf32>
    %513 = math.rsqrt %512 : vector<8x1xf32>
    %514 = vector.broadcast %513 : vector<8x1xf32> to vector<8x32xf32>
    %515 = arith.mulf %505, %514 : vector<8x32xf32>
    %516 = vector.broadcast %10 : vector<1x32xf32> to vector<8x32xf32>
    %517 = arith.mulf %515, %516 : vector<8x32xf32>
    %518 = vector.broadcast %11 : vector<1x32xf32> to vector<8x32xf32>
    %519 = arith.addf %517, %518 : vector<8x32xf32>
    %cst_126 = arith.constant dense<0.000000e+00> : vector<8x128xf32>
    %520 = tpu.matmul %519, %13, %cst_126 {dimension_numbers = #tpu.dot_dimension_numbers<[1], [0], [0], [1], [0, 0, 1, 1], [], []>} : vector<8x32xf32>, vector<32x128xf32>, vector<8x128xf32> -> vector<8x128xf32>
    %c0_127 = arith.constant 0 : index
    %c0_128 = arith.constant 0 : index
    %c0_129 = arith.constant 0 : index
    %521 = vector.load %arg6[%c0_127, %c0_128, %c0_129] : memref<1x8x128xf32, #tpu.memory_space<vmem>>, vector<1x8x128xf32>
    %522 = vector.shape_cast %521 : vector<1x8x128xf32> to vector<8x128xf32>
    %523 = vector.shape_cast %520 : vector<8x128xf32> to vector<1x8x128xf32>
    tpu.vector_store %arg6[%c0_127, %c0_128, %c0_129], %523 {strides = array<i32>} : memref<1x8x128xf32, #tpu.memory_space<vmem>>, vector<1x8x128xf32>,
    return
  }
  func.func @transform_0(%arg0: i32) -> (i32, i32, i32) {
    %c0_i32 = arith.constant 0 : i32
    %c0_i32_0 = arith.constant 0 : i32
    %c0_i32_1 = arith.constant 0 : i32
    return %arg0, %c0_i32, %c0_i32_0 : i32, i32, i32
  }
  func.func @transform_1(%arg0: i32) -> (i32, i32, i32) {
    %c0_i32 = arith.constant 0 : i32
    %c0_i32_0 = arith.constant 0 : i32
    %c0_i32_1 = arith.constant 0 : i32
    return %arg0, %c0_i32, %c0_i32_0 : i32, i32, i32
  }
  func.func @transform_2(%arg0: i32) -> (i32, i32, i32) {
    %c0_i32 = arith.constant 0 : i32
    %c0_i32_0 = arith.constant 0 : i32
    %c0_i32_1 = arith.constant 0 : i32
    return %arg0, %c0_i32, %c0_i32_0 : i32, i32, i32
  }
  func.func @transform_3(%arg0: i32) -> (i32, i32, i32) {
    %c0_i32 = arith.constant 0 : i32
    %c0_i32_0 = arith.constant 0 : i32
    %c0_i32_1 = arith.constant 0 : i32
    return %arg0, %c0_i32, %c0_i32_0 : i32, i32, i32
  }
  func.func @transform_4(%arg0: i32) -> (i32, i32) {
    %c0_i32 = arith.constant 0 : i32
    %c0_i32_0 = arith.constant 0 : i32
    %c0_i32_1 = arith.constant 0 : i32
    return %c0_i32, %c0_i32_0 : i32, i32
  }
  func.func @transform_5(%arg0: i32) -> (i32, i32, i32) {
    %c0_i32 = arith.constant 0 : i32
    %c0_i32_0 = arith.constant 0 : i32
    %c0_i32_1 = arith.constant 0 : i32
    return %arg0, %c0_i32, %c0_i32_0 : i32, i32, i32
  }
  func.func @transform_6(%arg0: i32) -> (i32, i32, i32, i32) {
    %c0_i32 = arith.constant 0 : i32
    %c0_i32_0 = arith.constant 0 : i32
    %c0_i32_1 = arith.constant 0 : i32
    %c0_i32_2 = arith.constant 0 : i32
    return %arg0, %c0_i32, %c0_i32_0, %c0_i32_1 : i32, i32, i32, i32
  }
}

</mosaic_0001>

<llo_original>
// kernel: decoder_forward.1
$region0: #{decoder_forward.1}
  #allocation0 [shape = 'u32[]', space=smem, size = 0x4, offset = 0x4, fixed_abs, tag = 'smem constant byte address 0x4 - core index']
  #allocation1 [shape = 'u32[72,128]{1,0:T(1,128)}', space=vmem, size = 0x9000, scoped, tag = 'internal scratch']
  %s0 = inlined_call_operand.vmem [shape: f32[2,8,64], index: 0, kind: input, shape index: {}]
  %s1 = inlined_call_operand.vmem [shape: f32[2,8,32], index: 1, kind: input, shape index: {}]
  %s2 = inlined_call_operand.vmem [shape: f32[2,1,8], index: 2, kind: input, shape index: {}]
  %s3 = inlined_call_operand.vmem [shape: f32[2,1,8], index: 3, kind: input, shape index: {}]
  %s4 = inlined_call_operand.hbm [shape: f32[575,128], index: 4, kind: input, shape index: {}]
  %s5 = inlined_call_operand.hbm [shape: f32[2,8,128], index: 5, kind: output, shape index: {0}]
  %s6 = inlined_call_operand.vmem [shape: f32[2,2,8,128], index: 6, kind: output, shape index: {1}]
  %7 = xla_tuple %s5, %s6
  %s8 = sld [smem:[#allocation0]]
  $region65: #{decoder_forward.1} parent=0
    _
  %s10 = ssub.s32 1, %s8
  %s11 = scalar_select 0, %s10, %s8
  $region1: #{decoder_forward.1} parent=0
    #allocation2 [shape = 'u8[294912]{0}', space=vmem, size = 0x48000, scoped, tag = 'input window, operand 4, single buffered']
    #allocation3 [shape = 's32[2]{0}', space=sflag, size = 0x8, scoped, tag = 'scoped memory for decoder_forward.1']
    #allocation4 [shape = 's32[2]{0}', space=sflag, size = 0x8, scoped, tag = 'scoped memory for decoder_forward.1']
    #allocation5 [shape = 'u8[8192]{0}', space=vmem, size = 0x2000, scoped, tag = 'output window, operand 0']
    %12 = vsyncpa [#allocation3], 0
    %13 = vsyncpa [#allocation4], 0
    %s14 = scalar_lea.sflag [#allocation4], 1
    %15 = vsyncpa %s14, 0
    loop: start=0, step=1, limit=4
    $region2: #{decoder_forward.1} parent=1 // loop_pre_header
      _
    $region3: #{decoder_forward.1} parent=1 // loop_header
      %s17 = sphi 0, %s21
      %p18 = scmp.ge.s32.totalorder %s17, 4
      %s27 = sphi 0, %s29
      %s30 = sphi 0, %s27
      %s31 = sphi 0, %s30
      %s47 = sphi 0, %s31
      %s53 = sphi 0, %s55
      %s56 = sphi 0, %s53
      %s57 = sphi 0, %s56
      %s73 = sphi 0, %s57
      %s79 = sphi 0, %s81
      %s82 = sphi 0, %s79
      %s83 = sphi 0, %s82
      %s99 = sphi 0, %s83
      %s105 = sphi 0, %s107
      %s108 = sphi 0, %s105
      %s109 = sphi 0, %s108
      %s125 = sphi 0, %s109
      %s129 = sphi 0, %s129
      %s131 = sphi 0, %s129
      %s132 = sphi 0, %s131
      %s146 = sphi 0, %s132
      %s152 = sphi 0, %s154
      %s155 = sphi 0, %s152
      %s156 = sphi 0, %s155
      %s172 = sphi 0, %s156
      %s178 = sphi 0, %s180
      %s181 = sphi 0, %s178
      %s182 = sphi 0, %s181
      %s198 = sphi 0, %s182
    $region4: #{decoder_forward.1} parent=1 // loop_header_branch
      %20 = sbr.rel (%p18) target = $region8
    $region5: #{decoder_forward.1} parent=1 // loop_body
      %s22 = ssub.s32 %s17, 1
      %s23 = ssub.s32 %s17, 2
      %s24 = sadd.s32 %s17, 1
      %s25 = ssub.s32 %s17, %s24
      %p26 = scmp.eq.s32.totalorder %s25, 0
      %s28 = sadd.s32 %s27, 1
      %s29 = scalar_select %p26, %s27, %s28
      %p32 = pneg %p26
      %p33 = scmp.eq.s32.totalorder %s17, 1
      %p34 = por %p32, %p33
      %p35 = scmp.ne.s32.totalorder %s27, %s30
      %p36 = scmp.eq.s32.totalorder %s17, 0
      %p37 = por %p35, %p36
      %p38 = scmp.ne.s32.totalorder %s27, %s30
      %p39 = scmp.eq.s32.totalorder %s22, 1
      %p40 = por %p38, %p39
      %p41 = scmp.ne.s32.totalorder %s30, %s31
      %p42 = scmp.eq.s32.totalorder %s22, 0
      %p43 = por %p41, %p42
      %p44 = scmp.ne.s32.totalorder %s30, %s31
      %p45 = scmp.eq.s32.totalorder %s23, 1
      %p46 = por %p44, %p45
      %p48 = scmp.ne.s32.totalorder %s31, %s47
      %p49 = scmp.eq.s32.totalorder %s23, 0
      %p50 = por %p48, %p49
      %s51 = ssub.s32 %s17, %s24
      %p52 = scmp.eq.s32.totalorder %s51, 0
      %s54 = sadd.s32 %s53, 1
      %s55 = scalar_select %p52, %s53, %s54
      %p58 = pneg %p52
      %p59 = scmp.eq.s32.totalorder %s17, 1
      %p60 = por %p58, %p59
      %p61 = scmp.ne.s32.totalorder %s53, %s56
      %p62 = scmp.eq.s32.totalorder %s17, 0
      %p63 = por %p61, %p62
      %p64 = scmp.ne.s32.totalorder %s53, %s56
      %p65 = scmp.eq.s32.totalorder %s22, 1
      %p66 = por %p64, %p65
      %p67 = scmp.ne.s32.totalorder %s56, %s57
      %p68 = scmp.eq.s32.totalorder %s22, 0
      %p69 = por %p67, %p68
      %p70 = scmp.ne.s32.totalorder %s56, %s57
      %p71 = scmp.eq.s32.totalorder %s23, 1
      %p72 = por %p70, %p71
      %p74 = scmp.ne.s32.totalorder %s57, %s73
      %p75 = scmp.eq.s32.totalorder %s23, 0
      %p76 = por %p74, %p75
      %s77 = ssub.s32 %s17, %s24
      %p78 = scmp.eq.s32.totalorder %s77, 0
      %s80 = sadd.s32 %s79, 1
      %s81 = scalar_select %p78, %s79, %s80
      %p84 = pneg %p78
      %p85 = scmp.eq.s32.totalorder %s17, 1
      %p86 = por %p84, %p85
      %p87 = scmp.ne.s32.totalorder %s79, %s82
      %p88 = scmp.eq.s32.totalorder %s17, 0
      %p89 = por %p87, %p88
      %p90 = scmp.ne.s32.totalorder %s79, %s82
      %p91 = scmp.eq.s32.totalorder %s22, 1
      %p92 = por %p90, %p91
      %p93 = scmp.ne.s32.totalorder %s82, %s83
      %p94 = scmp.eq.s32.totalorder %s22, 0
      %p95 = por %p93, %p94
      %p96 = scmp.ne.s32.totalorder %s82, %s83
      %p97 = scmp.eq.s32.totalorder %s23, 1
      %p98 = por %p96, %p97
      %p100 = scmp.ne.s32.totalorder %s83, %s99
      %p101 = scmp.eq.s32.totalorder %s23, 0
      %p102 = por %p100, %p101
      %s103 = ssub.s32 %s17, %s24
      %p104 = scmp.eq.s32.totalorder %s103, 0
      %s106 = sadd.s32 %s105, 1
      %s107 = scalar_select %p104, %s105, %s106
      %p110 = pneg %p104
      %p111 = scmp.eq.s32.totalorder %s17, 1
      %p112 = por %p110, %p111
      %p113 = scmp.ne.s32.totalorder %s105, %s108
      %p114 = scmp.eq.s32.totalorder %s17, 0
      %p115 = por %p113, %p114
      %p116 = scmp.ne.s32.totalorder %s105, %s108
      %p117 = scmp.eq.s32.totalorder %s22, 1
      %p118 = por %p116, %p117
      %p119 = scmp.ne.s32.totalorder %s108, %s109
      %p120 = scmp.eq.s32.totalorder %s22, 0
      %p121 = por %p119, %p120
      %p122 = scmp.ne.s32.totalorder %s108, %s109
      %p123 = scmp.eq.s32.totalorder %s23, 1
      %p124 = por %p122, %p123
      %p126 = scmp.ne.s32.totalorder %s109, %s125
      %p127 = scmp.eq.s32.totalorder %s23, 0
      %p128 = por %p126, %p127
      %s130 = sadd.s32 %s129, 1
      %p133 = scmp.eq.s32.totalorder %s17, 1
      %p134 = scmp.ne.s32.totalorder %s129, %s131
      %p135 = scmp.eq.s32.totalorder %s17, 0
      %p136 = por %p134, %p135
      %p137 = scmp.ne.s32.totalorder %s129, %s131
      %p138 = scmp.eq.s32.totalorder %s22, 1
      %p139 = por %p137, %p138
      %p140 = scmp.ne.s32.totalorder %s131, %s132
      %p141 = scmp.eq.s32.totalorder %s22, 0
      %p142 = por %p140, %p141
      %p143 = scmp.ne.s32.totalorder %s131, %s132
      %p144 = scmp.eq.s32.totalorder %s23, 1
      %p145 = por %p143, %p144
      %p147 = scmp.ne.s32.totalorder %s132, %s146
      %p148 = scmp.eq.s32.totalorder %s23, 0
      %p149 = por %p147, %p148
      %s150 = ssub.s32 %s17, %s24
      %p151 = scmp.eq.s32.totalorder %s150, 0
      %s153 = sadd.s32 %s152, 1
      %s154 = scalar_select %p151, %s152, %s153
      %p157 = pneg %p151
      %p158 = scmp.eq.s32.totalorder %s17, 1
      %p159 = por %p157, %p158
      %p160 = scmp.ne.s32.totalorder %s152, %s155
      %p161 = scmp.eq.s32.totalorder %s17, 0
      %p162 = por %p160, %p161
      %p163 = scmp.ne.s32.totalorder %s152, %s155
      %p164 = scmp.eq.s32.totalorder %s22, 1
      %p165 = por %p163, %p164
      %p166 = scmp.ne.s32.totalorder %s155, %s156
      %p167 = scmp.eq.s32.totalorder %s22, 0
      %p168 = por %p166, %p167
      %p169 = scmp.ne.s32.totalorder %s155, %s156
      %p170 = scmp.eq.s32.totalorder %s23, 1
      %p171 = por %p169, %p170
      %p173 = scmp.ne.s32.totalorder %s156, %s172
      %p174 = scmp.eq.s32.totalorder %s23, 0
      %p175 = por %p173, %p174
      %s176 = ssub.s32 %s17, %s24
      %p177 = scmp.eq.s32.totalorder %s176, 0
      %s179 = sadd.s32 %s178, 1
      %s180 = scalar_select %p177, %s178, %s179
      %p183 = pneg %p177
      %p184 = scmp.eq.s32.totalorder %s17, 1
      %p185 = por %p183, %p184
      %p186 = scmp.ne.s32.totalorder %s178, %s181
      %p187 = scmp.eq.s32.totalorder %s17, 0
      %p188 = por %p186, %p187
      %p189 = scmp.ne.s32.totalorder %s178, %s181
      %p190 = scmp.eq.s32.totalorder %s22, 1
      %p191 = por %p189, %p190
      %p192 = scmp.ne.s32.totalorder %s181, %s182
      %p193 = scmp.eq.s32.totalorder %s22, 0
      %p194 = por %p192, %p193
      %p195 = scmp.ne.s32.totalorder %s181, %s182
      %p196 = scmp.eq.s32.totalorder %s23, 1
      %p197 = por %p195, %p196
      %p199 = scmp.ne.s32.totalorder %s182, %s198
      %p200 = scmp.eq.s32.totalorder %s23, 0
      %p201 = por %p199, %p200
      %p202 = scmp.le.s32.totalorder 1, %s17
      %p203 = scmp.lt.s32.totalorder %s17, 3
      %p204 = pnand %p202, %p203
      %p205 = pneg %p204
      // Predicated region
      $region9: #{decoder_forward.1} parent=5 // pred_check
        _
      $region10: #{decoder_forward.1} parent=5 // pred_check_branch
        %207 = sbr.rel (%p204) target = $region12
      $region11: #{decoder_forward.1} parent=5 // pred_region
        %s208 = ssub.s32 %s17, 1
        // Predicated region
        $region13: #{decoder_forward.1} parent=11 // pred_check
          %p209 = pneg %p142
        $region14: #{decoder_forward.1} parent=11 // pred_check_branch
          %211 = sbr.rel (%p209) target = $region16
        $region15: #{decoder_forward.1} parent=11 // pred_region
          %213 = vsyncadd [#allocation3], 0
          %s214 = sshll.u32 %s4, 4
          %s215 = int_to_ptr.hbm [resolvable:$true] %s214
          %s216 = sshll.u32 [#allocation2], 4
          %s217 = int_to_ptr.vmem [resolvable:$true] %s216
          %222 = dma.hbm_to_vmem [thread:$0]  %s215, 9216, %s217, [#allocation3], 128, 128, 8
        $region16: #{decoder_forward.1} parent=11 // pred_fallthru
          _
      $region12: #{decoder_forward.1} parent=5 // pred_fallthru
        _
      %p223 = scmp.lt.s32.totalorder %s17, 2
      // Predicated region
      $region17: #{decoder_forward.1} parent=5 // pred_check
        %p224 = pneg %p223
      $region18: #{decoder_forward.1} parent=5 // pred_check_branch
        %226 = sbr.rel (%p224) target = $region20
      $region19: #{decoder_forward.1} parent=5 // pred_region
        // Predicated region
        $region21: #{decoder_forward.1} parent=19 // pred_check
          %p227 = pneg %p37
        $region22: #{decoder_forward.1} parent=19 // pred_check_branch
          %229 = sbr.rel (%p227) target = $region24
        $region23: #{decoder_forward.1} parent=19 // pred_region
          %p230 = scmp.lt.s32.totalorder %s17, 1
          %s231 = scalar_select %p230, %s17, 1
          %s232 = smul.addr %s231, 8
          %s233 = scalar_lea.vmem %s0, %s232
        $region24: #{decoder_forward.1} parent=19 // pred_fallthru
          _
        // Predicated region
        $region25: #{decoder_forward.1} parent=19 // pred_check
          %p234 = pneg %p63
        $region26: #{decoder_forward.1} parent=19 // pred_check_branch
          %236 = sbr.rel (%p234) target = $region28
        $region27: #{decoder_forward.1} parent=19 // pred_region
          %p237 = scmp.lt.s32.totalorder %s17, 1
          %s238 = scalar_select %p237, %s17, 1
          %s239 = smul.addr %s238, 8
          %s240 = scalar_lea.vmem %s1, %s239
        $region28: #{decoder_forward.1} parent=19 // pred_fallthru
          _
        // Predicated region
        $region29: #{decoder_forward.1} parent=19 // pred_check
          %p241 = pneg %p89
        $region30: #{decoder_forward.1} parent=19 // pred_check_branch
          %243 = sbr.rel (%p241) target = $region32
        $region31: #{decoder_forward.1} parent=19 // pred_region
          %p244 = scmp.lt.s32.totalorder %s17, 1
          %s245 = scalar_select %p244, %s17, 1
          %s246 = scalar_lea.vmem %s2, %s245
        $region32: #{decoder_forward.1} parent=19 // pred_fallthru
          _
        // Predicated region
        $region33: #{decoder_forward.1} parent=19 // pred_check
          %p247 = pneg %p115
        $region34: #{decoder_forward.1} parent=19 // pred_check_branch
          %249 = sbr.rel (%p247) target = $region36
        $region35: #{decoder_forward.1} parent=19 // pred_region
          %p250 = scmp.lt.s32.totalorder %s17, 1
          %s251 = scalar_select %p250, %s17, 1
          %s252 = scalar_lea.vmem %s3, %s251
        $region36: #{decoder_forward.1} parent=19 // pred_fallthru
          _
      $region20: #{decoder_forward.1} parent=5 // pred_fallthru
        _
      %p253 = scmp.le.s32.totalorder 1, %s17
      %p254 = scmp.lt.s32.totalorder %s17, 3
      %p255 = pnand %p253, %p254
      %p256 = pneg %p255
      // Predicated region
      $region37: #{decoder_forward.1} parent=5 // pred_check
        _
      $region38: #{decoder_forward.1} parent=5 // pred_check_branch
        %258 = sbr.rel (%p255) target = $region40
      $region39: #{decoder_forward.1} parent=5 // pred_region
        %s259 = ssub.s32 %s17, 1
        // Predicated region
        $region41: #{decoder_forward.1} parent=39 // pred_check
          %p260 = pneg %p142
        $region42: #{decoder_forward.1} parent=39 // pred_check_branch
          %262 = sbr.rel (%p260) target = $region44
        $region43: #{decoder_forward.1} parent=39 // pred_region
          %264 = dma.done [#allocation3], 9216
        $region44: #{decoder_forward.1} parent=39 // pred_fallthru
          _
        %p265 = scmp.lt.s32.totalorder %s22, 1
        %s266 = scalar_select %p265, %s22, 1
        %s267 = smul.addr %s266, 8
        %s268 = scalar_lea.vmem %s0, %s267
        %p269 = pneg %p43
        %p270 = pneg %p40
        %p271 = scmp.lt.s32.totalorder %s22, 1
        %s272 = scalar_select %p271, %s22, 1
        %s273 = smul.addr %s272, 8
        %s274 = scalar_lea.vmem %s1, %s273
        %p275 = pneg %p69
        %p276 = pneg %p66
        %p277 = scmp.lt.s32.totalorder %s22, 1
        %s278 = scalar_select %p277, %s22, 1
        %s279 = scalar_lea.vmem %s2, %s278
        %p280 = pneg %p95
        %p281 = pneg %p92
        %p282 = scmp.lt.s32.totalorder %s22, 1
        %s283 = scalar_select %p282, %s22, 1
        %s284 = scalar_lea.vmem %s3, %s283
        %p285 = pneg %p121
        %p286 = pneg %p118
        %p287 = pneg %p142
        %p288 = pneg %p139
        %p289 = pneg %p168
        %p290 = pneg %p165
        %s291 = sand.u32 %s155, 1
        %s292 = scalar_lea.sflag [#allocation4], %s291
        %s293 = sand.u32 %s155, 1
        %s294 = smul.addr %s293, 8
        %s295 = scalar_lea.vmem [#allocation5], %s294
        %p296 = pneg %p194
        %p297 = pneg %p191
        %p298 = scmp.lt.s32.totalorder %s22, 1
        %s299 = scalar_select %p298, %s22, 1
        %s300 = smul.addr %s299, 2
        %s301 = smul.addr %s300, 8
        %s302 = scalar_lea.vmem %s6, %s301
        %p303 = scmp.lt.s32.totalorder %s22, 1
        %s304 = scalar_select %p303, %s22, 1
        %s305 = smul.addr %s304, 8
        %s306 = scalar_lea.vmem %s0, %s305
        %p307 = scmp.lt.s32.totalorder %s22, 1
        %s308 = scalar_select %p307, %s22, 1
        %s309 = smul.addr %s308, 8
        %s310 = scalar_lea.vmem %s1, %s309
        %p311 = scmp.lt.s32.totalorder %s22, 1
        %s312 = scalar_select %p311, %s22, 1
        %s313 = scalar_lea.vmem %s2, %s312
        %p314 = scmp.lt.s32.totalorder %s22, 1
        %s315 = scalar_select %p314, %s22, 1
        %s316 = scalar_lea.vmem %s3, %s315
        %p317 = scmp.lt.s32.totalorder %s22, 1
        %s318 = scalar_select %p317, %s22, 1
        %s319 = smul.addr %s318, 2
        %s320 = smul.addr %s319, 8
        %s321 = scalar_lea.vmem %s6, %s320
        %v322 = vld [vmem:[%s306] sm:$0xff]
        %v323 = vld [vmem:[%s310] sm:$0xff]
        %v324 = vld [vmem:[%s313] sm:$0x1]
        %v325 = vld [vmem:[%s316] sm:$0x1]
        %v326 = vld [vmem:[#allocation2 + $0x1f4] sm:$0xff]
        %v327 = vld [vmem:[#allocation2 + $0x1fc] sm:$0xff]
        %v328 = vld [vmem:[#allocation2 + $0x204] sm:$0xff]
        %v329 = vld [vmem:[#allocation2 + $0x20c] sm:$0xff]
        %v330 = vld [vmem:[#allocation2 + $0x214] sm:$0xff]
        %v331 = vld [vmem:[#allocation2 + $0x21c] sm:$0xff]
        %v332 = vld [vmem:[#allocation2 + $0x224] sm:$0xff]
        %v333 = vld [vmem:[#allocation2 + $0x22c] sm:$0xff]
        %v334 = vld [vmem:[#allocation2 + $0x234] sm:$0x1]
        %v335 = vld [vmem:[#allocation2 + $0x235] sm:$0x1]
        %v336 = vld [vmem:[#allocation2 + $0x236] sm:$0x1]
        %v337 = vld [vmem:[#allocation2 + $0x237] sm:$0xff]
        %v338 = vld [vmem:[#allocation2 + $0x1d4] sm:$0xff]
        %v339 = vld [vmem:[#allocation2 + $0x1dc] sm:$0xff]
        %v340 = vld [vmem:[#allocation2 + $0x1e4] sm:$0xff]
        %v341 = vld [vmem:[#allocation2 + $0x1ec] sm:$0xff]
        %v342 = vperm.slane %v334, 0
        %vm343 = vcmask 523264
        %v345 = vsel %vm343, %v322, 0
        %347 = vmatpush.msra.mxu0 0.0
        %348 = vmatpush.msra.mxu0 0.0
        %349 = vmatpush.msra.mxu0 0.0
        %350 = vmatpush.msra.mxu0 0.0
        %351 = vmatpush.msra.mxu0 0.0
        %352 = vmatpush.msra.mxu0 0.0
        %353 = vmatpush.msra.mxu0 0.0
        %354 = vmatpush.msra.mxu0 0.0
        %355 = vmatpush.msra.mxu0 %v333
        %356 = vmatpush.msra.mxu0 %v332
        %357 = vmatpush.msra.mxu0 %v331
        %358 = vmatpush.msra.mxu0 %v330
        %359 = vmatpush.msra.mxu0 %v329
        %360 = vmatpush.msra.mxu0 %v328
        %361 = vmatpush.msra.mxu0 %v327
        %362 = vmatpush.msra.mxu0 %v326
        %363 = vmatmul.f32.gmra.mxu0 %v345
        %v364 = vpop.f32.mrf.mxu0
        %v365 = vadd.f32 %v342, %v364
        %366 = vdwg.mxu0
        %v367 = vadd.f32 %v365, %v337
        %v368 = vlaneseq
        %v369 = vshrl.u32 %v368, 7
        %v370 = vlaneseq
        %v371 = vand.u32 %v370, 127
        %vm372 = vcmp.gt.s32.totalorder %v371, %v369
        %v373 = vsel %vm372, -1e+09, 0.0
        %v375 = vperm.slane %v324, 0
        %v377 = vadd.f32 %v373, %v375
        %v378 = vld [vmem:[#allocation2] sm:$0xff]
        %v379 = vld [vmem:[#allocation2 + $0x8] sm:$0xff]
        %v380 = vld [vmem:[#allocation2 + $0x10] sm:$0xff]
        %v381 = vld [vmem:[#allocation2 + $0x18] sm:$0xff]
        %v382 = vld [vmem:[#allocation2 + $0x20] sm:$0x1]
        %v383 = vld [vmem:[#allocation2 + $0x21] sm:$0xff]
        %v384 = vld [vmem:[#allocation2 + $0x29] sm:$0xff]
        %v385 = vld [vmem:[#allocation2 + $0x31] sm:$0xff]
        %v386 = vld [vmem:[#allocation2 + $0x39] sm:$0xff]
        %v387 = vld [vmem:[#allocation2 + $0x41] sm:$0x1]
        %v388 = vld [vmem:[#allocation2 + $0x42] sm:$0xff]
        %v389 = vld [vmem:[#allocation2 + $0x4a] sm:$0xff]
        %v390 = vld [vmem:[#allocation2 + $0x52] sm:$0xff]
        %v391 = vld [vmem:[#allocation2 + $0x5a] sm:$0xff]
        %v392 = vld [vmem:[#allocation2 + $0x62] sm:$0x1]
        %v393 = vld [vmem:[#allocation2 + $0x63] sm:$0xff]
        %v394 = vld [vmem:[#allocation2 + $0x6b] sm:$0xff]
        %v395 = vld [vmem:[#allocation2 + $0x73] sm:$0xff]
        %v396 = vld [vmem:[#allocation2 + $0x7b] sm:$0xff]
        %v397 = vld [vmem:[#allocation2 + $0x83] sm:$0xff]
        %v398 = vld [vmem:[#allocation2 + $0x8b] sm:$0xff]
        %v399 = vld [vmem:[#allocation2 + $0x93] sm:$0xff]
        %v400 = vld [vmem:[#allocation2 + $0x9b] sm:$0xff]
        %v401 = vld [vmem:[#allocation2 + $0xa3] sm:$0xff]
        %v402 = vld [vmem:[#allocation2 + $0xab] sm:$0xff]
        %v403 = vld [vmem:[#allocation2 + $0xb3] sm:$0xff]
        %v404 = vld [vmem:[#allocation2 + $0xbb] sm:$0xff]
        %v405 = vld [vmem:[#allocation2 + $0xc3] sm:$0xff]
        %v406 = vld [vmem:[#allocation2 + $0xcb] sm:$0xff]
        %v407 = vld [vmem:[#allocation2 + $0xd3] sm:$0xff]
        %v408 = vld [vmem:[#allocation2 + $0xdb] sm:$0xff]
        %v409 = vld [vmem:[#allocation2 + $0xe3] sm:$0x1]
        %v410 = vld [vmem:[#allocation2 + $0xe4] sm:$0x7]
        %v411 = vld [vmem:[#allocation2 + $0xe7] sm:$0x7]
        %v412 = vperm.slane %v382, 0
        %vm413 = vcmask 261120
        %v415 = vsel %vm413, %v367, 0
        %417 = vmatpush.msra.mxu0 0.0
        %418 = vmatpush.msra.mxu0 0.0
        %419 = vmatpush.msra.mxu0 0.0
        %420 = vmatpush.msra.mxu0 0.0
        %421 = vmatpush.msra.mxu0 0.0
        %422 = vmatpush.msra.mxu0 0.0
        %423 = vmatpush.msra.mxu0 0.0
        %424 = vmatpush.msra.mxu0 0.0
        %425 = vmatpush.msra.mxu0 0.0
        %426 = vmatpush.msra.mxu0 0.0
        %427 = vmatpush.msra.mxu0 0.0
        %428 = vmatpush.msra.mxu0 0.0
        %429 = vmatpush.msra.mxu0 %v381
        %430 = vmatpush.msra.mxu0 %v380
        %431 = vmatpush.msra.mxu0 %v379
        %432 = vmatpush.msra.mxu0 %v378
        %433 = vmatmul.f32.gmra.mxu0 %v415
        %v434 = vpop.f32.mrf.mxu0
        %v435 = vadd.f32 %v412, %v434
        %436 = vdwg.mxu0
        %438 = vrot.lane.b32.xlu0 %v435, 120
        %v439 = vpop.permute.xlu0 %438
        %440 = vrot.lane.b32.xlu0 %v435, 112
        %v441 = vpop.permute.xlu0 %440
        %442 = vrot.lane.b32.xlu0 %v435, 104
        %v443 = vpop.permute.xlu0 %442
        %444 = vrot.lane.b32.xlu0 %v435, 96
        %v445 = vpop.permute.xlu0 %444
        %vm446 = vcmask 64512
        %v447 = vsel %vm446, %v435, 0
        %v449 = vsel %vm446, %v445, 0
        %451 = vmatpush.xpose.msra.mxu0 0.0
        %452 = vmatpush.xpose.msra.mxu0 0.0
        %453 = vmatpush.xpose.msra.mxu0 0.0
        %454 = vmatpush.xpose.msra.mxu0 0.0
        %455 = vmatpush.xpose.msra.mxu0 0.0
        %456 = vmatpush.xpose.msra.mxu0 0.0
        %457 = vmatpush.xpose.msra.mxu0 0.0
        %458 = vmatpush.xpose.msra.mxu0 0.0
        %459 = vmatpush.xpose.msra.mxu0 0.0
        %460 = vmatpush.xpose.msra.mxu0 0.0
        %461 = vmatpush.xpose.msra.mxu0 0.0
        %462 = vmatpush.xpose.msra.mxu0 0.0
        %463 = vmatpush.xpose.msra.mxu0 0.0
        %464 = vmatpush.xpose.msra.mxu0 0.0
        %465 = vmatpush.xpose.msra.mxu0 0.0
        %466 = vmatpush.xpose.msra.mxu0 %v449
        %467 = vmatmul.f32.gmra.mxu0 %v447
        %v468 = vpop.f32.mrf.mxu0
        %v469 = vadd.f32 %v377, %v468
        %470 = vdwg.mxu0
        %471 = vrot.lane.b32.xlu0 %v439, 96
        %v472 = vpop.permute.xlu0 %471
        %v473 = vsel %vm446, %v439, 0
        %v475 = vsel %vm446, %v472, 0
        %477 = vmatpush.xpose.msra.mxu0 0.0
        %478 = vmatpush.xpose.msra.mxu0 0.0
        %479 = vmatpush.xpose.msra.mxu0 0.0
        %480 = vmatpush.xpose.msra.mxu0 0.0
        %481 = vmatpush.xpose.msra.mxu0 0.0
        %482 = vmatpush.xpose.msra.mxu0 0.0
        %483 = vmatpush.xpose.msra.mxu0 0.0
        %484 = vmatpush.xpose.msra.mxu0 0.0
        %485 = vmatpush.xpose.msra.mxu0 0.0
        %486 = vmatpush.xpose.msra.mxu0 0.0
        %487 = vmatpush.xpose.msra.mxu0 0.0
        %488 = vmatpush.xpose.msra.mxu0 0.0
        %489 = vmatpush.xpose.msra.mxu0 0.0
        %490 = vmatpush.xpose.msra.mxu0 0.0
        %491 = vmatpush.xpose.msra.mxu0 0.0
        %492 = vmatpush.xpose.msra.mxu0 %v475
        %493 = vmatmul.f32.gmra.mxu0 %v473
        %v494 = vpop.f32.mrf.mxu0
        %v495 = vadd.f32 %v377, %v494
        %496 = vdwg.mxu0
        %497 = vrot.lane.b32.xlu0 %v441, 96
        %v498 = vpop.permute.xlu0 %497
        %v499 = vsel %vm446, %v441, 0
        %v501 = vsel %vm446, %v498, 0
        %503 = vmatpush.xpose.msra.mxu0 0.0
        %504 = vmatpush.xpose.msra.mxu0 0.0
        %505 = vmatpush.xpose.msra.mxu0 0.0
        %506 = vmatpush.xpose.msra.mxu0 0.0
        %507 = vmatpush.xpose.msra.mxu0 0.0
        %508 = vmatpush.xpose.msra.mxu0 0.0
        %509 = vmatpush.xpose.msra.mxu0 0.0
        %510 = vmatpush.xpose.msra.mxu0 0.0
        %511 = vmatpush.xpose.msra.mxu0 0.0
        %512 = vmatpush.xpose.msra.mxu0 0.0
        %513 = vmatpush.xpose.msra.mxu0 0.0
        %514 = vmatpush.xpose.msra.mxu0 0.0
        %515 = vmatpush.xpose.msra.mxu0 0.0
        %516 = vmatpush.xpose.msra.mxu0 0.0
        %517 = vmatpush.xpose.msra.mxu0 0.0
        %518 = vmatpush.xpose.msra.mxu0 %v501
        %519 = vmatmul.f32.gmra.mxu0 %v499
        %v520 = vpop.f32.mrf.mxu0
        %v521 = vadd.f32 %v377, %v520
        %522 = vdwg.mxu0
        %523 = vrot.lane.b32.xlu0 %v443, 96
        %v524 = vpop.permute.xlu0 %523
        %v525 = vsel %vm446, %v443, 0
        %v527 = vsel %vm446, %v524, 0
        %529 = vmatpush.xpose.msra.mxu0 0.0
        %530 = vmatpush.xpose.msra.mxu0 0.0
        %531 = vmatpush.xpose.msra.mxu0 0.0
        %532 = vmatpush.xpose.msra.mxu0 0.0
        %533 = vmatpush.xpose.msra.mxu0 0.0
        %534 = vmatpush.xpose.msra.mxu0 0.0
        %535 = vmatpush.xpose.msra.mxu0 0.0
        %536 = vmatpush.xpose.msra.mxu0 0.0
        %537 = vmatpush.xpose.msra.mxu0 0.0
        %538 = vmatpush.xpose.msra.mxu0 0.0
        %539 = vmatpush.xpose.msra.mxu0 0.0
        %540 = vmatpush.xpose.msra.mxu0 0.0
        %541 = vmatpush.xpose.msra.mxu0 0.0
        %542 = vmatpush.xpose.msra.mxu0 0.0
        %543 = vmatpush.xpose.msra.mxu0 0.0
        %544 = vmatpush.xpose.msra.mxu0 %v527
        %545 = vmatmul.f32.gmra.mxu0 %v525
        %v546 = vpop.f32.mrf.mxu0
        %v547 = vadd.f32 %v377, %v546
        %548 = vdwg.mxu0
        %v549 = vsel %vm446, %v469, -inf
        %550 = vmax.xlane.f32.xlu0 %v549
        %v551 = vpop.xlane.xlu0 %550
        %v552 = vsel %vm446, %v495, -inf
        %553 = vmax.xlane.f32.xlu0 %v552
        %v554 = vpop.xlane.xlu0 %553
        %v555 = vsel %vm446, %v521, -inf
        %556 = vmax.xlane.f32.xlu0 %v555
        %v557 = vpop.xlane.xlu0 %556
        %v558 = vsel %vm446, %v547, -inf
        %559 = vmax.xlane.f32.xlu0 %v558
        %v560 = vpop.xlane.xlu0 %559
        %v561 = vsub.f32 %v469, %v551
        %v562 = vsub.f32 %v495, %v554
        %v563 = vsub.f32 %v521, %v557
        %v564 = vsub.f32 %v547, %v560
        %v565 = vmul.f32 %v561, 1.442695
        %v566 = vpow.pop %v565
        %v567 = vmul.f32 %v562, 1.442695
        %v568 = vpow.pop %v567
        %v569 = vmul.f32 %v563, 1.442695
        %v570 = vpow.pop %v569
        %v571 = vmul.f32 %v564, 1.442695
        %v572 = vpow.pop %v571
        %v573 = vsel %vm446, %v566, 0.0
        %574 = vadd.xlane.f32.xlu0 %v573
        %v575 = vpop.xlane.xlu0 %574
        %v576 = vsel %vm446, %v568, 0.0
        %577 = vadd.xlane.f32.xlu0 %v576
        %v578 = vpop.xlane.xlu0 %577
        %v579 = vsel %vm446, %v570, 0.0
        %580 = vadd.xlane.f32.xlu0 %v579
        %v581 = vpop.xlane.xlu0 %580
        %v582 = vsel %vm446, %v572, 0.0
        %583 = vadd.xlane.f32.xlu0 %v582
        %v584 = vpop.xlane.xlu0 %583
        %v585 = vrcp.pop %v575
        %v586 = vrcp.pop %v578
        %v587 = vrcp.pop %v581
        %v588 = vrcp.pop %v584
        %v589 = vmul.f32 %v566, %v585
        %v590 = vmul.f32 %v568, %v586
        %v591 = vmul.f32 %v570, %v587
        %v592 = vmul.f32 %v572, %v588
        %593 = vrot.lane.b32.xlu0 %v435, 64
        %v594 = vpop.permute.xlu0 %593
        %v597 = vsel %vm446, %v589, 0
        %599 = vmatpush.msra.mxu0 0.0
        %600 = vmatpush.msra.mxu0 0.0
        %601 = vmatpush.msra.mxu0 0.0
        %602 = vmatpush.msra.mxu0 0.0
        %603 = vmatpush.msra.mxu0 0.0
        %604 = vmatpush.msra.mxu0 0.0
        %605 = vmatpush.msra.mxu0 0.0
        %606 = vmatpush.msra.mxu0 0.0
        %607 = vmatpush.msra.mxu0 0.0
        %608 = vmatpush.msra.mxu0 0.0
        %609 = vmatpush.msra.mxu0 0.0
        %610 = vmatpush.msra.mxu0 0.0
        %611 = vmatpush.msra.mxu0 0.0
        %612 = vmatpush.msra.mxu0 0.0
        %613 = vmatpush.msra.mxu0 0.0
        %614 = vmatpush.msra.mxu0 %v594
        %615 = vmatmul.f32.gmra.mxu0 %v597
        %v616 = vpop.f32.mrf.mxu0
        %v617 = vadd.f32 0.0, %v616
        %618 = vdwg.mxu0
        %619 = vrot.lane.b32.xlu0 %v439, 64
        %v620 = vpop.permute.xlu0 %619
        %v623 = vsel %vm446, %v590, 0
        %625 = vmatpush.msra.mxu0 0.0
        %626 = vmatpush.msra.mxu0 0.0
        %627 = vmatpush.msra.mxu0 0.0
        %628 = vmatpush.msra.mxu0 0.0
        %629 = vmatpush.msra.mxu0 0.0
        %630 = vmatpush.msra.mxu0 0.0
        %631 = vmatpush.msra.mxu0 0.0
        %632 = vmatpush.msra.mxu0 0.0
        %633 = vmatpush.msra.mxu0 0.0
        %634 = vmatpush.msra.mxu0 0.0
        %635 = vmatpush.msra.mxu0 0.0
        %636 = vmatpush.msra.mxu0 0.0
        %637 = vmatpush.msra.mxu0 0.0
        %638 = vmatpush.msra.mxu0 0.0
        %639 = vmatpush.msra.mxu0 0.0
        %640 = vmatpush.msra.mxu0 %v620
        %641 = vmatmul.f32.gmra.mxu0 %v623
        %v642 = vpop.f32.mrf.mxu0
        %v643 = vadd.f32 0.0, %v642
        %644 = vdwg.mxu0
        %645 = vrot.lane.b32.xlu0 %v441, 64
        %v646 = vpop.permute.xlu0 %645
        %v649 = vsel %vm446, %v591, 0
        %651 = vmatpush.msra.mxu0 0.0
        %652 = vmatpush.msra.mxu0 0.0
        %653 = vmatpush.msra.mxu0 0.0
        %654 = vmatpush.msra.mxu0 0.0
        %655 = vmatpush.msra.mxu0 0.0
        %656 = vmatpush.msra.mxu0 0.0
        %657 = vmatpush.msra.mxu0 0.0
        %658 = vmatpush.msra.mxu0 0.0
        %659 = vmatpush.msra.mxu0 0.0
        %660 = vmatpush.msra.mxu0 0.0
        %661 = vmatpush.msra.mxu0 0.0
        %662 = vmatpush.msra.mxu0 0.0
        %663 = vmatpush.msra.mxu0 0.0
        %664 = vmatpush.msra.mxu0 0.0
        %665 = vmatpush.msra.mxu0 0.0
        %666 = vmatpush.msra.mxu0 %v646
        %667 = vmatmul.f32.gmra.mxu0 %v649
        %v668 = vpop.f32.mrf.mxu0
        %v669 = vadd.f32 0.0, %v668
        %670 = vdwg.mxu0
        %671 = vrot.lane.b32.xlu0 %v443, 64
        %v672 = vpop.permute.xlu0 %671
        %v675 = vsel %vm446, %v592, 0
        %677 = vmatpush.msra.mxu0 0.0
        %678 = vmatpush.msra.mxu0 0.0
        %679 = vmatpush.msra.mxu0 0.0
        %680 = vmatpush.msra.mxu0 0.0
        %681 = vmatpush.msra.mxu0 0.0
        %682 = vmatpush.msra.mxu0 0.0
        %683 = vmatpush.msra.mxu0 0.0
        %684 = vmatpush.msra.mxu0 0.0
        %685 = vmatpush.msra.mxu0 0.0
        %686 = vmatpush.msra.mxu0 0.0
        %687 = vmatpush.msra.mxu0 0.0
        %688 = vmatpush.msra.mxu0 0.0
        %689 = vmatpush.msra.mxu0 0.0
        %690 = vmatpush.msra.mxu0 0.0
        %691 = vmatpush.msra.mxu0 0.0
        %692 = vmatpush.msra.mxu0 %v672
        %693 = vmatmul.f32.gmra.mxu0 %v675
        %v694 = vpop.f32.mrf.mxu0
        %v695 = vadd.f32 0.0, %v694
        %696 = vdwg.mxu0
        %698 = vrot.lane.b32.xlu0 %v643, 8
        %v699 = vpop.permute.xlu0 %698
        %702 = vrot.lane.b32.xlu0 %v669, 16
        %v703 = vpop.permute.xlu0 %702
        %706 = vrot.lane.b32.xlu0 %v695, 24
        %v707 = vpop.permute.xlu0 %706
        %v709 = vsel %vm446, %v617, %v699
        %vm710 = vcmask 130048
        %v711 = vsel %vm710, %v709, %v703
        %vm712 = vcmask 195584
        %v713 = vsel %vm712, %v711, %v707
        %718 = vrot.lane.b32.xlu0 %v378, 32
        %v719 = vpop.permute.xlu0 %718
        %720 = vrot.lane.b32.xlu0 %v379, 32
        %v721 = vpop.permute.xlu0 %720
        %722 = vrot.lane.b32.xlu0 %v380, 32
        %v723 = vpop.permute.xlu0 %722
        %724 = vrot.lane.b32.xlu0 %v381, 32
        %v725 = vpop.permute.xlu0 %724
        %731 = vrot.lane.b32.xlu0 %v412, 32
        %v732 = vpop.permute.xlu0 %731
        %v735 = vsel %vm413, %v713, 0
        %737 = vmatpush.msra.mxu0 0.0
        %738 = vmatpush.msra.mxu0 0.0
        %739 = vmatpush.msra.mxu0 0.0
        %740 = vmatpush.msra.mxu0 0.0
        %741 = vmatpush.msra.mxu0 0.0
        %742 = vmatpush.msra.mxu0 0.0
        %743 = vmatpush.msra.mxu0 0.0
        %744 = vmatpush.msra.mxu0 0.0
        %745 = vmatpush.msra.mxu0 0.0
        %746 = vmatpush.msra.mxu0 0.0
        %747 = vmatpush.msra.mxu0 0.0
        %748 = vmatpush.msra.mxu0 0.0
        %749 = vmatpush.msra.mxu0 %v725
        %750 = vmatpush.msra.mxu0 %v723
        %751 = vmatpush.msra.mxu0 %v721
        %752 = vmatpush.msra.mxu0 %v719
        %753 = vmatmul.f32.gmra.mxu0 %v735
        %v754 = vpop.f32.mrf.mxu0
        %v755 = vadd.f32 %v732, %v754
        %756 = vdwg.mxu0
        %v757 = vadd.f32 %v367, %v755
        %v758 = vsel %vm413, %v757, 0.0
        %759 = vadd.xlane.f32.xlu0 %v758
        %v760 = vpop.xlane.xlu0 %759
        %v761 = vrcp.pop 32.0
        %v762 = vmul.f32 32.0, %v761
        %v763 = vsub.f32 1.0, %v762
        %v764 = vmul.f32 %v761, %v763
        %v765 = vadd.f32 %v761, %v764
        %vm766 = vweird.f32 %v761
        %v767 = vsel %vm766, %v761, %v765
        %v768 = vmul.f32 %v760, %v767
        %v769 = vsub.f32 %v757, %v768
        %v770 = vmul.f32 %v769, %v769
        %v771 = vsel %vm413, %v770, 0.0
        %772 = vadd.xlane.f32.xlu0 %v771
        %v773 = vpop.xlane.xlu0 %772
        %v774 = vmul.f32 %v773, %v767
        %v775 = vadd.f32 %v774, 1e-05
        %v776 = vrsqrt.pop %v775
        %v777 = vmul.f32 %v776, %v775
        %v778 = vmul.f32 %v777, %v776
        %v779 = vmul.f32 0.5, %v778
        %v780 = vsub.f32 1.5, %v779
        %v781 = vmul.f32 %v776, %v780
        %vm782 = vweird.f32 %v775
        %vm783 = vweird.f32 %v776
        %vm784 = vmor %vm782, %vm783
        %v785 = vsel %vm784, %v776, %v781
        %v786 = vmul.f32 %v769, %v785
        %v787 = vperm.slane %v410, 0
        %v788 = vmul.f32 %v786, %v787
        %v789 = vperm.slane %v411, 0
        %v790 = vadd.f32 %v788, %v789
        %v791 = vperm.slane %v387, 0
        %v793 = vsel %vm413, %v790, 0
        %795 = vmatpush.msra.mxu0 0.0
        %796 = vmatpush.msra.mxu0 0.0
        %797 = vmatpush.msra.mxu0 0.0
        %798 = vmatpush.msra.mxu0 0.0
        %799 = vmatpush.msra.mxu0 0.0
        %800 = vmatpush.msra.mxu0 0.0
        %801 = vmatpush.msra.mxu0 0.0
        %802 = vmatpush.msra.mxu0 0.0
        %803 = vmatpush.msra.mxu0 0.0
        %804 = vmatpush.msra.mxu0 0.0
        %805 = vmatpush.msra.mxu0 0.0
        %806 = vmatpush.msra.mxu0 0.0
        %807 = vmatpush.msra.mxu0 %v386
        %808 = vmatpush.msra.mxu0 %v385
        %809 = vmatpush.msra.mxu0 %v384
        %810 = vmatpush.msra.mxu0 %v383
        %811 = vmatmul.f32.gmra.mxu0 %v793
        %v812 = vpop.f32.mrf.mxu0
        %v813 = vadd.f32 %v791, %v812
        %814 = vdwg.mxu0
        %819 = vrot.lane.b32.xlu0 %v383, 96
        %v820 = vpop.permute.xlu0 %819
        %821 = vrot.lane.b32.xlu0 %v384, 96
        %v822 = vpop.permute.xlu0 %821
        %823 = vrot.lane.b32.xlu0 %v385, 96
        %v824 = vpop.permute.xlu0 %823
        %825 = vrot.lane.b32.xlu0 %v386, 96
        %v826 = vpop.permute.xlu0 %825
        %832 = vrot.lane.b32.xlu0 %v791, 96
        %v833 = vpop.permute.xlu0 %832
        %v836 = vsel %vm413, %v323, 0
        %838 = vmatpush.msra.mxu0 0.0
        %839 = vmatpush.msra.mxu0 0.0
        %840 = vmatpush.msra.mxu0 0.0
        %841 = vmatpush.msra.mxu0 0.0
        %842 = vmatpush.msra.mxu0 0.0
        %843 = vmatpush.msra.mxu0 0.0
        %844 = vmatpush.msra.mxu0 0.0
        %845 = vmatpush.msra.mxu0 0.0
        %846 = vmatpush.msra.mxu0 0.0
        %847 = vmatpush.msra.mxu0 0.0
        %848 = vmatpush.msra.mxu0 0.0
        %849 = vmatpush.msra.mxu0 0.0
        %850 = vmatpush.msra.mxu0 %v826
        %851 = vmatpush.msra.mxu0 %v824
        %852 = vmatpush.msra.mxu0 %v822
        %853 = vmatpush.msra.mxu0 %v820
        %854 = vmatmul.f32.gmra.mxu0 %v836
        %v855 = vpop.f32.mrf.mxu0
        %v856 = vadd.f32 %v833, %v855
        %857 = vdwg.mxu0
        %859 = vrot.lane.b32.xlu0 %v813, 120
        %v860 = vpop.permute.xlu0 %859
        %861 = vrot.lane.b32.xlu0 %v813, 112
        %v862 = vpop.permute.xlu0 %861
        %863 = vrot.lane.b32.xlu0 %v813, 104
        %v864 = vpop.permute.xlu0 %863
        %866 = vrot.lane.b32.xlu0 %v856, 120
        %v867 = vpop.permute.xlu0 %866
        %868 = vrot.lane.b32.xlu0 %v856, 112
        %v869 = vpop.permute.xlu0 %868
        %870 = vrot.lane.b32.xlu0 %v856, 104
        %v871 = vpop.permute.xlu0 %870
        %v873 = vperm.slane %v325, 0
        %v875 = vsel %vm446, %v813, 0
        %v877 = vsel %vm446, %v856, 0
        %879 = vmatpush.xpose.msra.mxu0 0.0
        %880 = vmatpush.xpose.msra.mxu0 0.0
        %881 = vmatpush.xpose.msra.mxu0 0.0
        %882 = vmatpush.xpose.msra.mxu0 0.0
        %883 = vmatpush.xpose.msra.mxu0 0.0
        %884 = vmatpush.xpose.msra.mxu0 0.0
        %885 = vmatpush.xpose.msra.mxu0 0.0
        %886 = vmatpush.xpose.msra.mxu0 0.0
        %887 = vmatpush.xpose.msra.mxu0 0.0
        %888 = vmatpush.xpose.msra.mxu0 0.0
        %889 = vmatpush.xpose.msra.mxu0 0.0
        %890 = vmatpush.xpose.msra.mxu0 0.0
        %891 = vmatpush.xpose.msra.mxu0 0.0
        %892 = vmatpush.xpose.msra.mxu0 0.0
        %893 = vmatpush.xpose.msra.mxu0 0.0
        %894 = vmatpush.xpose.msra.mxu0 %v877
        %895 = vmatmul.f32.gmra.mxu0 %v875
        %v896 = vpop.f32.mrf.mxu0
        %v897 = vadd.f32 %v873, %v896
        %898 = vdwg.mxu0
        %v899 = vsel %vm446, %v860, 0
        %v901 = vsel %vm446, %v867, 0
        %903 = vmatpush.xpose.msra.mxu0 0.0
        %904 = vmatpush.xpose.msra.mxu0 0.0
        %905 = vmatpush.xpose.msra.mxu0 0.0
        %906 = vmatpush.xpose.msra.mxu0 0.0
        %907 = vmatpush.xpose.msra.mxu0 0.0
        %908 = vmatpush.xpose.msra.mxu0 0.0
        %909 = vmatpush.xpose.msra.mxu0 0.0
        %910 = vmatpush.xpose.msra.mxu0 0.0
        %911 = vmatpush.xpose.msra.mxu0 0.0
        %912 = vmatpush.xpose.msra.mxu0 0.0
        %913 = vmatpush.xpose.msra.mxu0 0.0
        %914 = vmatpush.xpose.msra.mxu0 0.0
        %915 = vmatpush.xpose.msra.mxu0 0.0
        %916 = vmatpush.xpose.msra.mxu0 0.0
        %917 = vmatpush.xpose.msra.mxu0 0.0
        %918 = vmatpush.xpose.msra.mxu0 %v901
        %919 = vmatmul.f32.gmra.mxu0 %v899
        %v920 = vpop.f32.mrf.mxu0
        %v921 = vadd.f32 %v873, %v920
        %922 = vdwg.mxu0
        %v923 = vsel %vm446, %v862, 0
        %v925 = vsel %vm446, %v869, 0
        %927 = vmatpush.xpose.msra.mxu0 0.0
        %928 = vmatpush.xpose.msra.mxu0 0.0
        %929 = vmatpush.xpose.msra.mxu0 0.0
        %930 = vmatpush.xpose.msra.mxu0 0.0
        %931 = vmatpush.xpose.msra.mxu0 0.0
        %932 = vmatpush.xpose.msra.mxu0 0.0
        %933 = vmatpush.xpose.msra.mxu0 0.0
        %934 = vmatpush.xpose.msra.mxu0 0.0
        %935 = vmatpush.xpose.msra.mxu0 0.0
        %936 = vmatpush.xpose.msra.mxu0 0.0
        %937 = vmatpush.xpose.msra.mxu0 0.0
        %938 = vmatpush.xpose.msra.mxu0 0.0
        %939 = vmatpush.xpose.msra.mxu0 0.0
        %940 = vmatpush.xpose.msra.mxu0 0.0
        %941 = vmatpush.xpose.msra.mxu0 0.0
        %942 = vmatpush.xpose.msra.mxu0 %v925
        %943 = vmatmul.f32.gmra.mxu0 %v923
        %v944 = vpop.f32.mrf.mxu0
        %v945 = vadd.f32 %v873, %v944
        %946 = vdwg.mxu0
        %v947 = vsel %vm446, %v864, 0
        %v949 = vsel %vm446, %v871, 0
        %951 = vmatpush.xpose.msra.mxu0 0.0
        %952 = vmatpush.xpose.msra.mxu0 0.0
        %953 = vmatpush.xpose.msra.mxu0 0.0
        %954 = vmatpush.xpose.msra.mxu0 0.0
        %955 = vmatpush.xpose.msra.mxu0 0.0
        %956 = vmatpush.xpose.msra.mxu0 0.0
        %957 = vmatpush.xpose.msra.mxu0 0.0
        %958 = vmatpush.xpose.msra.mxu0 0.0
        %959 = vmatpush.xpose.msra.mxu0 0.0
        %960 = vmatpush.xpose.msra.mxu0 0.0
        %961 = vmatpush.xpose.msra.mxu0 0.0
        %962 = vmatpush.xpose.msra.mxu0 0.0
        %963 = vmatpush.xpose.msra.mxu0 0.0
        %964 = vmatpush.xpose.msra.mxu0 0.0
        %965 = vmatpush.xpose.msra.mxu0 0.0
        %966 = vmatpush.xpose.msra.mxu0 %v949
        %967 = vmatmul.f32.gmra.mxu0 %v947
        %v968 = vpop.f32.mrf.mxu0
        %v969 = vadd.f32 %v873, %v968
        %970 = vdwg.mxu0
        %v971 = vsel %vm446, %v897, -inf
        %972 = vmax.xlane.f32.xlu0 %v971
        %v973 = vpop.xlane.xlu0 %972
        %v974 = vsel %vm446, %v921, -inf
        %975 = vmax.xlane.f32.xlu0 %v974
        %v976 = vpop.xlane.xlu0 %975
        %v977 = vsel %vm446, %v945, -inf
        %978 = vmax.xlane.f32.xlu0 %v977
        %v979 = vpop.xlane.xlu0 %978
        %v980 = vsel %vm446, %v969, -inf
        %981 = vmax.xlane.f32.xlu0 %v980
        %v982 = vpop.xlane.xlu0 %981
        %v983 = vsub.f32 %v897, %v973
        %v984 = vsub.f32 %v921, %v976
        %v985 = vsub.f32 %v945, %v979
        %v986 = vsub.f32 %v969, %v982
        %v987 = vmul.f32 %v983, 1.442695
        %v988 = vpow.pop %v987
        %v989 = vmul.f32 %v984, 1.442695
        %v990 = vpow.pop %v989
        %v991 = vmul.f32 %v985, 1.442695
        %v992 = vpow.pop %v991
        %v993 = vmul.f32 %v986, 1.442695
        %v994 = vpow.pop %v993
        %v995 = vsel %vm446, %v988, 0.0
        %996 = vadd.xlane.f32.xlu0 %v995
        %v997 = vpop.xlane.xlu0 %996
        %v998 = vsel %vm446, %v990, 0.0
        %999 = vadd.xlane.f32.xlu0 %v998
        %v1000 = vpop.xlane.xlu0 %999
        %v1001 = vsel %vm446, %v992, 0.0
        %1002 = vadd.xlane.f32.xlu0 %v1001
        %v1003 = vpop.xlane.xlu0 %1002
        %v1004 = vsel %vm446, %v994, 0.0
        %1005 = vadd.xlane.f32.xlu0 %v1004
        %v1006 = vpop.xlane.xlu0 %1005
        %v1007 = vrcp.pop %v997
        %v1008 = vmul.f32 %v997, %v1007
        %v1009 = vsub.f32 1.0, %v1008
        %v1010 = vmul.f32 %v1007, %v1009
        %v1011 = vadd.f32 %v1007, %v1010
        %vm1012 = vweird.f32 %v997
        %vm1013 = vweird.f32 %v1007
        %vm1014 = vmor %vm1012, %vm1013
        %v1015 = vsel %vm1014, %v1007, %v1011
        %v1016 = vand.u32 2147483647, %v997
        %vm1017 = vcmp.eq.f32.partialorder %v1016, 8.507059e+37
        %v1018 = vand.u32 %v997, 2147483648
        %v1019 = vor.u32 1.1754944e-38, %v1018
        %v1020 = vsel %vm1017, %v1019, %v1015
        %v1021 = vmul.f32 %v988, %v1020
        %v1022 = vrcp.pop %v1000
        %v1023 = vmul.f32 %v1000, %v1022
        %v1024 = vsub.f32 1.0, %v1023
        %v1025 = vmul.f32 %v1022, %v1024
        %v1026 = vadd.f32 %v1022, %v1025
        %vm1027 = vweird.f32 %v1000
        %vm1028 = vweird.f32 %v1022
        %vm1029 = vmor %vm1027, %vm1028
        %v1030 = vsel %vm1029, %v1022, %v1026
        %v1031 = vand.u32 2147483647, %v1000
        %vm1032 = vcmp.eq.f32.partialorder %v1031, 8.507059e+37
        %v1033 = vand.u32 %v1000, 2147483648
        %v1034 = vor.u32 1.1754944e-38, %v1033
        %v1035 = vsel %vm1032, %v1034, %v1030
        %v1036 = vmul.f32 %v990, %v1035
        %v1037 = vrcp.pop %v1003
        %v1038 = vmul.f32 %v1003, %v1037
        %v1039 = vsub.f32 1.0, %v1038
        %v1040 = vmul.f32 %v1037, %v1039
        %v1041 = vadd.f32 %v1037, %v1040
        %vm1042 = vweird.f32 %v1003
        %vm1043 = vweird.f32 %v1037
        %vm1044 = vmor %vm1042, %vm1043
        %v1045 = vsel %vm1044, %v1037, %v1041
        %v1046 = vand.u32 2147483647, %v1003
        %vm1047 = vcmp.eq.f32.partialorder %v1046, 8.507059e+37
        %v1048 = vand.u32 %v1003, 2147483648
        %v1049 = vor.u32 1.1754944e-38, %v1048
        %v1050 = vsel %vm1047, %v1049, %v1045
        %v1051 = vmul.f32 %v992, %v1050
        %v1052 = vrcp.pop %v1006
        %v1053 = vmul.f32 %v1006, %v1052
        %v1054 = vsub.f32 1.0, %v1053
        %v1055 = vmul.f32 %v1052, %v1054
        %v1056 = vadd.f32 %v1052, %v1055
        %vm1057 = vweird.f32 %v1006
        %vm1058 = vweird.f32 %v1052
        %vm1059 = vmor %vm1057, %vm1058
        %v1060 = vsel %vm1059, %v1052, %v1056
        %v1061 = vand.u32 2147483647, %v1006
        %vm1062 = vcmp.eq.f32.partialorder %v1061, 8.507059e+37
        %v1063 = vand.u32 %v1006, 2147483648
        %v1064 = vor.u32 1.1754944e-38, %v1063
        %v1065 = vsel %vm1062, %v1064, %v1060
        %v1066 = vmul.f32 %v994, %v1065
        %v1067 = vsel %vm446, %v1021, 0.0
        %v1068 = vsel %vm446, %v1036, 0.0
        %v1069 = vadd.f32 %v1067, %v1068
        %v1070 = vsel %vm446, %v1051, 0.0
        %v1071 = vadd.f32 %v1069, %v1070
        %v1072 = vsel %vm446, %v1066, 0.0
        %v1073 = vadd.f32 %v1071, %v1072
        %v1074 = vrcp.pop 4.0
        %v1075 = vmul.f32 4.0, %v1074
        %v1076 = vsub.f32 1.0, %v1075
        %v1077 = vmul.f32 %v1074, %v1076
        %v1078 = vadd.f32 %v1074, %v1077
        %vm1079 = vweird.f32 %v1074
        %v1080 = vsel %vm1079, %v1074, %v1078
        %v1081 = vmul.f32 %v1073, %v1080
        %1082 = vrot.lane.b32.xlu0 %v856, 96
        %v1083 = vpop.permute.xlu0 %1082
        %v1086 = vsel %vm446, %v1021, 0
        %1088 = vmatpush.msra.mxu0 0.0
        %1089 = vmatpush.msra.mxu0 0.0
        %1090 = vmatpush.msra.mxu0 0.0
        %1091 = vmatpush.msra.mxu0 0.0
        %1092 = vmatpush.msra.mxu0 0.0
        %1093 = vmatpush.msra.mxu0 0.0
        %1094 = vmatpush.msra.mxu0 0.0
        %1095 = vmatpush.msra.mxu0 0.0
        %1096 = vmatpush.msra.mxu0 0.0
        %1097 = vmatpush.msra.mxu0 0.0
        %1098 = vmatpush.msra.mxu0 0.0
        %1099 = vmatpush.msra.mxu0 0.0
        %1100 = vmatpush.msra.mxu0 0.0
        %1101 = vmatpush.msra.mxu0 0.0
        %1102 = vmatpush.msra.mxu0 0.0
        %1103 = vmatpush.msra.mxu0 %v1083
        %1104 = vmatmul.f32.gmra.mxu0 %v1086
        %v1105 = vpop.f32.mrf.mxu0
        %v1106 = vadd.f32 0.0, %v1105
        %1107 = vdwg.mxu0
        %1108 = vrot.lane.b32.xlu0 %v867, 96
        %v1109 = vpop.permute.xlu0 %1108
        %v1112 = vsel %vm446, %v1036, 0
        %1114 = vmatpush.msra.mxu0 0.0
        %1115 = vmatpush.msra.mxu0 0.0
        %1116 = vmatpush.msra.mxu0 0.0
        %1117 = vmatpush.msra.mxu0 0.0
        %1118 = vmatpush.msra.mxu0 0.0
        %1119 = vmatpush.msra.mxu0 0.0
        %1120 = vmatpush.msra.mxu0 0.0
        %1121 = vmatpush.msra.mxu0 0.0
        %1122 = vmatpush.msra.mxu0 0.0
        %1123 = vmatpush.msra.mxu0 0.0
        %1124 = vmatpush.msra.mxu0 0.0
        %1125 = vmatpush.msra.mxu0 0.0
        %1126 = vmatpush.msra.mxu0 0.0
        %1127 = vmatpush.msra.mxu0 0.0
        %1128 = vmatpush.msra.mxu0 0.0
        %1129 = vmatpush.msra.mxu0 %v1109
        %1130 = vmatmul.f32.gmra.mxu0 %v1112
        %v1131 = vpop.f32.mrf.mxu0
        %v1132 = vadd.f32 0.0, %v1131
        %1133 = vdwg.mxu0
        %1134 = vrot.lane.b32.xlu0 %v869, 96
        %v1135 = vpop.permute.xlu0 %1134
        %v1138 = vsel %vm446, %v1051, 0
        %1140 = vmatpush.msra.mxu0 0.0
        %1141 = vmatpush.msra.mxu0 0.0
        %1142 = vmatpush.msra.mxu0 0.0
        %1143 = vmatpush.msra.mxu0 0.0
        %1144 = vmatpush.msra.mxu0 0.0
        %1145 = vmatpush.msra.mxu0 0.0
        %1146 = vmatpush.msra.mxu0 0.0
        %1147 = vmatpush.msra.mxu0 0.0
        %1148 = vmatpush.msra.mxu0 0.0
        %1149 = vmatpush.msra.mxu0 0.0
        %1150 = vmatpush.msra.mxu0 0.0
        %1151 = vmatpush.msra.mxu0 0.0
        %1152 = vmatpush.msra.mxu0 0.0
        %1153 = vmatpush.msra.mxu0 0.0
        %1154 = vmatpush.msra.mxu0 0.0
        %1155 = vmatpush.msra.mxu0 %v1135
        %1156 = vmatmul.f32.gmra.mxu0 %v1138
        %v1157 = vpop.f32.mrf.mxu0
        %v1158 = vadd.f32 0.0, %v1157
        %1159 = vdwg.mxu0
        %1160 = vrot.lane.b32.xlu0 %v871, 96
        %v1161 = vpop.permute.xlu0 %1160
        %v1164 = vsel %vm446, %v1066, 0
        %1166 = vmatpush.msra.mxu0 0.0
        %1167 = vmatpush.msra.mxu0 0.0
        %1168 = vmatpush.msra.mxu0 0.0
        %1169 = vmatpush.msra.mxu0 0.0
        %1170 = vmatpush.msra.mxu0 0.0
        %1171 = vmatpush.msra.mxu0 0.0
        %1172 = vmatpush.msra.mxu0 0.0
        %1173 = vmatpush.msra.mxu0 0.0
        %1174 = vmatpush.msra.mxu0 0.0
        %1175 = vmatpush.msra.mxu0 0.0
        %1176 = vmatpush.msra.mxu0 0.0
        %1177 = vmatpush.msra.mxu0 0.0
        %1178 = vmatpush.msra.mxu0 0.0
        %1179 = vmatpush.msra.mxu0 0.0
        %1180 = vmatpush.msra.mxu0 0.0
        %1181 = vmatpush.msra.mxu0 %v1161
        %1182 = vmatmul.f32.gmra.mxu0 %v1164
        %v1183 = vpop.f32.mrf.mxu0
        %v1184 = vadd.f32 0.0, %v1183
        %1185 = vdwg.mxu0
        %1187 = vrot.lane.b32.xlu0 %v1132, 8
        %v1188 = vpop.permute.xlu0 %1187
        %1191 = vrot.lane.b32.xlu0 %v1158, 16
        %v1192 = vpop.permute.xlu0 %1191
        %1195 = vrot.lane.b32.xlu0 %v1184, 24
        %v1196 = vpop.permute.xlu0 %1195
        %v1198 = vsel %vm446, %v1106, %v1188
        %v1199 = vsel %vm710, %v1198, %v1192
        %v1200 = vsel %vm712, %v1199, %v1196
        %1201 = vrot.lane.b32.xlu0 %v383, 32
        %v1202 = vpop.permute.xlu0 %1201
        %1203 = vrot.lane.b32.xlu0 %v384, 32
        %v1204 = vpop.permute.xlu0 %1203
        %1205 = vrot.lane.b32.xlu0 %v385, 32
        %v1206 = vpop.permute.xlu0 %1205
        %1207 = vrot.lane.b32.xlu0 %v386, 32
        %v1208 = vpop.permute.xlu0 %1207
        %1213 = vrot.lane.b32.xlu0 %v791, 32
        %v1214 = vpop.permute.xlu0 %1213
        %v1217 = vsel %vm413, %v1200, 0
        %1219 = vmatpush.msra.mxu0 0.0
        %1220 = vmatpush.msra.mxu0 0.0
        %1221 = vmatpush.msra.mxu0 0.0
        %1222 = vmatpush.msra.mxu0 0.0
        %1223 = vmatpush.msra.mxu0 0.0
        %1224 = vmatpush.msra.mxu0 0.0
        %1225 = vmatpush.msra.mxu0 0.0
        %1226 = vmatpush.msra.mxu0 0.0
        %1227 = vmatpush.msra.mxu0 0.0
        %1228 = vmatpush.msra.mxu0 0.0
        %1229 = vmatpush.msra.mxu0 0.0
        %1230 = vmatpush.msra.mxu0 0.0
        %1231 = vmatpush.msra.mxu0 %v1208
        %1232 = vmatpush.msra.mxu0 %v1206
        %1233 = vmatpush.msra.mxu0 %v1204
        %1234 = vmatpush.msra.mxu0 %v1202
        %1235 = vmatmul.f32.gmra.mxu0 %v1217
        %v1236 = vpop.f32.mrf.mxu0
        %v1237 = vadd.f32 %v1214, %v1236
        %1238 = vdwg.mxu0
        %v1239 = vadd.f32 %v790, %v1237
        %v1240 = vsel %vm413, %v1239, 0.0
        %1241 = vadd.xlane.f32.xlu0 %v1240
        %v1242 = vpop.xlane.xlu0 %1241
        %v1243 = vmul.f32 %v1242, %v767
        %v1244 = vsub.f32 %v1239, %v1243
        %v1245 = vmul.f32 %v1244, %v1244
        %v1246 = vsel %vm413, %v1245, 0.0
        %1247 = vadd.xlane.f32.xlu0 %v1246
        %v1248 = vpop.xlane.xlu0 %1247
        %v1249 = vmul.f32 %v1248, %v767
        %v1250 = vadd.f32 %v1249, 1e-05
        %v1251 = vrsqrt.pop %v1250
        %v1252 = vmul.f32 %v1251, %v1250
        %v1253 = vmul.f32 %v1252, %v1251
        %v1254 = vmul.f32 0.5, %v1253
        %v1255 = vsub.f32 1.5, %v1254
        %v1256 = vmul.f32 %v1251, %v1255
        %vm1257 = vweird.f32 %v1250
        %vm1258 = vweird.f32 %v1251
        %vm1259 = vmor %vm1257, %vm1258
        %v1260 = vsel %vm1259, %v1251, %v1256
        %v1261 = vmul.f32 %v1244, %v1260
        %v1262 = vperm.slane %v410, 1
        %v1263 = vmul.f32 %v1261, %v1262
        %v1264 = vperm.slane %v411, 1
        %v1265 = vadd.f32 %v1263, %v1264
        %v1266 = vperm.slane %v392, 0
        %v1268 = vsel %vm413, %v1265, 0
        %1270 = vmatpush.msra.mxu0 0.0
        %1271 = vmatpush.msra.mxu0 0.0
        %1272 = vmatpush.msra.mxu0 0.0
        %1273 = vmatpush.msra.mxu0 0.0
        %1274 = vmatpush.msra.mxu0 0.0
        %1275 = vmatpush.msra.mxu0 0.0
        %1276 = vmatpush.msra.mxu0 0.0
        %1277 = vmatpush.msra.mxu0 0.0
        %1278 = vmatpush.msra.mxu0 0.0
        %1279 = vmatpush.msra.mxu0 0.0
        %1280 = vmatpush.msra.mxu0 0.0
        %1281 = vmatpush.msra.mxu0 0.0
        %1282 = vmatpush.msra.mxu0 %v391
        %1283 = vmatpush.msra.mxu0 %v390
        %1284 = vmatpush.msra.mxu0 %v389
        %1285 = vmatpush.msra.mxu0 %v388
        %1286 = vmatmul.f32.gmra.mxu0 %v1268
        %v1287 = vpop.f32.mrf.mxu0
        %v1288 = vadd.f32 %v1266, %v1287
        %1289 = vdwg.mxu0
        %v1290 = vmul.f32 %v1288, %v1288
        %v1291 = vmul.f32 %v1288, %v1290
        %v1292 = vmul.f32 %v1291, 0.044715
        %v1293 = vadd.f32 %v1288, %v1292
        %v1294 = vmul.f32 %v1293, 0.7978846
        %v1295 = vtanh.pop %v1294
        %v1296 = vadd.f32 %v1295, 1.0
        %v1297 = vmul.f32 %v1296, 0.5
        %v1298 = vmul.f32 %v1288, %v1297
        %v1299 = vperm.slane %v409, 0
        %1300 = vmatpush.msra.mxu0 %v408
        %1301 = vmatpush.msra.mxu0 %v407
        %1302 = vmatpush.msra.mxu0 %v406
        %1303 = vmatpush.msra.mxu0 %v405
        %1304 = vmatpush.msra.mxu0 %v404
        %1305 = vmatpush.msra.mxu0 %v403
        %1306 = vmatpush.msra.mxu0 %v402
        %1307 = vmatpush.msra.mxu0 %v401
        %1308 = vmatpush.msra.mxu0 %v400
        %1309 = vmatpush.msra.mxu0 %v399
        %1310 = vmatpush.msra.mxu0 %v398
        %1311 = vmatpush.msra.mxu0 %v397
        %1312 = vmatpush.msra.mxu0 %v396
        %1313 = vmatpush.msra.mxu0 %v395
        %1314 = vmatpush.msra.mxu0 %v394
        %1315 = vmatpush.msra.mxu0 %v393
        %1316 = vmatmul.f32.gmra.mxu0 %v1298
        %v1317 = vpop.f32.mrf.mxu0
        %v1318 = vadd.f32 %v1299, %v1317
        %1319 = vdwg.mxu0
        %v1320 = vadd.f32 %v1265, %v1318
        %v1321 = vsel %vm413, %v1320, 0.0
        %1322 = vadd.xlane.f32.xlu0 %v1321
        %v1323 = vpop.xlane.xlu0 %1322
        %v1324 = vmul.f32 %v1323, %v767
        %v1325 = vsub.f32 %v1320, %v1324
        %v1326 = vmul.f32 %v1325, %v1325
        %v1327 = vsel %vm413, %v1326, 0.0
        %1328 = vadd.xlane.f32.xlu0 %v1327
        %v1329 = vpop.xlane.xlu0 %1328
        %v1330 = vmul.f32 %v1329, %v767
        %v1331 = vadd.f32 %v1330, 1e-05
        %v1332 = vrsqrt.pop %v1331
        %v1333 = vmul.f32 %v1332, %v1331
        %v1334 = vmul.f32 %v1333, %v1332
        %v1335 = vmul.f32 0.5, %v1334
        %v1336 = vsub.f32 1.5, %v1335
        %v1337 = vmul.f32 %v1332, %v1336
        %vm1338 = vweird.f32 %v1331
        %vm1339 = vweird.f32 %v1332
        %vm1340 = vmor %vm1338, %vm1339
        %v1341 = vsel %vm1340, %v1332, %v1337
        %v1342 = vmul.f32 %v1325, %v1341
        %v1343 = vperm.slane %v410, 2
        %v1344 = vmul.f32 %v1342, %v1343
        %v1345 = vperm.slane %v411, 2
        %v1346 = vadd.f32 %v1344, %v1345
        %v1347 = vsel %vm446, %v1081, 0.0
        %1348 = vst [vmem:[%s321] sm:$0xff] %v1347
        %v1349 = vld [vmem:[#allocation2 + $0xea] sm:$0xff]
        %v1350 = vld [vmem:[#allocation2 + $0xf2] sm:$0xff]
        %v1351 = vld [vmem:[#allocation2 + $0xfa] sm:$0xff]
        %v1352 = vld [vmem:[#allocation2 + $0x102] sm:$0xff]
        %v1353 = vld [vmem:[#allocation2 + $0x10a] sm:$0x1]
        %v1354 = vld [vmem:[#allocation2 + $0x10b] sm:$0xff]
        %v1355 = vld [vmem:[#allocation2 + $0x113] sm:$0xff]
        %v1356 = vld [vmem:[#allocation2 + $0x11b] sm:$0xff]
        %v1357 = vld [vmem:[#allocation2 + $0x123] sm:$0xff]
        %v1358 = vld [vmem:[#allocation2 + $0x12b] sm:$0x1]
        %v1359 = vld [vmem:[#allocation2 + $0x12c] sm:$0xff]
        %v1360 = vld [vmem:[#allocation2 + $0x134] sm:$0xff]
        %v1361 = vld [vmem:[#allocation2 + $0x13c] sm:$0xff]
        %v1362 = vld [vmem:[#allocation2 + $0x144] sm:$0xff]
        %v1363 = vld [vmem:[#allocation2 + $0x14c] sm:$0x1]
        %v1364 = vld [vmem:[#allocation2 + $0x14d] sm:$0xff]
        %v1365 = vld [vmem:[#allocation2 + $0x155] sm:$0xff]
        %v1366 = vld [vmem:[#allocation2 + $0x15d] sm:$0xff]
        %v1367 = vld [vmem:[#allocation2 + $0x165] sm:$0xff]
        %v1368 = vld [vmem:[#allocation2 + $0x16d] sm:$0xff]
        %v1369 = vld [vmem:[#allocation2 + $0x175] sm:$0xff]
        %v1370 = vld [vmem:[#allocation2 + $0x17d] sm:$0xff]
        %v1371 = vld [vmem:[#allocation2 + $0x185] sm:$0xff]
        %v1372 = vld [vmem:[#allocation2 + $0x18d] sm:$0xff]
        %v1373 = vld [vmem:[#allocation2 + $0x195] sm:$0xff]
        %v1374 = vld [vmem:[#allocation2 + $0x19d] sm:$0xff]
        %v1375 = vld [vmem:[#allocation2 + $0x1a5] sm:$0xff]
        %v1376 = vld [vmem:[#allocation2 + $0x1ad] sm:$0xff]
        %v1377 = vld [vmem:[#allocation2 + $0x1b5] sm:$0xff]
        %v1378 = vld [vmem:[#allocation2 + $0x1bd] sm:$0xff]
        %v1379 = vld [vmem:[#allocation2 + $0x1c5] sm:$0xff]
        %v1380 = vld [vmem:[#allocation2 + $0x1cd] sm:$0x1]
        %v1381 = vld [vmem:[#allocation2 + $0x1ce] sm:$0x7]
        %v1382 = vld [vmem:[#allocation2 + $0x1d1] sm:$0x7]
        %v1383 = vperm.slane %v1353, 0
        %v1385 = vsel %vm413, %v1346, 0
        %1387 = vmatpush.msra.mxu0 0.0
        %1388 = vmatpush.msra.mxu0 0.0
        %1389 = vmatpush.msra.mxu0 0.0
        %1390 = vmatpush.msra.mxu0 0.0
        %1391 = vmatpush.msra.mxu0 0.0
        %1392 = vmatpush.msra.mxu0 0.0
        %1393 = vmatpush.msra.mxu0 0.0
        %1394 = vmatpush.msra.mxu0 0.0
        %1395 = vmatpush.msra.mxu0 0.0
        %1396 = vmatpush.msra.mxu0 0.0
        %1397 = vmatpush.msra.mxu0 0.0
        %1398 = vmatpush.msra.mxu0 0.0
        %1399 = vmatpush.msra.mxu0 %v1352
        %1400 = vmatpush.msra.mxu0 %v1351
        %1401 = vmatpush.msra.mxu0 %v1350
        %1402 = vmatpush.msra.mxu0 %v1349
        %1403 = vmatmul.f32.gmra.mxu0 %v1385
        %v1404 = vpop.f32.mrf.mxu0
        %v1405 = vadd.f32 %v1383, %v1404
        %1406 = vdwg.mxu0
        %1408 = vrot.lane.b32.xlu0 %v1405, 120
        %v1409 = vpop.permute.xlu0 %1408
        %1410 = vrot.lane.b32.xlu0 %v1405, 112
        %v1411 = vpop.permute.xlu0 %1410
        %1412 = vrot.lane.b32.xlu0 %v1405, 104
        %v1413 = vpop.permute.xlu0 %1412
        %1414 = vrot.lane.b32.xlu0 %v1405, 96
        %v1415 = vpop.permute.xlu0 %1414
        %v1416 = vsel %vm446, %v1405, 0
        %v1418 = vsel %vm446, %v1415, 0
        %1420 = vmatpush.xpose.msra.mxu0 0.0
        %1421 = vmatpush.xpose.msra.mxu0 0.0
        %1422 = vmatpush.xpose.msra.mxu0 0.0
        %1423 = vmatpush.xpose.msra.mxu0 0.0
        %1424 = vmatpush.xpose.msra.mxu0 0.0
        %1425 = vmatpush.xpose.msra.mxu0 0.0
        %1426 = vmatpush.xpose.msra.mxu0 0.0
        %1427 = vmatpush.xpose.msra.mxu0 0.0
        %1428 = vmatpush.xpose.msra.mxu0 0.0
        %1429 = vmatpush.xpose.msra.mxu0 0.0
        %1430 = vmatpush.xpose.msra.mxu0 0.0
        %1431 = vmatpush.xpose.msra.mxu0 0.0
        %1432 = vmatpush.xpose.msra.mxu0 0.0
        %1433 = vmatpush.xpose.msra.mxu0 0.0
        %1434 = vmatpush.xpose.msra.mxu0 0.0
        %1435 = vmatpush.xpose.msra.mxu0 %v1418
        %1436 = vmatmul.f32.gmra.mxu0 %v1416
        %v1437 = vpop.f32.mrf.mxu0
        %v1438 = vadd.f32 %v377, %v1437
        %1439 = vdwg.mxu0
        %1440 = vrot.lane.b32.xlu0 %v1409, 96
        %v1441 = vpop.permute.xlu0 %1440
        %v1442 = vsel %vm446, %v1409, 0
        %v1444 = vsel %vm446, %v1441, 0
        %1446 = vmatpush.xpose.msra.mxu0 0.0
        %1447 = vmatpush.xpose.msra.mxu0 0.0
        %1448 = vmatpush.xpose.msra.mxu0 0.0
        %1449 = vmatpush.xpose.msra.mxu0 0.0
        %1450 = vmatpush.xpose.msra.mxu0 0.0
        %1451 = vmatpush.xpose.msra.mxu0 0.0
        %1452 = vmatpush.xpose.msra.mxu0 0.0
        %1453 = vmatpush.xpose.msra.mxu0 0.0
        %1454 = vmatpush.xpose.msra.mxu0 0.0
        %1455 = vmatpush.xpose.msra.mxu0 0.0
        %1456 = vmatpush.xpose.msra.mxu0 0.0
        %1457 = vmatpush.xpose.msra.mxu0 0.0
        %1458 = vmatpush.xpose.msra.mxu0 0.0
        %1459 = vmatpush.xpose.msra.mxu0 0.0
        %1460 = vmatpush.xpose.msra.mxu0 0.0
        %1461 = vmatpush.xpose.msra.mxu0 %v1444
        %1462 = vmatmul.f32.gmra.mxu0 %v1442
        %v1463 = vpop.f32.mrf.mxu0
        %v1464 = vadd.f32 %v377, %v1463
        %1465 = vdwg.mxu0
        %1466 = vrot.lane.b32.xlu0 %v1411, 96
        %v1467 = vpop.permute.xlu0 %1466
        %v1468 = vsel %vm446, %v1411, 0
        %v1470 = vsel %vm446, %v1467, 0
        %1472 = vmatpush.xpose.msra.mxu0 0.0
        %1473 = vmatpush.xpose.msra.mxu0 0.0
        %1474 = vmatpush.xpose.msra.mxu0 0.0
        %1475 = vmatpush.xpose.msra.mxu0 0.0
        %1476 = vmatpush.xpose.msra.mxu0 0.0
        %1477 = vmatpush.xpose.msra.mxu0 0.0
        %1478 = vmatpush.xpose.msra.mxu0 0.0
        %1479 = vmatpush.xpose.msra.mxu0 0.0
        %1480 = vmatpush.xpose.msra.mxu0 0.0
        %1481 = vmatpush.xpose.msra.mxu0 0.0
        %1482 = vmatpush.xpose.msra.mxu0 0.0
        %1483 = vmatpush.xpose.msra.mxu0 0.0
        %1484 = vmatpush.xpose.msra.mxu0 0.0
        %1485 = vmatpush.xpose.msra.mxu0 0.0
        %1486 = vmatpush.xpose.msra.mxu0 0.0
        %1487 = vmatpush.xpose.msra.mxu0 %v1470
        %1488 = vmatmul.f32.gmra.mxu0 %v1468
        %v1489 = vpop.f32.mrf.mxu0
        %v1490 = vadd.f32 %v377, %v1489
        %1491 = vdwg.mxu0
        %1492 = vrot.lane.b32.xlu0 %v1413, 96
        %v1493 = vpop.permute.xlu0 %1492
        %v1494 = vsel %vm446, %v1413, 0
        %v1496 = vsel %vm446, %v1493, 0
        %1498 = vmatpush.xpose.msra.mxu0 0.0
        %1499 = vmatpush.xpose.msra.mxu0 0.0
        %1500 = vmatpush.xpose.msra.mxu0 0.0
        %1501 = vmatpush.xpose.msra.mxu0 0.0
        %1502 = vmatpush.xpose.msra.mxu0 0.0
        %1503 = vmatpush.xpose.msra.mxu0 0.0
        %1504 = vmatpush.xpose.msra.mxu0 0.0
        %1505 = vmatpush.xpose.msra.mxu0 0.0
        %1506 = vmatpush.xpose.msra.mxu0 0.0
        %1507 = vmatpush.xpose.msra.mxu0 0.0
        %1508 = vmatpush.xpose.msra.mxu0 0.0
        %1509 = vmatpush.xpose.msra.mxu0 0.0
        %1510 = vmatpush.xpose.msra.mxu0 0.0
        %1511 = vmatpush.xpose.msra.mxu0 0.0
        %1512 = vmatpush.xpose.msra.mxu0 0.0
        %1513 = vmatpush.xpose.msra.mxu0 %v1496
        %1514 = vmatmul.f32.gmra.mxu0 %v1494
        %v1515 = vpop.f32.mrf.mxu0
        %v1516 = vadd.f32 %v377, %v1515
        %1517 = vdwg.mxu0
        %v1518 = vsel %vm446, %v1438, -inf
        %1519 = vmax.xlane.f32.xlu0 %v1518
        %v1520 = vpop.xlane.xlu0 %1519
        %v1521 = vsel %vm446, %v1464, -inf
        %1522 = vmax.xlane.f32.xlu0 %v1521
        %v1523 = vpop.xlane.xlu0 %1522
        %v1524 = vsel %vm446, %v1490, -inf
        %1525 = vmax.xlane.f32.xlu0 %v1524
        %v1526 = vpop.xlane.xlu0 %1525
        %v1527 = vsel %vm446, %v1516, -inf
        %1528 = vmax.xlane.f32.xlu0 %v1527
        %v1529 = vpop.xlane.xlu0 %1528
        %v1530 = vsub.f32 %v1438, %v1520
        %v1531 = vsub.f32 %v1464, %v1523
        %v1532 = vsub.f32 %v1490, %v1526
        %v1533 = vsub.f32 %v1516, %v1529
        %v1534 = vmul.f32 %v1530, 1.442695
        %v1535 = vpow.pop %v1534
        %v1536 = vmul.f32 %v1531, 1.442695
        %v1537 = vpow.pop %v1536
        %v1538 = vmul.f32 %v1532, 1.442695
        %v1539 = vpow.pop %v1538
        %v1540 = vmul.f32 %v1533, 1.442695
        %v1541 = vpow.pop %v1540
        %v1542 = vsel %vm446, %v1535, 0.0
        %1543 = vadd.xlane.f32.xlu0 %v1542
        %v1544 = vpop.xlane.xlu0 %1543
        %v1545 = vsel %vm446, %v1537, 0.0
        %1546 = vadd.xlane.f32.xlu0 %v1545
        %v1547 = vpop.xlane.xlu0 %1546
        %v1548 = vsel %vm446, %v1539, 0.0
        %1549 = vadd.xlane.f32.xlu0 %v1548
        %v1550 = vpop.xlane.xlu0 %1549
        %v1551 = vsel %vm446, %v1541, 0.0
        %1552 = vadd.xlane.f32.xlu0 %v1551
        %v1553 = vpop.xlane.xlu0 %1552
        %v1554 = vrcp.pop %v1544
        %v1555 = vrcp.pop %v1547
        %v1556 = vrcp.pop %v1550
        %v1557 = vrcp.pop %v1553
        %v1558 = vmul.f32 %v1535, %v1554
        %v1559 = vmul.f32 %v1537, %v1555
        %v1560 = vmul.f32 %v1539, %v1556
        %v1561 = vmul.f32 %v1541, %v1557
        %1562 = vrot.lane.b32.xlu0 %v1405, 64
        %v1563 = vpop.permute.xlu0 %1562
        %v1566 = vsel %vm446, %v1558, 0
        %1568 = vmatpush.msra.mxu0 0.0
        %1569 = vmatpush.msra.mxu0 0.0
        %1570 = vmatpush.msra.mxu0 0.0
        %1571 = vmatpush.msra.mxu0 0.0
        %1572 = vmatpush.msra.mxu0 0.0
        %1573 = vmatpush.msra.mxu0 0.0
        %1574 = vmatpush.msra.mxu0 0.0
        %1575 = vmatpush.msra.mxu0 0.0
        %1576 = vmatpush.msra.mxu0 0.0
        %1577 = vmatpush.msra.mxu0 0.0
        %1578 = vmatpush.msra.mxu0 0.0
        %1579 = vmatpush.msra.mxu0 0.0
        %1580 = vmatpush.msra.mxu0 0.0
        %1581 = vmatpush.msra.mxu0 0.0
        %1582 = vmatpush.msra.mxu0 0.0
        %1583 = vmatpush.msra.mxu0 %v1563
        %1584 = vmatmul.f32.gmra.mxu0 %v1566
        %v1585 = vpop.f32.mrf.mxu0
        %v1586 = vadd.f32 0.0, %v1585
        %1587 = vdwg.mxu0
        %1588 = vrot.lane.b32.xlu0 %v1409, 64
        %v1589 = vpop.permute.xlu0 %1588
        %v1592 = vsel %vm446, %v1559, 0
        %1594 = vmatpush.msra.mxu0 0.0
        %1595 = vmatpush.msra.mxu0 0.0
        %1596 = vmatpush.msra.mxu0 0.0
        %1597 = vmatpush.msra.mxu0 0.0
        %1598 = vmatpush.msra.mxu0 0.0
        %1599 = vmatpush.msra.mxu0 0.0
        %1600 = vmatpush.msra.mxu0 0.0
        %1601 = vmatpush.msra.mxu0 0.0
        %1602 = vmatpush.msra.mxu0 0.0
        %1603 = vmatpush.msra.mxu0 0.0
        %1604 = vmatpush.msra.mxu0 0.0
        %1605 = vmatpush.msra.mxu0 0.0
        %1606 = vmatpush.msra.mxu0 0.0
        %1607 = vmatpush.msra.mxu0 0.0
        %1608 = vmatpush.msra.mxu0 0.0
        %1609 = vmatpush.msra.mxu0 %v1589
        %1610 = vmatmul.f32.gmra.mxu0 %v1592
        %v1611 = vpop.f32.mrf.mxu0
        %v1612 = vadd.f32 0.0, %v1611
        %1613 = vdwg.mxu0
        %1614 = vrot.lane.b32.xlu0 %v1411, 64
        %v1615 = vpop.permute.xlu0 %1614
        %v1618 = vsel %vm446, %v1560, 0
        %1620 = vmatpush.msra.mxu0 0.0
        %1621 = vmatpush.msra.mxu0 0.0
        %1622 = vmatpush.msra.mxu0 0.0
        %1623 = vmatpush.msra.mxu0 0.0
        %1624 = vmatpush.msra.mxu0 0.0
        %1625 = vmatpush.msra.mxu0 0.0
        %1626 = vmatpush.msra.mxu0 0.0
        %1627 = vmatpush.msra.mxu0 0.0
        %1628 = vmatpush.msra.mxu0 0.0
        %1629 = vmatpush.msra.mxu0 0.0
        %1630 = vmatpush.msra.mxu0 0.0
        %1631 = vmatpush.msra.mxu0 0.0
        %1632 = vmatpush.msra.mxu0 0.0
        %1633 = vmatpush.msra.mxu0 0.0
        %1634 = vmatpush.msra.mxu0 0.0
        %1635 = vmatpush.msra.mxu0 %v1615
        %1636 = vmatmul.f32.gmra.mxu0 %v1618
        %v1637 = vpop.f32.mrf.mxu0
        %v1638 = vadd.f32 0.0, %v1637
        %1639 = vdwg.mxu0
        %1640 = vrot.lane.b32.xlu0 %v1413, 64
        %v1641 = vpop.permute.xlu0 %1640
        %v1644 = vsel %vm446, %v1561, 0
        %1646 = vmatpush.msra.mxu0 0.0
        %1647 = vmatpush.msra.mxu0 0.0
        %1648 = vmatpush.msra.mxu0 0.0
        %1649 = vmatpush.msra.mxu0 0.0
        %1650 = vmatpush.msra.mxu0 0.0
        %1651 = vmatpush.msra.mxu0 0.0
        %1652 = vmatpush.msra.mxu0 0.0
        %1653 = vmatpush.msra.mxu0 0.0
        %1654 = vmatpush.msra.mxu0 0.0
        %1655 = vmatpush.msra.mxu0 0.0
        %1656 = vmatpush.msra.mxu0 0.0
        %1657 = vmatpush.msra.mxu0 0.0
        %1658 = vmatpush.msra.mxu0 0.0
        %1659 = vmatpush.msra.mxu0 0.0
        %1660 = vmatpush.msra.mxu0 0.0
        %1661 = vmatpush.msra.mxu0 %v1641
        %1662 = vmatmul.f32.gmra.mxu0 %v1644
        %v1663 = vpop.f32.mrf.mxu0
        %v1664 = vadd.f32 0.0, %v1663
        %1665 = vdwg.mxu0
        %1667 = vrot.lane.b32.xlu0 %v1612, 8
        %v1668 = vpop.permute.xlu0 %1667
        %1671 = vrot.lane.b32.xlu0 %v1638, 16
        %v1672 = vpop.permute.xlu0 %1671
        %1675 = vrot.lane.b32.xlu0 %v1664, 24
        %v1676 = vpop.permute.xlu0 %1675
        %v1678 = vsel %vm446, %v1586, %v1668
        %v1679 = vsel %vm710, %v1678, %v1672
        %v1680 = vsel %vm712, %v1679, %v1676
        %1685 = vrot.lane.b32.xlu0 %v1349, 32
        %v1686 = vpop.permute.xlu0 %1685
        %1687 = vrot.lane.b32.xlu0 %v1350, 32
        %v1688 = vpop.permute.xlu0 %1687
        %1689 = vrot.lane.b32.xlu0 %v1351, 32
        %v1690 = vpop.permute.xlu0 %1689
        %1691 = vrot.lane.b32.xlu0 %v1352, 32
        %v1692 = vpop.permute.xlu0 %1691
        %1698 = vrot.lane.b32.xlu0 %v1383, 32
        %v1699 = vpop.permute.xlu0 %1698
        %v1702 = vsel %vm413, %v1680, 0
        %1704 = vmatpush.msra.mxu0 0.0
        %1705 = vmatpush.msra.mxu0 0.0
        %1706 = vmatpush.msra.mxu0 0.0
        %1707 = vmatpush.msra.mxu0 0.0
        %1708 = vmatpush.msra.mxu0 0.0
        %1709 = vmatpush.msra.mxu0 0.0
        %1710 = vmatpush.msra.mxu0 0.0
        %1711 = vmatpush.msra.mxu0 0.0
        %1712 = vmatpush.msra.mxu0 0.0
        %1713 = vmatpush.msra.mxu0 0.0
        %1714 = vmatpush.msra.mxu0 0.0
        %1715 = vmatpush.msra.mxu0 0.0
        %1716 = vmatpush.msra.mxu0 %v1692
        %1717 = vmatpush.msra.mxu0 %v1690
        %1718 = vmatpush.msra.mxu0 %v1688
        %1719 = vmatpush.msra.mxu0 %v1686
        %1720 = vmatmul.f32.gmra.mxu0 %v1702
        %v1721 = vpop.f32.mrf.mxu0
        %v1722 = vadd.f32 %v1699, %v1721
        %1723 = vdwg.mxu0
        %v1724 = vadd.f32 %v1346, %v1722
        %v1725 = vsel %vm413, %v1724, 0.0
        %1726 = vadd.xlane.f32.xlu0 %v1725
        %v1727 = vpop.xlane.xlu0 %1726
        %v1728 = vmul.f32 %v1727, %v767
        %v1729 = vsub.f32 %v1724, %v1728
        %v1730 = vmul.f32 %v1729, %v1729
        %v1731 = vsel %vm413, %v1730, 0.0
        %1732 = vadd.xlane.f32.xlu0 %v1731
        %v1733 = vpop.xlane.xlu0 %1732
        %v1734 = vmul.f32 %v1733, %v767
        %v1735 = vadd.f32 %v1734, 1e-05
        %v1736 = vrsqrt.pop %v1735
        %v1737 = vmul.f32 %v1736, %v1735
        %v1738 = vmul.f32 %v1737, %v1736
        %v1739 = vmul.f32 0.5, %v1738
        %v1740 = vsub.f32 1.5, %v1739
        %v1741 = vmul.f32 %v1736, %v1740
        %vm1742 = vweird.f32 %v1735
        %vm1743 = vweird.f32 %v1736
        %vm1744 = vmor %vm1742, %vm1743
        %v1745 = vsel %vm1744, %v1736, %v1741
        %v1746 = vmul.f32 %v1729, %v1745
        %v1747 = vperm.slane %v1381, 0
        %v1748 = vmul.f32 %v1746, %v1747
        %v1749 = vperm.slane %v1382, 0
        %v1750 = vadd.f32 %v1748, %v1749
        %v1751 = vperm.slane %v1358, 0
        %v1753 = vsel %vm413, %v1750, 0
        %1755 = vmatpush.msra.mxu0 0.0
        %1756 = vmatpush.msra.mxu0 0.0
        %1757 = vmatpush.msra.mxu0 0.0
        %1758 = vmatpush.msra.mxu0 0.0
        %1759 = vmatpush.msra.mxu0 0.0
        %1760 = vmatpush.msra.mxu0 0.0
        %1761 = vmatpush.msra.mxu0 0.0
        %1762 = vmatpush.msra.mxu0 0.0
        %1763 = vmatpush.msra.mxu0 0.0
        %1764 = vmatpush.msra.mxu0 0.0
        %1765 = vmatpush.msra.mxu0 0.0
        %1766 = vmatpush.msra.mxu0 0.0
        %1767 = vmatpush.msra.mxu0 %v1357
        %1768 = vmatpush.msra.mxu0 %v1356
        %1769 = vmatpush.msra.mxu0 %v1355
        %1770 = vmatpush.msra.mxu0 %v1354
        %1771 = vmatmul.f32.gmra.mxu0 %v1753
        %v1772 = vpop.f32.mrf.mxu0
        %v1773 = vadd.f32 %v1751, %v1772
        %1774 = vdwg.mxu0
        %1779 = vrot.lane.b32.xlu0 %v1354, 96
        %v1780 = vpop.permute.xlu0 %1779
        %1781 = vrot.lane.b32.xlu0 %v1355, 96
        %v1782 = vpop.permute.xlu0 %1781
        %1783 = vrot.lane.b32.xlu0 %v1356, 96
        %v1784 = vpop.permute.xlu0 %1783
        %1785 = vrot.lane.b32.xlu0 %v1357, 96
        %v1786 = vpop.permute.xlu0 %1785
        %1792 = vrot.lane.b32.xlu0 %v1751, 96
        %v1793 = vpop.permute.xlu0 %1792
        %1795 = vmatpush.msra.mxu0 0.0
        %1796 = vmatpush.msra.mxu0 0.0
        %1797 = vmatpush.msra.mxu0 0.0
        %1798 = vmatpush.msra.mxu0 0.0
        %1799 = vmatpush.msra.mxu0 0.0
        %1800 = vmatpush.msra.mxu0 0.0
        %1801 = vmatpush.msra.mxu0 0.0
        %1802 = vmatpush.msra.mxu0 0.0
        %1803 = vmatpush.msra.mxu0 0.0
        %1804 = vmatpush.msra.mxu0 0.0
        %1805 = vmatpush.msra.mxu0 0.0
        %1806 = vmatpush.msra.mxu0 0.0
        %1807 = vmatpush.msra.mxu0 %v1786
        %1808 = vmatpush.msra.mxu0 %v1784
        %1809 = vmatpush.msra.mxu0 %v1782
        %1810 = vmatpush.msra.mxu0 %v1780
        %1811 = vmatmul.f32.gmra.mxu0 %v836
        %v1812 = vpop.f32.mrf.mxu0
        %v1813 = vadd.f32 %v1793, %v1812
        %1814 = vdwg.mxu0
        %1816 = vrot.lane.b32.xlu0 %v1773, 120
        %v1817 = vpop.permute.xlu0 %1816
        %1818 = vrot.lane.b32.xlu0 %v1773, 112
        %v1819 = vpop.permute.xlu0 %1818
        %1820 = vrot.lane.b32.xlu0 %v1773, 104
        %v1821 = vpop.permute.xlu0 %1820
        %1823 = vrot.lane.b32.xlu0 %v1813, 120
        %v1824 = vpop.permute.xlu0 %1823
        %1825 = vrot.lane.b32.xlu0 %v1813, 112
        %v1826 = vpop.permute.xlu0 %1825
        %1827 = vrot.lane.b32.xlu0 %v1813, 104
        %v1828 = vpop.permute.xlu0 %1827
        %v1829 = vsel %vm446, %v1773, 0
        %v1831 = vsel %vm446, %v1813, 0
        %1833 = vmatpush.xpose.msra.mxu0 0.0
        %1834 = vmatpush.xpose.msra.mxu0 0.0
        %1835 = vmatpush.xpose.msra.mxu0 0.0
        %1836 = vmatpush.xpose.msra.mxu0 0.0
        %1837 = vmatpush.xpose.msra.mxu0 0.0
        %1838 = vmatpush.xpose.msra.mxu0 0.0
        %1839 = vmatpush.xpose.msra.mxu0 0.0
        %1840 = vmatpush.xpose.msra.mxu0 0.0
        %1841 = vmatpush.xpose.msra.mxu0 0.0
        %1842 = vmatpush.xpose.msra.mxu0 0.0
        %1843 = vmatpush.xpose.msra.mxu0 0.0
        %1844 = vmatpush.xpose.msra.mxu0 0.0
        %1845 = vmatpush.xpose.msra.mxu0 0.0
        %1846 = vmatpush.xpose.msra.mxu0 0.0
        %1847 = vmatpush.xpose.msra.mxu0 0.0
        %1848 = vmatpush.xpose.msra.mxu0 %v1831
        %1849 = vmatmul.f32.gmra.mxu0 %v1829
        %v1850 = vpop.f32.mrf.mxu0
        %v1851 = vadd.f32 %v873, %v1850
        %1852 = vdwg.mxu0
        %v1853 = vsel %vm446, %v1817, 0
        %v1855 = vsel %vm446, %v1824, 0
        %1857 = vmatpush.xpose.msra.mxu0 0.0
        %1858 = vmatpush.xpose.msra.mxu0 0.0
        %1859 = vmatpush.xpose.msra.mxu0 0.0
        %1860 = vmatpush.xpose.msra.mxu0 0.0
        %1861 = vmatpush.xpose.msra.mxu0 0.0
        %1862 = vmatpush.xpose.msra.mxu0 0.0
        %1863 = vmatpush.xpose.msra.mxu0 0.0
        %1864 = vmatpush.xpose.msra.mxu0 0.0
        %1865 = vmatpush.xpose.msra.mxu0 0.0
        %1866 = vmatpush.xpose.msra.mxu0 0.0
        %1867 = vmatpush.xpose.msra.mxu0 0.0
        %1868 = vmatpush.xpose.msra.mxu0 0.0
        %1869 = vmatpush.xpose.msra.mxu0 0.0
        %1870 = vmatpush.xpose.msra.mxu0 0.0
        %1871 = vmatpush.xpose.msra.mxu0 0.0
        %1872 = vmatpush.xpose.msra.mxu0 %v1855
        %1873 = vmatmul.f32.gmra.mxu0 %v1853
        %v1874 = vpop.f32.mrf.mxu0
        %v1875 = vadd.f32 %v873, %v1874
        %1876 = vdwg.mxu0
        %v1877 = vsel %vm446, %v1819, 0
        %v1879 = vsel %vm446, %v1826, 0
        %1881 = vmatpush.xpose.msra.mxu0 0.0
        %1882 = vmatpush.xpose.msra.mxu0 0.0
        %1883 = vmatpush.xpose.msra.mxu0 0.0
        %1884 = vmatpush.xpose.msra.mxu0 0.0
        %1885 = vmatpush.xpose.msra.mxu0 0.0
        %1886 = vmatpush.xpose.msra.mxu0 0.0
        %1887 = vmatpush.xpose.msra.mxu0 0.0
        %1888 = vmatpush.xpose.msra.mxu0 0.0
        %1889 = vmatpush.xpose.msra.mxu0 0.0
        %1890 = vmatpush.xpose.msra.mxu0 0.0
        %1891 = vmatpush.xpose.msra.mxu0 0.0
        %1892 = vmatpush.xpose.msra.mxu0 0.0
        %1893 = vmatpush.xpose.msra.mxu0 0.0
        %1894 = vmatpush.xpose.msra.mxu0 0.0
        %1895 = vmatpush.xpose.msra.mxu0 0.0
        %1896 = vmatpush.xpose.msra.mxu0 %v1879
        %1897 = vmatmul.f32.gmra.mxu0 %v1877
        %v1898 = vpop.f32.mrf.mxu0
        %v1899 = vadd.f32 %v873, %v1898
        %1900 = vdwg.mxu0
        %v1901 = vsel %vm446, %v1821, 0
        %v1903 = vsel %vm446, %v1828, 0
        %1905 = vmatpush.xpose.msra.mxu0 0.0
        %1906 = vmatpush.xpose.msra.mxu0 0.0
        %1907 = vmatpush.xpose.msra.mxu0 0.0
        %1908 = vmatpush.xpose.msra.mxu0 0.0
        %1909 = vmatpush.xpose.msra.mxu0 0.0
        %1910 = vmatpush.xpose.msra.mxu0 0.0
        %1911 = vmatpush.xpose.msra.mxu0 0.0
        %1912 = vmatpush.xpose.msra.mxu0 0.0
        %1913 = vmatpush.xpose.msra.mxu0 0.0
        %1914 = vmatpush.xpose.msra.mxu0 0.0
        %1915 = vmatpush.xpose.msra.mxu0 0.0
        %1916 = vmatpush.xpose.msra.mxu0 0.0
        %1917 = vmatpush.xpose.msra.mxu0 0.0
        %1918 = vmatpush.xpose.msra.mxu0 0.0
        %1919 = vmatpush.xpose.msra.mxu0 0.0
        %1920 = vmatpush.xpose.msra.mxu0 %v1903
        %1921 = vmatmul.f32.gmra.mxu0 %v1901
        %v1922 = vpop.f32.mrf.mxu0
        %v1923 = vadd.f32 %v873, %v1922
        %1924 = vdwg.mxu0
        %v1925 = vsel %vm446, %v1851, -inf
        %1926 = vmax.xlane.f32.xlu0 %v1925
        %v1927 = vpop.xlane.xlu0 %1926
        %v1928 = vsel %vm446, %v1875, -inf
        %1929 = vmax.xlane.f32.xlu0 %v1928
        %v1930 = vpop.xlane.xlu0 %1929
        %v1931 = vsel %vm446, %v1899, -inf
        %1932 = vmax.xlane.f32.xlu0 %v1931
        %v1933 = vpop.xlane.xlu0 %1932
        %v1934 = vsel %vm446, %v1923, -inf
        %1935 = vmax.xlane.f32.xlu0 %v1934
        %v1936 = vpop.xlane.xlu0 %1935
        %v1937 = vsub.f32 %v1851, %v1927
        %v1938 = vsub.f32 %v1875, %v1930
        %v1939 = vsub.f32 %v1899, %v1933
        %v1940 = vsub.f32 %v1923, %v1936
        %v1941 = vmul.f32 %v1937, 1.442695
        %v1942 = vpow.pop %v1941
        %v1943 = vmul.f32 %v1938, 1.442695
        %v1944 = vpow.pop %v1943
        %v1945 = vmul.f32 %v1939, 1.442695
        %v1946 = vpow.pop %v1945
        %v1947 = vmul.f32 %v1940, 1.442695
        %v1948 = vpow.pop %v1947
        %v1949 = vsel %vm446, %v1942, 0.0
        %1950 = vadd.xlane.f32.xlu0 %v1949
        %v1951 = vpop.xlane.xlu0 %1950
        %v1952 = vsel %vm446, %v1944, 0.0
        %1953 = vadd.xlane.f32.xlu0 %v1952
        %v1954 = vpop.xlane.xlu0 %1953
        %v1955 = vsel %vm446, %v1946, 0.0
        %1956 = vadd.xlane.f32.xlu0 %v1955
        %v1957 = vpop.xlane.xlu0 %1956
        %v1958 = vsel %vm446, %v1948, 0.0
        %1959 = vadd.xlane.f32.xlu0 %v1958
        %v1960 = vpop.xlane.xlu0 %1959
        %v1961 = vrcp.pop %v1951
        %v1962 = vmul.f32 %v1951, %v1961
        %v1963 = vsub.f32 1.0, %v1962
        %v1964 = vmul.f32 %v1961, %v1963
        %v1965 = vadd.f32 %v1961, %v1964
        %vm1966 = vweird.f32 %v1951
        %vm1967 = vweird.f32 %v1961
        %vm1968 = vmor %vm1966, %vm1967
        %v1969 = vsel %vm1968, %v1961, %v1965
        %v1970 = vand.u32 2147483647, %v1951
        %vm1971 = vcmp.eq.f32.partialorder %v1970, 8.507059e+37
        %v1972 = vand.u32 %v1951, 2147483648
        %v1973 = vor.u32 1.1754944e-38, %v1972
        %v1974 = vsel %vm1971, %v1973, %v1969
        %v1975 = vmul.f32 %v1942, %v1974
        %v1976 = vrcp.pop %v1954
        %v1977 = vmul.f32 %v1954, %v1976
        %v1978 = vsub.f32 1.0, %v1977
        %v1979 = vmul.f32 %v1976, %v1978
        %v1980 = vadd.f32 %v1976, %v1979
        %vm1981 = vweird.f32 %v1954
        %vm1982 = vweird.f32 %v1976
        %vm1983 = vmor %vm1981, %vm1982
        %v1984 = vsel %vm1983, %v1976, %v1980
        %v1985 = vand.u32 2147483647, %v1954
        %vm1986 = vcmp.eq.f32.partialorder %v1985, 8.507059e+37
        %v1987 = vand.u32 %v1954, 2147483648
        %v1988 = vor.u32 1.1754944e-38, %v1987
        %v1989 = vsel %vm1986, %v1988, %v1984
        %v1990 = vmul.f32 %v1944, %v1989
        %v1991 = vrcp.pop %v1957
        %v1992 = vmul.f32 %v1957, %v1991
        %v1993 = vsub.f32 1.0, %v1992
        %v1994 = vmul.f32 %v1991, %v1993
        %v1995 = vadd.f32 %v1991, %v1994
        %vm1996 = vweird.f32 %v1957
        %vm1997 = vweird.f32 %v1991
        %vm1998 = vmor %vm1996, %vm1997
        %v1999 = vsel %vm1998, %v1991, %v1995
        %v2000 = vand.u32 2147483647, %v1957
        %vm2001 = vcmp.eq.f32.partialorder %v2000, 8.507059e+37
        %v2002 = vand.u32 %v1957, 2147483648
        %v2003 = vor.u32 1.1754944e-38, %v2002
        %v2004 = vsel %vm2001, %v2003, %v1999
        %v2005 = vmul.f32 %v1946, %v2004
        %v2006 = vrcp.pop %v1960
        %v2007 = vmul.f32 %v1960, %v2006
        %v2008 = vsub.f32 1.0, %v2007
        %v2009 = vmul.f32 %v2006, %v2008
        %v2010 = vadd.f32 %v2006, %v2009
        %vm2011 = vweird.f32 %v1960
        %vm2012 = vweird.f32 %v2006
        %vm2013 = vmor %vm2011, %vm2012
        %v2014 = vsel %vm2013, %v2006, %v2010
        %v2015 = vand.u32 2147483647, %v1960
        %vm2016 = vcmp.eq.f32.partialorder %v2015, 8.507059e+37
        %v2017 = vand.u32 %v1960, 2147483648
        %v2018 = vor.u32 1.1754944e-38, %v2017
        %v2019 = vsel %vm2016, %v2018, %v2014
        %v2020 = vmul.f32 %v1948, %v2019
        %v2021 = vsel %vm446, %v1975, 0.0
        %v2022 = vsel %vm446, %v1990, 0.0
        %v2023 = vadd.f32 %v2021, %v2022
        %v2024 = vsel %vm446, %v2005, 0.0
        %v2025 = vadd.f32 %v2023, %v2024
        %v2026 = vsel %vm446, %v2020, 0.0
        %v2027 = vadd.f32 %v2025, %v2026
        %v2028 = vmul.f32 %v2027, %v1080
        %2029 = vrot.lane.b32.xlu0 %v1813, 96
        %v2030 = vpop.permute.xlu0 %2029
        %v2033 = vsel %vm446, %v1975, 0
        %2035 = vmatpush.msra.mxu0 0.0
        %2036 = vmatpush.msra.mxu0 0.0
        %2037 = vmatpush.msra.mxu0 0.0
        %2038 = vmatpush.msra.mxu0 0.0
        %2039 = vmatpush.msra.mxu0 0.0
        %2040 = vmatpush.msra.mxu0 0.0
        %2041 = vmatpush.msra.mxu0 0.0
        %2042 = vmatpush.msra.mxu0 0.0
        %2043 = vmatpush.msra.mxu0 0.0
        %2044 = vmatpush.msra.mxu0 0.0
        %2045 = vmatpush.msra.mxu0 0.0
        %2046 = vmatpush.msra.mxu0 0.0
        %2047 = vmatpush.msra.mxu0 0.0
        %2048 = vmatpush.msra.mxu0 0.0
        %2049 = vmatpush.msra.mxu0 0.0
        %2050 = vmatpush.msra.mxu0 %v2030
        %2051 = vmatmul.f32.gmra.mxu0 %v2033
        %v2052 = vpop.f32.mrf.mxu0
        %v2053 = vadd.f32 0.0, %v2052
        %2054 = vdwg.mxu0
        %2055 = vrot.lane.b32.xlu0 %v1824, 96
        %v2056 = vpop.permute.xlu0 %2055
        %v2059 = vsel %vm446, %v1990, 0
        %2061 = vmatpush.msra.mxu0 0.0
        %2062 = vmatpush.msra.mxu0 0.0
        %2063 = vmatpush.msra.mxu0 0.0
        %2064 = vmatpush.msra.mxu0 0.0
        %2065 = vmatpush.msra.mxu0 0.0
        %2066 = vmatpush.msra.mxu0 0.0
        %2067 = vmatpush.msra.mxu0 0.0
        %2068 = vmatpush.msra.mxu0 0.0
        %2069 = vmatpush.msra.mxu0 0.0
        %2070 = vmatpush.msra.mxu0 0.0
        %2071 = vmatpush.msra.mxu0 0.0
        %2072 = vmatpush.msra.mxu0 0.0
        %2073 = vmatpush.msra.mxu0 0.0
        %2074 = vmatpush.msra.mxu0 0.0
        %2075 = vmatpush.msra.mxu0 0.0
        %2076 = vmatpush.msra.mxu0 %v2056
        %2077 = vmatmul.f32.gmra.mxu0 %v2059
        %v2078 = vpop.f32.mrf.mxu0
        %v2079 = vadd.f32 0.0, %v2078
        %2080 = vdwg.mxu0
        %2081 = vrot.lane.b32.xlu0 %v1826, 96
        %v2082 = vpop.permute.xlu0 %2081
        %v2085 = vsel %vm446, %v2005, 0
        %2087 = vmatpush.msra.mxu0 0.0
        %2088 = vmatpush.msra.mxu0 0.0
        %2089 = vmatpush.msra.mxu0 0.0
        %2090 = vmatpush.msra.mxu0 0.0
        %2091 = vmatpush.msra.mxu0 0.0
        %2092 = vmatpush.msra.mxu0 0.0
        %2093 = vmatpush.msra.mxu0 0.0
        %2094 = vmatpush.msra.mxu0 0.0
        %2095 = vmatpush.msra.mxu0 0.0
        %2096 = vmatpush.msra.mxu0 0.0
        %2097 = vmatpush.msra.mxu0 0.0
        %2098 = vmatpush.msra.mxu0 0.0
        %2099 = vmatpush.msra.mxu0 0.0
        %2100 = vmatpush.msra.mxu0 0.0
        %2101 = vmatpush.msra.mxu0 0.0
        %2102 = vmatpush.msra.mxu0 %v2082
        %2103 = vmatmul.f32.gmra.mxu0 %v2085
        %v2104 = vpop.f32.mrf.mxu0
        %v2105 = vadd.f32 0.0, %v2104
        %2106 = vdwg.mxu0
        %2107 = vrot.lane.b32.xlu0 %v1828, 96
        %v2108 = vpop.permute.xlu0 %2107
        %v2111 = vsel %vm446, %v2020, 0
        %2113 = vmatpush.msra.mxu0 0.0
        %2114 = vmatpush.msra.mxu0 0.0
        %2115 = vmatpush.msra.mxu0 0.0
        %2116 = vmatpush.msra.mxu0 0.0
        %2117 = vmatpush.msra.mxu0 0.0
        %2118 = vmatpush.msra.mxu0 0.0
        %2119 = vmatpush.msra.mxu0 0.0
        %2120 = vmatpush.msra.mxu0 0.0
        %2121 = vmatpush.msra.mxu0 0.0
        %2122 = vmatpush.msra.mxu0 0.0
        %2123 = vmatpush.msra.mxu0 0.0
        %2124 = vmatpush.msra.mxu0 0.0
        %2125 = vmatpush.msra.mxu0 0.0
        %2126 = vmatpush.msra.mxu0 0.0
        %2127 = vmatpush.msra.mxu0 0.0
        %2128 = vmatpush.msra.mxu0 %v2108
        %2129 = vmatmul.f32.gmra.mxu0 %v2111
        %v2130 = vpop.f32.mrf.mxu0
        %v2131 = vadd.f32 0.0, %v2130
        %2132 = vdwg.mxu0
        %2134 = vrot.lane.b32.xlu0 %v2079, 8
        %v2135 = vpop.permute.xlu0 %2134
        %2138 = vrot.lane.b32.xlu0 %v2105, 16
        %v2139 = vpop.permute.xlu0 %2138
        %2142 = vrot.lane.b32.xlu0 %v2131, 24
        %v2143 = vpop.permute.xlu0 %2142
        %v2145 = vsel %vm446, %v2053, %v2135
        %v2146 = vsel %vm710, %v2145, %v2139
        %v2147 = vsel %vm712, %v2146, %v2143
        %2148 = vrot.lane.b32.xlu0 %v1354, 32
        %v2149 = vpop.permute.xlu0 %2148
        %2150 = vrot.lane.b32.xlu0 %v1355, 32
        %v2151 = vpop.permute.xlu0 %2150
        %2152 = vrot.lane.b32.xlu0 %v1356, 32
        %v2153 = vpop.permute.xlu0 %2152
        %2154 = vrot.lane.b32.xlu0 %v1357, 32
        %v2155 = vpop.permute.xlu0 %2154
        %2160 = vrot.lane.b32.xlu0 %v1751, 32
        %v2161 = vpop.permute.xlu0 %2160
        %v2164 = vsel %vm413, %v2147, 0
        %2166 = vmatpush.msra.mxu0 0.0
        %2167 = vmatpush.msra.mxu0 0.0
        %2168 = vmatpush.msra.mxu0 0.0
        %2169 = vmatpush.msra.mxu0 0.0
        %2170 = vmatpush.msra.mxu0 0.0
        %2171 = vmatpush.msra.mxu0 0.0
        %2172 = vmatpush.msra.mxu0 0.0
        %2173 = vmatpush.msra.mxu0 0.0
        %2174 = vmatpush.msra.mxu0 0.0
        %2175 = vmatpush.msra.mxu0 0.0
        %2176 = vmatpush.msra.mxu0 0.0
        %2177 = vmatpush.msra.mxu0 0.0
        %2178 = vmatpush.msra.mxu0 %v2155
        %2179 = vmatpush.msra.mxu0 %v2153
        %2180 = vmatpush.msra.mxu0 %v2151
        %2181 = vmatpush.msra.mxu0 %v2149
        %2182 = vmatmul.f32.gmra.mxu0 %v2164
        %v2183 = vpop.f32.mrf.mxu0
        %v2184 = vadd.f32 %v2161, %v2183
        %2185 = vdwg.mxu0
        %v2186 = vadd.f32 %v1750, %v2184
        %v2187 = vsel %vm413, %v2186, 0.0
        %2188 = vadd.xlane.f32.xlu0 %v2187
        %v2189 = vpop.xlane.xlu0 %2188
        %v2190 = vmul.f32 %v2189, %v767
        %v2191 = vsub.f32 %v2186, %v2190
        %v2192 = vmul.f32 %v2191, %v2191
        %v2193 = vsel %vm413, %v2192, 0.0
        %2194 = vadd.xlane.f32.xlu0 %v2193
        %v2195 = vpop.xlane.xlu0 %2194
        %v2196 = vmul.f32 %v2195, %v767
        %v2197 = vadd.f32 %v2196, 1e-05
        %v2198 = vrsqrt.pop %v2197
        %v2199 = vmul.f32 %v2198, %v2197
        %v2200 = vmul.f32 %v2199, %v2198
        %v2201 = vmul.f32 0.5, %v2200
        %v2202 = vsub.f32 1.5, %v2201
        %v2203 = vmul.f32 %v2198, %v2202
        %vm2204 = vweird.f32 %v2197
        %vm2205 = vweird.f32 %v2198
        %vm2206 = vmor %vm2204, %vm2205
        %v2207 = vsel %vm2206, %v2198, %v2203
        %v2208 = vmul.f32 %v2191, %v2207
        %v2209 = vperm.slane %v1381, 1
        %v2210 = vmul.f32 %v2208, %v2209
        %v2211 = vperm.slane %v1382, 1
        %v2212 = vadd.f32 %v2210, %v2211
        %v2213 = vperm.slane %v1363, 0
        %v2215 = vsel %vm413, %v2212, 0
        %2217 = vmatpush.msra.mxu0 0.0
        %2218 = vmatpush.msra.mxu0 0.0
        %2219 = vmatpush.msra.mxu0 0.0
        %2220 = vmatpush.msra.mxu0 0.0
        %2221 = vmatpush.msra.mxu0 0.0
        %2222 = vmatpush.msra.mxu0 0.0
        %2223 = vmatpush.msra.mxu0 0.0
        %2224 = vmatpush.msra.mxu0 0.0
        %2225 = vmatpush.msra.mxu0 0.0
        %2226 = vmatpush.msra.mxu0 0.0
        %2227 = vmatpush.msra.mxu0 0.0
        %2228 = vmatpush.msra.mxu0 0.0
        %2229 = vmatpush.msra.mxu0 %v1362
        %2230 = vmatpush.msra.mxu0 %v1361
        %2231 = vmatpush.msra.mxu0 %v1360
        %2232 = vmatpush.msra.mxu0 %v1359
        %2233 = vmatmul.f32.gmra.mxu0 %v2215
        %v2234 = vpop.f32.mrf.mxu0
        %v2235 = vadd.f32 %v2213, %v2234
        %2236 = vdwg.mxu0
        %v2237 = vmul.f32 %v2235, %v2235
        %v2238 = vmul.f32 %v2235, %v2237
        %v2239 = vmul.f32 %v2238, 0.044715
        %v2240 = vadd.f32 %v2235, %v2239
        %v2241 = vmul.f32 %v2240, 0.7978846
        %v2242 = vtanh.pop %v2241
        %v2243 = vadd.f32 %v2242, 1.0
        %v2244 = vmul.f32 %v2243, 0.5
        %v2245 = vmul.f32 %v2235, %v2244
        %v2246 = vperm.slane %v1380, 0
        %2247 = vmatpush.msra.mxu0 %v1379
        %2248 = vmatpush.msra.mxu0 %v1378
        %2249 = vmatpush.msra.mxu0 %v1377
        %2250 = vmatpush.msra.mxu0 %v1376
        %2251 = vmatpush.msra.mxu0 %v1375
        %2252 = vmatpush.msra.mxu0 %v1374
        %2253 = vmatpush.msra.mxu0 %v1373
        %2254 = vmatpush.msra.mxu0 %v1372
        %2255 = vmatpush.msra.mxu0 %v1371
        %2256 = vmatpush.msra.mxu0 %v1370
        %2257 = vmatpush.msra.mxu0 %v1369
        %2258 = vmatpush.msra.mxu0 %v1368
        %2259 = vmatpush.msra.mxu0 %v1367
        %2260 = vmatpush.msra.mxu0 %v1366
        %2261 = vmatpush.msra.mxu0 %v1365
        %2262 = vmatpush.msra.mxu0 %v1364
        %2263 = vmatmul.f32.gmra.mxu0 %v2245
        %v2264 = vpop.f32.mrf.mxu0
        %v2265 = vadd.f32 %v2246, %v2264
        %2266 = vdwg.mxu0
        %v2267 = vadd.f32 %v2212, %v2265
        %v2268 = vsel %vm413, %v2267, 0.0
        %2269 = vadd.xlane.f32.xlu0 %v2268
        %v2270 = vpop.xlane.xlu0 %2269
        %v2271 = vmul.f32 %v2270, %v767
        %v2272 = vsub.f32 %v2267, %v2271
        %v2273 = vmul.f32 %v2272, %v2272
        %v2274 = vsel %vm413, %v2273, 0.0
        %2275 = vadd.xlane.f32.xlu0 %v2274
        %v2276 = vpop.xlane.xlu0 %2275
        %v2277 = vmul.f32 %v2276, %v767
        %v2278 = vadd.f32 %v2277, 1e-05
        %v2279 = vrsqrt.pop %v2278
        %v2280 = vmul.f32 %v2279, %v2278
        %v2281 = vmul.f32 %v2280, %v2279
        %v2282 = vmul.f32 0.5, %v2281
        %v2283 = vsub.f32 1.5, %v2282
        %v2284 = vmul.f32 %v2279, %v2283
        %vm2285 = vweird.f32 %v2278
        %vm2286 = vweird.f32 %v2279
        %vm2287 = vmor %vm2285, %vm2286
        %v2288 = vsel %vm2287, %v2279, %v2284
        %v2289 = vmul.f32 %v2272, %v2288
        %v2290 = vperm.slane %v1381, 2
        %v2291 = vmul.f32 %v2289, %v2290
        %v2292 = vperm.slane %v1382, 2
        %v2293 = vadd.f32 %v2291, %v2292
        %v2294 = vsel %vm446, %v2028, 0.0
        %s2295 = scalar_lea.vmem %s321, 8
        %2296 = vst [vmem:[%s2295] sm:$0xff] %v2294
        %v2297 = vsel %vm413, %v2293, 0.0
        %2298 = vadd.xlane.f32.xlu0 %v2297
        %v2299 = vpop.xlane.xlu0 %2298
        %v2300 = vmul.f32 %v2299, %v767
        %v2301 = vsub.f32 %v2293, %v2300
        %v2302 = vmul.f32 %v2301, %v2301
        %v2303 = vsel %vm413, %v2302, 0.0
        %2304 = vadd.xlane.f32.xlu0 %v2303
        %v2305 = vpop.xlane.xlu0 %2304
        %v2306 = vmul.f32 %v2305, %v767
        %v2307 = vadd.f32 %v2306, 1e-05
        %v2308 = vrsqrt.pop %v2307
        %v2309 = vmul.f32 %v2308, %v2307
        %v2310 = vmul.f32 %v2309, %v2308
        %v2311 = vmul.f32 0.5, %v2310
        %v2312 = vsub.f32 1.5, %v2311
        %v2313 = vmul.f32 %v2308, %v2312
        %vm2314 = vweird.f32 %v2307
        %vm2315 = vweird.f32 %v2308
        %vm2316 = vmor %vm2314, %vm2315
        %v2317 = vsel %vm2316, %v2308, %v2313
        %v2318 = vmul.f32 %v2301, %v2317
        %v2319 = vperm.slane %v335, 0
        %v2320 = vmul.f32 %v2318, %v2319
        %v2321 = vperm.slane %v336, 0
        %v2322 = vadd.f32 %v2320, %v2321
        %v2324 = vsel %vm413, %v2322, 0
        %2326 = vmatpush.msra.mxu0 0.0
        %2327 = vmatpush.msra.mxu0 0.0
        %2328 = vmatpush.msra.mxu0 0.0
        %2329 = vmatpush.msra.mxu0 0.0
        %2330 = vmatpush.msra.mxu0 0.0
        %2331 = vmatpush.msra.mxu0 0.0
        %2332 = vmatpush.msra.mxu0 0.0
        %2333 = vmatpush.msra.mxu0 0.0
        %2334 = vmatpush.msra.mxu0 0.0
        %2335 = vmatpush.msra.mxu0 0.0
        %2336 = vmatpush.msra.mxu0 0.0
        %2337 = vmatpush.msra.mxu0 0.0
        %2338 = vmatpush.msra.mxu0 %v341
        %2339 = vmatpush.msra.mxu0 %v340
        %2340 = vmatpush.msra.mxu0 %v339
        %2341 = vmatpush.msra.mxu0 %v338
        %2342 = vmatmul.f32.gmra.mxu0 %v2324
        %v2343 = vpop.f32.mrf.mxu0
        %v2344 = vadd.f32 0.0, %v2343
        %2345 = vdwg.mxu0
        %2346 = vst [vmem:[%s295] sm:$0xff] %v2344
        %s2347 = sand.u32 %s155, 1
        %s2348 = scalar_lea.sflag [#allocation4], %s2347
        %s2349 = sand.u32 %s155, 1
        %s2350 = smul.addr %s2349, 8
        %s2351 = scalar_lea.vmem [#allocation5], %s2350
        %p2352 = scmp.lt.s32.totalorder %s22, 1
        %s2353 = scalar_select %p2352, %s22, 1
        %s2354 = smul.addr %s2353, 2
        %s2355 = smul.addr %s2354, 8
        %s2356 = scalar_lea.vmem %s6, %s2355
        // Predicated region
        $region45: #{decoder_forward.1} parent=39 // pred_check
          %p2357 = pneg %p165
        $region46: #{decoder_forward.1} parent=39 // pred_check_branch
          %2359 = sbr.rel (%p2357) target = $region48
        $region47: #{decoder_forward.1} parent=39 // pred_region
          %2361 = vsyncadd %s2348, 0
          %s2362 = smul.addr %s22, 8
          %s2363 = scalar_lea.hbm %s5, %s2362
          %s2365 = sshll.u32 %s2351, 4
          %s2366 = int_to_ptr.vmem [resolvable:$true] %s2365
          %s2367 = sshll.u32 %s2363, 4
          %s2368 = int_to_ptr.hbm [resolvable:$true] %s2367
          %2370 = dma.vmem_to_hbm [thread:$0]  %s2366, 128, %s2368, %s2348
        $region48: #{decoder_forward.1} parent=39 // pred_fallthru
          _
        // Predicated region
        $region49: #{decoder_forward.1} parent=39 // pred_check
          %p2371 = pneg %p191
        $region50: #{decoder_forward.1} parent=39 // pred_check_branch
          %2373 = sbr.rel (%p2371) target = $region52
        $region51: #{decoder_forward.1} parent=39 // pred_region
          _
        $region52: #{decoder_forward.1} parent=39 // pred_fallthru
          _
      $region40: #{decoder_forward.1} parent=5 // pred_fallthru
        _
      %p2374 = scmp.le.s32.totalorder 2, %s17
      // Predicated region
      $region53: #{decoder_forward.1} parent=5 // pred_check
        %p2375 = pneg %p2374
      $region54: #{decoder_forward.1} parent=5 // pred_check_branch
        %2377 = sbr.rel (%p2375) target = $region56
      $region55: #{decoder_forward.1} parent=5 // pred_region
        %s2378 = ssub.s32 %s17, 2
        // Predicated region
        $region57: #{decoder_forward.1} parent=55 // pred_check
          %p2379 = pneg %p171
        $region58: #{decoder_forward.1} parent=55 // pred_check_branch
          %2381 = sbr.rel (%p2379) target = $region60
        $region59: #{decoder_forward.1} parent=55 // pred_region
          %s2382 = sand.u32 %s156, 1
          %s2383 = scalar_lea.sflag [#allocation4], %s2382
          %s2384 = sand.u32 %s156, 1
          %s2385 = smul.addr %s2384, 8
          %s2386 = scalar_lea.vmem [#allocation5], %s2385
          %2388 = dma.done %s2383, 128
        $region60: #{decoder_forward.1} parent=55 // pred_fallthru
          _
        // Predicated region
        $region61: #{decoder_forward.1} parent=55 // pred_check
          %p2389 = pneg %p197
        $region62: #{decoder_forward.1} parent=55 // pred_check_branch
          %2391 = sbr.rel (%p2389) target = $region64
        $region63: #{decoder_forward.1} parent=55 // pred_region
          %p2392 = scmp.lt.s32.totalorder %s23, 1
          %s2393 = scalar_select %p2392, %s23, 1
          %s2394 = smul.addr %s2393, 2
          %s2395 = smul.addr %s2394, 8
          %s2396 = scalar_lea.vmem %s6, %s2395
        $region64: #{decoder_forward.1} parent=55 // pred_fallthru
          _
      $region56: #{decoder_forward.1} parent=5 // pred_fallthru
        _
    $region6: #{decoder_forward.1} parent=1 // loop_footer
      %s21 = sadd.s32 1, %s17
    $region7: #{decoder_forward.1} parent=1 // loop_footer_branch
      %16 = sbr.rel target = $region3
    $region8: #{decoder_forward.1} parent=1 // loop_exit
      _
    %2397 = vsyncpa [#allocation3], 1
    %s2398 = scalar_lea.sflag [#allocation3], 1
    %2399 = vsyncpa %s2398, 1
    %2400 = vsyncpa [#allocation4], 1
    %s2401 = scalar_lea.sflag [#allocation4], 1
    %2402 = vsyncpa %s2401, 1

</llo_original>
